<compile_context>
chip_gen: v5e
topology: v5e:2x2
jax: 0.10.0
libtpu: 0.0.40
codegen_flags: <defaults>
</compile_context>

<pallas_src>
import functools
import math
import time

import jax
import jax.numpy as jnp
from jax import lax
from jax.experimental import pallas as pl
from jax.experimental.pallas import tpu as pltpu  # noqa: F401  (VMEM defaults used)

# ----------------------------- configuration --------------------------------
# Small-shape stand-ins for the APESv3 seg config (structure preserved).
EMB_K = [8, 8]               # EdgeConv neighborhood sizes (2 embedding layers)
EMB_C = 16                   # each EdgeConv output channels -> concat = 32
ATTN_K = [8, 8, 8, 8, 8]     # Neighbor2PointAttention K (2*len(M)+1 layers)
FF_DIM = 64                  # attention feed-forward hidden dim
DS_M = [16, 8]               # downsample target point counts M
NSAMPLE = 8                  # fpsknn group size (stand-in for nsample=32)
MLP_DIMS = [64, 64, 32]      # PointNetSetAbstraction mlp (stand-in for [256,256,128])
BN_SCALE = 1.0 / math.sqrt(1.0 + 1e-5)   # eval-mode BN with fresh stats (mean=0, var=1)


# ----------------------------- kernel helpers --------------------------------

def _mxu(w, x):
    """MXU matmul with bf16 operands and f32 accumulation.

    w: (Co, Ci); x: (Ci, ...) (2-D or 3-D, contraction on dim 0 of x)."""
    return lax.dot_general(w.astype(jnp.bfloat16), x.astype(jnp.bfloat16),
                           (((1,), (0,)), ((), ())),
                           preferred_element_type=jnp.float32)


def _leaky(x):
    return jnp.where(x > 0, x, 0.2 * x)


# ----------------------------- Pallas kernels --------------------------------

def _edgeconv_kernel(x_ref, diff_ref, w1c_ref, w1d_ref, w2_ref, o_ref):
    """Fused EdgeConv: split first conv (center/diff), second conv, max over K.

    x: (C, L) f32 center features, diff: (C, K, L) bf16 (neighbor - center),
    out: (Co2, L) f32.  L = B*N on the lane axis, K on sublanes."""
    cpart = _mxu(w1c_ref[...], x_ref[...])              # (Co1, L)    center half
    dpart = _mxu(w1d_ref[...], diff_ref[...])           # (Co1, K, L) diff half
    h1 = _leaky(cpart[:, None, :] + dpart)              # (Co1, K, L)
    h2 = _leaky(_mxu(w2_ref[...], h1))                  # (Co2, K, L)
    o_ref[...] = jnp.max(h2, axis=1)                    # max over K (fused)


def _n2p_kernel(x_ref, diff_ref, wqk_ref, wv_ref, ff1_ref, ff2_ref,
                s1_ref, b1_ref, s2_ref, b2_ref, o_ref, *, scale):
    """Whole Neighbor2PointAttention layer (q/k folded, post-agg v projection,
    neighbor softmax, residual+BN, FFN, residual+BN) -- lane-dense over points."""
    x = x_ref[...]                                       # (C, L) f32
    diff = diff_ref[...].astype(jnp.float32)             # (C, K, L)
    qproj = _mxu(wqk_ref[...], x)                        # (C, L)   = (Wk^T Wq) x
    # energy[k, l] = sum_C qproj[c, l] * diff[c, k, l]   (lane-dense, reduce over
    # the leading C axis = cheap cross-vreg adds)
    energy = jnp.sum(qproj[:, None, :] * diff, axis=0) * scale        # (K, L)
    m = jnp.max(energy, axis=0, keepdims=True)                        # (1, L)
    e = jnp.exp(energy - m)
    attn = e * pl.reciprocal(jnp.sum(e, axis=0, keepdims=True), approx=True)
    # vagg[c, l] = sum_K attn[k, l] * diff[c, k, l]  (8-sublane reduce)
    vagg = jnp.sum(attn[None, :, :] * diff, axis=1)                   # (C, L)
    attn_out = _mxu(wv_ref[...], vagg)                                # (C, L)
    x1 = s1_ref[...] * (attn_out + x) + b1_ref[...]                   # residual + BN1
    h = _leaky(_mxu(ff1_ref[...], x1))                                # (F, L)
    y = _mxu(ff2_ref[...], h)                                         # (C, L)
    o_ref[...] = s2_ref[...] * (y + x1) + b2_ref[...]                 # residual + BN2


def _sa_mlp_max_kernel(*refs, n_layers):
    """PointNetSetAbstraction shared MLP (ReLU) chain fused with max over nsample.

    g: (Cg, K, L) bf16 grouped features, out: (Cout, L) f32."""
    g_ref = refs[0]
    w_refs = refs[1:1 + n_layers]
    o_ref = refs[1 + n_layers]
    h = g_ref[...]
    for w_ref in w_refs:
        h = jnp.maximum(_mxu(w_ref[...], h), 0.0)        # (Co, K, L)
    o_ref[...] = jnp.max(h, axis=1)                      # max over nsample (fused)


def _knn_score_kernel(q_ref, p_ref, o_ref):
    """kNN ranking score: score[b, m, n] = 2<q_m, p_n> - ||p_n||^2.

    Equal to -||q_m - p_n||^2 up to a per-query constant, so top_k over n is
    identical to nearest-neighbor selection (no extra negate pass needed)."""
    B = q_ref.shape[0]
    for bi in range(B):                                   # B=2, unrolled
        q = q_ref[bi]                                     # (C, M)
        p = p_ref[bi]                                     # (C, N)
        inner = lax.dot_general(q.astype(jnp.bfloat16), p.astype(jnp.bfloat16),
                                (((0,), (0,)), ((), ())),
                                preferred_element_type=jnp.float32)   # (M, N)
        pp = jnp.sum(p * p, axis=0, keepdims=True)        # (1, N)
        o_ref[bi] = 2.0 * inner - pp


def _upsample_kernel(up_ref, sel_ref, wq_ref, wk_ref, wv_ref, ws_ref, o_ref):
    """crossA UpSample: q/k/v/skip projections + cross-attention, per batch element."""
    B = up_ref.shape[0]
    for bi in range(B):                                   # B=2, unrolled
        up = up_ref[bi]                                   # (C, Nq)
        sel = sel_ref[bi]                                 # (C, Nk)
        q = _mxu(wq_ref[...], up)
        k = _mxu(wk_ref[...], sel)
        v = _mxu(wv_ref[...], sel)
        energy = lax.dot_general(q.astype(jnp.bfloat16), k.astype(jnp.bfloat16),
                                 (((0,), (0,)), ((), ())),
                                 preferred_element_type=jnp.float32)  # (Nq, Nk)
        m = jnp.max(energy, axis=-1, keepdims=True)
        e = jnp.exp(energy - m)
        attn = e * pl.reciprocal(jnp.sum(e, axis=-1, keepdims=True), approx=True)
        attn_out = lax.dot_general(v.astype(jnp.bfloat16), attn.astype(jnp.bfloat16),
                                   (((1,), (1,)), ((), ())),
                                   preferred_element_type=jnp.float32)  # (C, Nq)
        skip = _mxu(ws_ref[...], up)
        o_ref[bi] = skip + attn_out


# ----------------------------- layout helpers ---------------------------------

def to_cl(x):
    """(B, C, N) -> (C, B*N) lane-dense point features."""
    B, C, N = x.shape
    return jnp.transpose(x, (1, 0, 2)).reshape(C, B * N)


def from_cl(x2, b):
    """(C, B*N) -> (B, C, N)."""
    C, L = x2.shape
    return jnp.transpose(x2.reshape(C, b, L // b), (1, 0, 2))


def grouped_to_ckl(g):
    """(B, C, M, K) -> (C, K, B*M): points on lanes, K on sublanes."""
    B, C, M, K = g.shape
    return jnp.transpose(g, (1, 3, 0, 2)).reshape(C, K, B * M)


# ----------------------------- JAX glue ops ------------------------------------

def knn_indices(query, ref, k):
    """query (B, C, M), ref (B, C, N) -> indices (B, M, k) of k nearest points."""
    B, C, M = query.shape
    N = ref.shape[-1]
    score = pl.pallas_call(
        _knn_score_kernel,
        out_shape=jax.ShapeDtypeStruct((B, M, N), jnp.float32),
    )(query, ref)
    # TODO(synk): at production N fuse the top-k selection into the score kernel.
    _, idx = jax.lax.top_k(score, k)
    return idx


def gather_neighbors(x, idx):
    """x (B, C, N), idx (B, M, K) -> (B, C, M, K)."""
    # TODO(synk): at production sizes do this gather in-kernel via scalar prefetch
    # / manual DMA instead of materializing the K-expanded tensor in HBM.
    return jax.vmap(lambda xb, ib: xb[:, ib])(x, idx)


def gather_by_idx(x, idx):
    """ops.gather_by_idx: x (B, C, N), idx (B, M) -> (B, C, M)."""
    return jax.vmap(lambda xb, ib: xb[:, ib])(x, idx)


def farthest_point_sample(xyz, m):
    """xyz (B, 3, N) -> (B, m) int32 FPS indices (deterministic start at 0)."""
    # TODO(synk): FPS is inherently sequential; kept as lax.fori_loop, not a Pallas kernel.
    B, _, N = xyz.shape
    pts = jnp.transpose(xyz, (0, 2, 1))   # (B, N, 3)

    def one(p):
        def body(i, state):
            idxs, dist, far = state
            idxs = idxs.at[i].set(far)
            d = jnp.sum((p - p[far]) ** 2, axis=-1)
            dist = jnp.minimum(dist, d)
            far = jnp.argmax(dist).astype(jnp.int32)
            return idxs, dist, far

        idxs0 = jnp.zeros((m,), jnp.int32)
        dist0 = jnp.full((N,), 1e10, jnp.float32)
        idxs, _, _ = jax.lax.fori_loop(0, m, body, (idxs0, dist0, jnp.int32(0)))
        return idxs

    return jax.vmap(one)(pts)


# ----------------------------- model modules -----------------------------------

def edge_conv(x, p, k):
    """APES EdgeConv: feature-space kNN, 'center_diff' grouping (split-weight, no
    concat materialized), fused Conv+BN+LeakyReLU x2 + max-over-K in one kernel."""
    B, C, N = x.shape
    idx = knn_indices(x, x, k)                            # (B, N, k)
    nbrs = gather_neighbors(x, idx)                       # (B, C, N, k)
    diff = nbrs - x[:, :, :, None]                        # neighbor - center
    diff_ckl = grouped_to_ckl(diff).astype(jnp.bfloat16)  # (C, k, B*N)  half HBM bytes
    x_cl = to_cl(x)                                       # (C, B*N)
    Co = p["w2"].shape[0]
    out2 = pl.pallas_call(
        _edgeconv_kernel,
        out_shape=jax.ShapeDtypeStruct((Co, B * N), jnp.float32),
    )(x_cl, diff_ckl, p["w1c"], p["w1d"], p["w2"])
    return from_cl(out2, B)


def n2p_attention(x, p, k):
    """Neighbor2PointAttention (single head, group_type='diff') + residual BN + FFN,
    fully fused into one lane-dense Pallas kernel."""
    B, C, N = x.shape
    idx = knn_indices(x, x, k)
    nbrs = gather_neighbors(x, idx)                       # (B, C, N, k)
    diff = nbrs - x[:, :, :, None]
    diff_ckl = grouped_to_ckl(diff).astype(jnp.bfloat16)  # (C, k, B*N)
    x_cl = to_cl(x)
    wqk = jnp.dot(p["wk"].T, p["wq"])                     # fold q/k projections
    g1, beta1 = p["bn1"]
    g2, beta2 = p["bn2"]
    s1 = (g1 * BN_SCALE).reshape(C, 1)
    s2 = (g2 * BN_SCALE).reshape(C, 1)
    b1 = beta1.reshape(C, 1)
    b2 = beta2.reshape(C, 1)
    out2 = pl.pallas_call(
        functools.partial(_n2p_kernel, scale=1.0 / math.sqrt(C)),
        out_shape=jax.ShapeDtypeStruct((C, B * N), jnp.float32),
    )(x_cl, diff_ckl, wqk, p["wv"], p["ff1"], p["ff2"], s1, b1, s2, b2)
    return from_cl(out2, B)


def pointnet_set_abstraction(xyz, feats, p, npoint, nsample):
    """PointNetSetAbstraction with FPS sampling + kNN grouping ('fpsknn'):
    returns (new features (B, Cmlp[-1], npoint), fps indices (B, npoint))."""
    B = xyz.shape[0]
    fps_idx = farthest_point_sample(xyz, npoint)          # (B, M)
    new_xyz = gather_by_idx(xyz, fps_idx)                 # (B, 3, M)
    idx = knn_indices(new_xyz, xyz, nsample)              # (B, M, ns)
    grouped_xyz = gather_neighbors(xyz, idx) - new_xyz[:, :, :, None]   # (B, 3, M, ns)
    grouped_feats = gather_neighbors(feats, idx)          # (B, D, M, ns)
    g = jnp.concatenate([grouped_xyz, grouped_feats], axis=1)           # (B, 3+D, M, ns)
    g_ckl = grouped_to_ckl(g).astype(jnp.bfloat16)        # (3+D, ns, B*M)
    ws = p["mlp"]
    Co = ws[-1].shape[0]
    out2 = pl.pallas_call(
        functools.partial(_sa_mlp_max_kernel, n_layers=len(ws)),
        out_shape=jax.ShapeDtypeStruct((Co, B * npoint), jnp.float32),
    )(g_ckl, *ws)
    return from_cl(out2, B), fps_idx


def upsample_cross_attention(pcd_up, points_select, p):
    """crossA UpSample: q from dense cloud, k/v from downsampled cloud, skip-link add."""
    B, C, Nq = pcd_up.shape
    return pl.pallas_call(
        _upsample_kernel,
        out_shape=jax.ShapeDtypeStruct((B, C, Nq), jnp.float32),
    )(pcd_up, points_select, p["wq"], p["wk"], p["wv"], p["wskip"])


# ----------------------------- jitted stages ------------------------------------

@jax.jit
def _stage_pre(emb_params, attn0_params, x):
    """Embeddings (EdgeConv chain, concatenated) + first attention layer."""
    x_xyz = x[:, :3, :]
    x_list, cur = [], x
    for layer, p in enumerate(emb_params):
        cur = edge_conv(cur, p, EMB_K[layer])
        x_list.append(cur)
    feat = jnp.concatenate(x_list, axis=1)
    feat = n2p_attention(feat, attn0_params, ATTN_K[0])
    return feat, x_xyz


@functools.partial(jax.jit, static_argnames=("stage",))
def _stage_sa(sa_params, x_xyz, feats, *, stage):
    """One PointNetSetAbstraction (fps + knn grouping + shared MLP + max)."""
    return pointnet_set_abstraction(x_xyz, feats, sa_params, DS_M[stage], NSAMPLE)


@functools.partial(jax.jit, static_argnames=("layer_idx",))
def _stage_post_ds(attn_params, x, x_xyz, idx_select, *, layer_idx):
    """Attention layer after a downsample + xyz gather."""
    x = n2p_attention(x, attn_params, ATTN_K[layer_idx])
    x_xyz = gather_by_idx(x_xyz, idx_select)
    return x, x_xyz


@functools.partial(jax.jit, static_argnames=("layer_idx",))
def _stage_up(up_params, attn_params, x_tmp, points_select, *, layer_idx):
    """One crossA upsample + the following attention layer."""
    x = upsample_cross_attention(x_tmp, points_select, up_params)
    return n2p_attention(x, attn_params, ATTN_K[layer_idx])


# ----------------------------- parameters ----------------------------------------

def init_params(key):
    keys = iter(jax.random.split(key, 128))

    def lin(cout, cin, fold_bn=True):
        w = 0.1 * jax.random.normal(next(keys), (cout, cin), jnp.float32)
        return w * BN_SCALE if fold_bn else w

    C = 2 * EMB_C
    params = {}

    emb, cin = [], 3
    for _ in EMB_K:
        # First conv weight split into center / diff halves (no concat materialized).
        emb.append({"w1c": lin(EMB_C, cin), "w1d": lin(EMB_C, cin),
                    "w2": lin(EMB_C, EMB_C)})
        cin = EMB_C
    params["embedding"] = emb

    attn = []
    for _ in ATTN_K:
        attn.append({
            "wq": lin(C, C, False), "wk": lin(C, C, False), "wv": lin(C, C, False),
            "ff1": lin(FF_DIM, C, False), "ff2": lin(C, FF_DIM, False),
            "bn1": (jnp.ones((C,), jnp.float32), jnp.zeros((C,), jnp.float32)),
            "bn2": (jnp.ones((C,), jnp.float32), jnp.zeros((C,), jnp.float32)),
        })
    params["attention"] = attn

    fps = []
    for _ in DS_M:
        cin_mlp, mlp = 3 + C, []
        for cout in MLP_DIMS:
            mlp.append(lin(cout, cin_mlp))
            cin_mlp = cout
        fps.append({"mlp": mlp})
    params["fpsknn"] = fps

    params["upsample"] = [{"wq": lin(C, C, False), "wk": lin(C, C, False),
                           "wv": lin(C, C, False), "wskip": lin(C, C, False)}
                          for _ in DS_M]
    return params


# ----------------------------- forward pass ---------------------------------------

def feature_learning_block_forward(params, x):
    # embeddings + first attention (one jitted program)
    cur, x_xyz = _stage_pre(params["embedding"], params["attention"][0], x)

    x_list = [cur]
    points_drop_list, idx_select_list, idx_drop_list = [], [], []
    x_xyz_list = [x_xyz]
    time_list = []

    for i in range(len(DS_M)):
        # Block on the stage inputs before starting the timer so previously
        # dispatched async work is not counted (matches torch.cuda.synchronize).
        jax.block_until_ready((cur, x_xyz))
        t0 = time.perf_counter()
        cur_ds, idx_select = _stage_sa(params["fpsknn"][i], x_xyz, cur, stage=i)
        jax.block_until_ready((cur_ds, idx_select))
        time_list.append(time.perf_counter() - t0)

        points_drop, idx_drop = None, None
        cur, x_xyz = _stage_post_ds(params["attention"][i + 1], cur_ds, x_xyz,
                                    idx_select, layer_idx=i + 1)
        x_list.append(cur)
        x_xyz_list.append(x_xyz)
        points_drop_list.append(points_drop)
        idx_select_list.append(idx_select)
        idx_drop_list.append(idx_drop)

    split = int((len(params["attention"]) - 1) / 2)
    x_state = ((x_list.pop(), idx_select_list.pop(), x_xyz_list.pop()),
               (points_drop_list.pop(), idx_drop_list.pop()))
    n_us = len(params["upsample"])
    for j in range(n_us):
        x_tmp = x_list.pop()
        _x_xyz_tmp = x_xyz_list[-1 - j]   # unused by the crossA upsample variant
        (points_select, _idx_sel, _xyz_sel), (_pd, _id) = x_state
        cur = _stage_up(params["upsample"][j], params["attention"][j + 1 + split],
                        x_tmp, points_select, layer_idx=j + 1 + split)
        if j < n_us - 1:
            x_state = ((cur, idx_select_list.pop(), x_xyz_list[-1 - j]),
                       (points_drop_list.pop(), idx_drop_list.pop()))
    return cur, time_list


# ----------------------------- main -------------------------------------------------

if __name__ == "__main__":
    B, N = 2, 32
    x = jax.random.normal(jax.random.PRNGKey(0), (B, 3, N), jnp.float32)
    params = init_params(jax.random.PRNGKey(42))

    # warm-up pass (compiles all jitted stages / Pallas kernels)
    out, _ = feature_learning_block_forward(params, x)
    jax.block_until_ready(out)

    # measured pass
    out, time_list = feature_learning_block_forward(params, x)
    out = jax.block_until_ready(out)

    assert out.shape == (B, 2 * EMB_C, N), out.shape
    assert bool(jnp.all(jnp.isfinite(out)))
    assert len(time_list) == len(DS_M)
    print("KERNEL_OK")
</pallas_src>

<mosaic_0001>
module attributes {stable_mosaic.version = 11 : i64} {
  func.func @_knn_score_kernel(%arg0: memref<2x3x32xf32, #tpu.memory_space<vmem>>, %arg1: memref<2x3x32xf32, #tpu.memory_space<vmem>>, %arg2: memref<2x32x32xf32, #tpu.memory_space<vmem>>) attributes {dimension_semantics = [], scalar_prefetch = 0 : i64, scratch_operands = 0 : i64, tpu.core_type = #tpu.core_type<tc>} {
    %c0 = arith.constant 0 : index
    %c0_0 = arith.constant 0 : index
    %c0_1 = arith.constant 0 : index
    %0 = vector.load %arg0[%c0, %c0_0, %c0_1] : memref<2x3x32xf32, #tpu.memory_space<vmem>>, vector<1x3x32xf32>
    %1 = vector.shape_cast %0 : vector<1x3x32xf32> to vector<3x32xf32>
    %c0_2 = arith.constant 0 : index
    %c0_3 = arith.constant 0 : index
    %c0_4 = arith.constant 0 : index
    %2 = vector.load %arg1[%c0_2, %c0_3, %c0_4] : memref<2x3x32xf32, #tpu.memory_space<vmem>>, vector<1x3x32xf32>
    %3 = vector.shape_cast %2 : vector<1x3x32xf32> to vector<3x32xf32>
    %4 = arith.truncf %1 : vector<3x32xf32> to vector<3x32xbf16>
    %5 = arith.truncf %3 : vector<3x32xf32> to vector<3x32xbf16>
    %cst = arith.constant dense<0.000000e+00> : vector<32x32xf32>
    %6 = tpu.matmul %4, %5, %cst {dimension_numbers = #tpu.dot_dimension_numbers<[0], [0], [1], [1], [0, 1, 1, 1], [], []>} : vector<3x32xbf16>, vector<3x32xbf16>, vector<32x32xf32> -> vector<32x32xf32>
    %7 = arith.mulf %3, %3 : vector<3x32xf32>
    %cst_5 = arith.constant dense<0.000000e+00> : vector<32xf32>
    %8 = vector.multi_reduction <add>, %7, %cst_5 [0] : vector<3x32xf32> to vector<32xf32>
    %9 = vector.shape_cast %8 : vector<32xf32> to vector<1x32xf32>
    %cst_6 = arith.constant 2.000000e+00 : f32
    %10 = vector.broadcast %cst_6 : f32 to vector<32x32xf32>
    %11 = arith.mulf %10, %6 : vector<32x32xf32>
    %12 = vector.broadcast %9 : vector<1x32xf32> to vector<32x32xf32>
    %13 = arith.subf %11, %12 : vector<32x32xf32>
    %c0_7 = arith.constant 0 : index
    %c0_8 = arith.constant 0 : index
    %c0_9 = arith.constant 0 : index
    %14 = vector.load %arg2[%c0_7, %c0_8, %c0_9] : memref<2x32x32xf32, #tpu.memory_space<vmem>>, vector<1x32x32xf32>
    %15 = vector.shape_cast %14 : vector<1x32x32xf32> to vector<32x32xf32>
    %16 = vector.shape_cast %13 : vector<32x32xf32> to vector<1x32x32xf32>
    tpu.vector_store %arg2[%c0_7, %c0_8, %c0_9], %16 {strides = array<i32>} : memref<2x32x32xf32, #tpu.memory_space<vmem>>, vector<1x32x32xf32>,
    %c1 = arith.constant 1 : index
    %c0_10 = arith.constant 0 : index
    %c0_11 = arith.constant 0 : index
    %17 = vector.load %arg0[%c1, %c0_10, %c0_11] : memref<2x3x32xf32, #tpu.memory_space<vmem>>, vector<1x3x32xf32>
    %18 = vector.shape_cast %17 : vector<1x3x32xf32> to vector<3x32xf32>
    %c1_12 = arith.constant 1 : index
    %c0_13 = arith.constant 0 : index
    %c0_14 = arith.constant 0 : index
    %19 = vector.load %arg1[%c1_12, %c0_13, %c0_14] : memref<2x3x32xf32, #tpu.memory_space<vmem>>, vector<1x3x32xf32>
    %20 = vector.shape_cast %19 : vector<1x3x32xf32> to vector<3x32xf32>
    %21 = arith.truncf %18 : vector<3x32xf32> to vector<3x32xbf16>
    %22 = arith.truncf %20 : vector<3x32xf32> to vector<3x32xbf16>
    %cst_15 = arith.constant dense<0.000000e+00> : vector<32x32xf32>
    %23 = tpu.matmul %21, %22, %cst_15 {dimension_numbers = #tpu.dot_dimension_numbers<[0], [0], [1], [1], [0, 1, 1, 1], [], []>} : vector<3x32xbf16>, vector<3x32xbf16>, vector<32x32xf32> -> vector<32x32xf32>
    %24 = arith.mulf %20, %20 : vector<3x32xf32>
    %cst_16 = arith.constant dense<0.000000e+00> : vector<32xf32>
    %25 = vector.multi_reduction <add>, %24, %cst_16 [0] : vector<3x32xf32> to vector<32xf32>
    %26 = vector.shape_cast %25 : vector<32xf32> to vector<1x32xf32>
    %cst_17 = arith.constant 2.000000e+00 : f32
    %27 = vector.broadcast %cst_17 : f32 to vector<32x32xf32>
    %28 = arith.mulf %27, %23 : vector<32x32xf32>
    %29 = vector.broadcast %26 : vector<1x32xf32> to vector<32x32xf32>
    %30 = arith.subf %28, %29 : vector<32x32xf32>
    %c1_18 = arith.constant 1 : index
    %c0_19 = arith.constant 0 : index
    %c0_20 = arith.constant 0 : index
    %31 = vector.load %arg2[%c1_18, %c0_19, %c0_20] : memref<2x32x32xf32, #tpu.memory_space<vmem>>, vector<1x32x32xf32>
    %32 = vector.shape_cast %31 : vector<1x32x32xf32> to vector<32x32xf32>
    %33 = vector.shape_cast %30 : vector<32x32xf32> to vector<1x32x32xf32>
    tpu.vector_store %arg2[%c1_18, %c0_19, %c0_20], %33 {strides = array<i32>} : memref<2x32x32xf32, #tpu.memory_space<vmem>>, vector<1x32x32xf32>,
    return
  }
}

module attributes {stable_mosaic.version = 11 : i64} {
  func.func @_knn_score_kernel(%arg0: memref<2x16x32xf32, #tpu.memory_space<vmem>>, %arg1: memref<2x16x32xf32, #tpu.memory_space<vmem>>, %arg2: memref<2x32x32xf32, #tpu.memory_space<vmem>>) attributes {dimension_semantics = [], scalar_prefetch = 0 : i64, scratch_operands = 0 : i64, tpu.core_type = #tpu.core_type<tc>} {
    %c0 = arith.constant 0 : index
    %c0_0 = arith.constant 0 : index
    %c0_1 = arith.constant 0 : index
    %0 = vector.load %arg0[%c0, %c0_0, %c0_1] : memref<2x16x32xf32, #tpu.memory_space<vmem>>, vector<1x16x32xf32>
    %1 = vector.shape_cast %0 : vector<1x16x32xf32> to vector<16x32xf32>
    %c0_2 = arith.constant 0 : index
    %c0_3 = arith.constant 0 : index
    %c0_4 = arith.constant 0 : index
    %2 = vector.load %arg1[%c0_2, %c0_3, %c0_4] : memref<2x16x32xf32, #tpu.memory_space<vmem>>, vector<1x16x32xf32>
    %3 = vector.shape_cast %2 : vector<1x16x32xf32> to vector<16x32xf32>
    %4 = arith.truncf %1 : vector<16x32xf32> to vector<16x32xbf16>
    %5 = arith.truncf %3 : vector<16x32xf32> to vector<16x32xbf16>
    %cst = arith.constant dense<0.000000e+00> : vector<32x32xf32>
    %6 = tpu.matmul %4, %5, %cst {dimension_numbers = #tpu.dot_dimension_numbers<[0], [0], [1], [1], [0, 1, 1, 1], [], []>} : vector<16x32xbf16>, vector<16x32xbf16>, vector<32x32xf32> -> vector<32x32xf32>
    %7 = arith.mulf %3, %3 : vector<16x32xf32>
    %cst_5 = arith.constant dense<0.000000e+00> : vector<32xf32>
    %8 = vector.multi_reduction <add>, %7, %cst_5 [0] : vector<16x32xf32> to vector<32xf32>
    %9 = vector.shape_cast %8 : vector<32xf32> to vector<1x32xf32>
    %cst_6 = arith.constant 2.000000e+00 : f32
    %10 = vector.broadcast %cst_6 : f32 to vector<32x32xf32>
    %11 = arith.mulf %10, %6 : vector<32x32xf32>
    %12 = vector.broadcast %9 : vector<1x32xf32> to vector<32x32xf32>
    %13 = arith.subf %11, %12 : vector<32x32xf32>
    %c0_7 = arith.constant 0 : index
    %c0_8 = arith.constant 0 : index
    %c0_9 = arith.constant 0 : index
    %14 = vector.load %arg2[%c0_7, %c0_8, %c0_9] : memref<2x32x32xf32, #tpu.memory_space<vmem>>, vector<1x32x32xf32>
    %15 = vector.shape_cast %14 : vector<1x32x32xf32> to vector<32x32xf32>
    %16 = vector.shape_cast %13 : vector<32x32xf32> to vector<1x32x32xf32>
    tpu.vector_store %arg2[%c0_7, %c0_8, %c0_9], %16 {strides = array<i32>} : memref<2x32x32xf32, #tpu.memory_space<vmem>>, vector<1x32x32xf32>,
    %c1 = arith.constant 1 : index
    %c0_10 = arith.constant 0 : index
    %c0_11 = arith.constant 0 : index
    %17 = vector.load %arg0[%c1, %c0_10, %c0_11] : memref<2x16x32xf32, #tpu.memory_space<vmem>>, vector<1x16x32xf32>
    %18 = vector.shape_cast %17 : vector<1x16x32xf32> to vector<16x32xf32>
    %c1_12 = arith.constant 1 : index
    %c0_13 = arith.constant 0 : index
    %c0_14 = arith.constant 0 : index
    %19 = vector.load %arg1[%c1_12, %c0_13, %c0_14] : memref<2x16x32xf32, #tpu.memory_space<vmem>>, vector<1x16x32xf32>
    %20 = vector.shape_cast %19 : vector<1x16x32xf32> to vector<16x32xf32>
    %21 = arith.truncf %18 : vector<16x32xf32> to vector<16x32xbf16>
    %22 = arith.truncf %20 : vector<16x32xf32> to vector<16x32xbf16>
    %cst_15 = arith.constant dense<0.000000e+00> : vector<32x32xf32>
    %23 = tpu.matmul %21, %22, %cst_15 {dimension_numbers = #tpu.dot_dimension_numbers<[0], [0], [1], [1], [0, 1, 1, 1], [], []>} : vector<16x32xbf16>, vector<16x32xbf16>, vector<32x32xf32> -> vector<32x32xf32>
    %24 = arith.mulf %20, %20 : vector<16x32xf32>
    %cst_16 = arith.constant dense<0.000000e+00> : vector<32xf32>
    %25 = vector.multi_reduction <add>, %24, %cst_16 [0] : vector<16x32xf32> to vector<32xf32>
    %26 = vector.shape_cast %25 : vector<32xf32> to vector<1x32xf32>
    %cst_17 = arith.constant 2.000000e+00 : f32
    %27 = vector.broadcast %cst_17 : f32 to vector<32x32xf32>
    %28 = arith.mulf %27, %23 : vector<32x32xf32>
    %29 = vector.broadcast %26 : vector<1x32xf32> to vector<32x32xf32>
    %30 = arith.subf %28, %29 : vector<32x32xf32>
    %c1_18 = arith.constant 1 : index
    %c0_19 = arith.constant 0 : index
    %c0_20 = arith.constant 0 : index
    %31 = vector.load %arg2[%c1_18, %c0_19, %c0_20] : memref<2x32x32xf32, #tpu.memory_space<vmem>>, vector<1x32x32xf32>
    %32 = vector.shape_cast %31 : vector<1x32x32xf32> to vector<32x32xf32>
    %33 = vector.shape_cast %30 : vector<32x32xf32> to vector<1x32x32xf32>
    tpu.vector_store %arg2[%c1_18, %c0_19, %c0_20], %33 {strides = array<i32>} : memref<2x32x32xf32, #tpu.memory_space<vmem>>, vector<1x32x32xf32>,
    return
  }
}

module attributes {stable_mosaic.version = 11 : i64} {
  func.func @_edgeconv_kernel(%arg0: memref<3x64xf32, #tpu.memory_space<vmem>>, %arg1: memref<3x8x64xbf16, #tpu.memory_space<vmem>>, %arg2: memref<16x3xf32, #tpu.memory_space<vmem>>, %arg3: memref<16x3xf32, #tpu.memory_space<vmem>>, %arg4: memref<16x16xf32, #tpu.memory_space<vmem>>, %arg5: memref<16x64xf32, #tpu.memory_space<vmem>>) attributes {dimension_semantics = [], scalar_prefetch = 0 : i64, scratch_operands = 0 : i64, tpu.core_type = #tpu.core_type<tc>} {
    %c0 = arith.constant 0 : index
    %c0_0 = arith.constant 0 : index
    %0 = vector.load %arg2[%c0, %c0_0] : memref<16x3xf32, #tpu.memory_space<vmem>>, vector<16x3xf32>
    %c0_1 = arith.constant 0 : index
    %c0_2 = arith.constant 0 : index
    %1 = vector.load %arg0[%c0_1, %c0_2] : memref<3x64xf32, #tpu.memory_space<vmem>>, vector<3x64xf32>
    %2 = arith.truncf %0 : vector<16x3xf32> to vector<16x3xbf16>
    %3 = arith.truncf %1 : vector<3x64xf32> to vector<3x64xbf16>
    %cst = arith.constant dense<0.000000e+00> : vector<16x64xf32>
    %4 = tpu.matmul %2, %3, %cst {dimension_numbers = #tpu.dot_dimension_numbers<[1], [0], [0], [1], [0, 0, 1, 1], [], []>} : vector<16x3xbf16>, vector<3x64xbf16>, vector<16x64xf32> -> vector<16x64xf32>
    %c0_3 = arith.constant 0 : index
    %c0_4 = arith.constant 0 : index
    %5 = vector.load %arg3[%c0_3, %c0_4] : memref<16x3xf32, #tpu.memory_space<vmem>>, vector<16x3xf32>
    %c0_5 = arith.constant 0 : index
    %c0_6 = arith.constant 0 : index
    %c0_7 = arith.constant 0 : index
    %6 = vector.load %arg1[%c0_5, %c0_6, %c0_7] : memref<3x8x64xbf16, #tpu.memory_space<vmem>>, vector<3x8x64xbf16>
    %7 = arith.truncf %5 : vector<16x3xf32> to vector<16x3xbf16>
    %cst_8 = arith.constant dense<0.000000e+00> : vector<16x8x64xf32>
    %8 = tpu.matmul %7, %6, %cst_8 {dimension_numbers = #tpu.dot_dimension_numbers<[1], [0], [0], [1, 2], [0, 0, 1, 1, 1, 2], [], []>} : vector<16x3xbf16>, vector<3x8x64xbf16>, vector<16x8x64xf32> -> vector<16x8x64xf32>
    %9 = vector.shape_cast %4 : vector<16x64xf32> to vector<16x1x64xf32>
    %10 = vector.broadcast %9 : vector<16x1x64xf32> to vector<16x8x64xf32>
    %11 = arith.addf %10, %8 : vector<16x8x64xf32>
    %cst_9 = arith.constant 0.000000e+00 : f32
    %12 = vector.broadcast %cst_9 : f32 to vector<16x8x64xf32>
    %13 = arith.cmpf ogt, %11, %12 : vector<16x8x64xf32>
    %cst_10 = arith.constant 2.000000e-01 : f32
    %14 = vector.broadcast %cst_10 : f32 to vector<16x8x64xf32>
    %15 = arith.mulf %14, %11 : vector<16x8x64xf32>
    %16 = arith.select %13, %11, %15 : vector<16x8x64xi1>, vector<16x8x64xf32>
    %c0_11 = arith.constant 0 : index
    %c0_12 = arith.constant 0 : index
    %17 = vector.load %arg4[%c0_11, %c0_12] : memref<16x16xf32, #tpu.memory_space<vmem>>, vector<16x16xf32>
    %18 = arith.truncf %17 : vector<16x16xf32> to vector<16x16xbf16>
    %19 = arith.truncf %16 : vector<16x8x64xf32> to vector<16x8x64xbf16>
    %cst_13 = arith.constant dense<0.000000e+00> : vector<16x8x64xf32>
    %20 = tpu.matmul %18, %19, %cst_13 {dimension_numbers = #tpu.dot_dimension_numbers<[1], [0], [0], [1, 2], [0, 0, 1, 1, 1, 2], [], []>} : vector<16x16xbf16>, vector<16x8x64xbf16>, vector<16x8x64xf32> -> vector<16x8x64xf32>
    %cst_14 = arith.constant 0.000000e+00 : f32
    %21 = vector.broadcast %cst_14 : f32 to vector<16x8x64xf32>
    %22 = arith.cmpf ogt, %20, %21 : vector<16x8x64xf32>
    %cst_15 = arith.constant 2.000000e-01 : f32
    %23 = vector.broadcast %cst_15 : f32 to vector<16x8x64xf32>
    %24 = arith.mulf %23, %20 : vector<16x8x64xf32>
    %25 = arith.select %22, %20, %24 : vector<16x8x64xi1>, vector<16x8x64xf32>
    %cst_16 = arith.constant dense<0xFF800000> : vector<16x64xf32>
    %26 = vector.multi_reduction <maximumf>, %25, %cst_16 [1] : vector<16x8x64xf32> to vector<16x64xf32>
    %c0_17 = arith.constant 0 : index
    %c0_18 = arith.constant 0 : index
    %27 = vector.load %arg5[%c0_17, %c0_18] : memref<16x64xf32, #tpu.memory_space<vmem>>, vector<16x64xf32>
    tpu.vector_store %arg5[%c0_17, %c0_18], %26 {strides = array<i32>} : memref<16x64xf32, #tpu.memory_space<vmem>>, vector<16x64xf32>,
    return
  }
}

module attributes {stable_mosaic.version = 11 : i64} {
  func.func @_knn_score_kernel(%arg0: memref<2x32x32xf32, #tpu.memory_space<vmem>>, %arg1: memref<2x32x32xf32, #tpu.memory_space<vmem>>, %arg2: memref<2x32x32xf32, #tpu.memory_space<vmem>>) attributes {dimension_semantics = [], scalar_prefetch = 0 : i64, scratch_operands = 0 : i64, tpu.core_type = #tpu.core_type<tc>} {
    %c0 = arith.constant 0 : index
    %c0_0 = arith.constant 0 : index
    %c0_1 = arith.constant 0 : index
    %0 = vector.load %arg0[%c0, %c0_0, %c0_1] : memref<2x32x32xf32, #tpu.memory_space<vmem>>, vector<1x32x32xf32>
    %1 = vector.shape_cast %0 : vector<1x32x32xf32> to vector<32x32xf32>
    %c0_2 = arith.constant 0 : index
    %c0_3 = arith.constant 0 : index
    %c0_4 = arith.constant 0 : index
    %2 = vector.load %arg1[%c0_2, %c0_3, %c0_4] : memref<2x32x32xf32, #tpu.memory_space<vmem>>, vector<1x32x32xf32>
    %3 = vector.shape_cast %2 : vector<1x32x32xf32> to vector<32x32xf32>
    %4 = arith.truncf %1 : vector<32x32xf32> to vector<32x32xbf16>
    %5 = arith.truncf %3 : vector<32x32xf32> to vector<32x32xbf16>
    %cst = arith.constant dense<0.000000e+00> : vector<32x32xf32>
    %6 = tpu.matmul %4, %5, %cst {dimension_numbers = #tpu.dot_dimension_numbers<[0], [0], [1], [1], [0, 1, 1, 1], [], []>} : vector<32x32xbf16>, vector<32x32xbf16>, vector<32x32xf32> -> vector<32x32xf32>
    %7 = arith.mulf %3, %3 : vector<32x32xf32>
    %cst_5 = arith.constant dense<0.000000e+00> : vector<32xf32>
    %8 = vector.multi_reduction <add>, %7, %cst_5 [0] : vector<32x32xf32> to vector<32xf32>
    %9 = vector.shape_cast %8 : vector<32xf32> to vector<1x32xf32>
    %cst_6 = arith.constant 2.000000e+00 : f32
    %10 = vector.broadcast %cst_6 : f32 to vector<32x32xf32>
    %11 = arith.mulf %10, %6 : vector<32x32xf32>
    %12 = vector.broadcast %9 : vector<1x32xf32> to vector<32x32xf32>
    %13 = arith.subf %11, %12 : vector<32x32xf32>
    %c0_7 = arith.constant 0 : index
    %c0_8 = arith.constant 0 : index
    %c0_9 = arith.constant 0 : index
    %14 = vector.load %arg2[%c0_7, %c0_8, %c0_9] : memref<2x32x32xf32, #tpu.memory_space<vmem>>, vector<1x32x32xf32>
    %15 = vector.shape_cast %14 : vector<1x32x32xf32> to vector<32x32xf32>
    %16 = vector.shape_cast %13 : vector<32x32xf32> to vector<1x32x32xf32>
    tpu.vector_store %arg2[%c0_7, %c0_8, %c0_9], %16 {strides = array<i32>} : memref<2x32x32xf32, #tpu.memory_space<vmem>>, vector<1x32x32xf32>,
    %c1 = arith.constant 1 : index
    %c0_10 = arith.constant 0 : index
    %c0_11 = arith.constant 0 : index
    %17 = vector.load %arg0[%c1, %c0_10, %c0_11] : memref<2x32x32xf32, #tpu.memory_space<vmem>>, vector<1x32x32xf32>
    %18 = vector.shape_cast %17 : vector<1x32x32xf32> to vector<32x32xf32>
    %c1_12 = arith.constant 1 : index
    %c0_13 = arith.constant 0 : index
    %c0_14 = arith.constant 0 : index
    %19 = vector.load %arg1[%c1_12, %c0_13, %c0_14] : memref<2x32x32xf32, #tpu.memory_space<vmem>>, vector<1x32x32xf32>
    %20 = vector.shape_cast %19 : vector<1x32x32xf32> to vector<32x32xf32>
    %21 = arith.truncf %18 : vector<32x32xf32> to vector<32x32xbf16>
    %22 = arith.truncf %20 : vector<32x32xf32> to vector<32x32xbf16>
    %cst_15 = arith.constant dense<0.000000e+00> : vector<32x32xf32>
    %23 = tpu.matmul %21, %22, %cst_15 {dimension_numbers = #tpu.dot_dimension_numbers<[0], [0], [1], [1], [0, 1, 1, 1], [], []>} : vector<32x32xbf16>, vector<32x32xbf16>, vector<32x32xf32> -> vector<32x32xf32>
    %24 = arith.mulf %20, %20 : vector<32x32xf32>
    %cst_16 = arith.constant dense<0.000000e+00> : vector<32xf32>
    %25 = vector.multi_reduction <add>, %24, %cst_16 [0] : vector<32x32xf32> to vector<32xf32>
    %26 = vector.shape_cast %25 : vector<32xf32> to vector<1x32xf32>
    %cst_17 = arith.constant 2.000000e+00 : f32
    %27 = vector.broadcast %cst_17 : f32 to vector<32x32xf32>
    %28 = arith.mulf %27, %23 : vector<32x32xf32>
    %29 = vector.broadcast %26 : vector<1x32xf32> to vector<32x32xf32>
    %30 = arith.subf %28, %29 : vector<32x32xf32>
    %c1_18 = arith.constant 1 : index
    %c0_19 = arith.constant 0 : index
    %c0_20 = arith.constant 0 : index
    %31 = vector.load %arg2[%c1_18, %c0_19, %c0_20] : memref<2x32x32xf32, #tpu.memory_space<vmem>>, vector<1x32x32xf32>
    %32 = vector.shape_cast %31 : vector<1x32x32xf32> to vector<32x32xf32>
    %33 = vector.shape_cast %30 : vector<32x32xf32> to vector<1x32x32xf32>
    tpu.vector_store %arg2[%c1_18, %c0_19, %c0_20], %33 {strides = array<i32>} : memref<2x32x32xf32, #tpu.memory_space<vmem>>, vector<1x32x32xf32>,
    return
  }
}

module attributes {stable_mosaic.version = 11 : i64} {
  func.func @_edgeconv_kernel(%arg0: memref<16x64xf32, #tpu.memory_space<vmem>>, %arg1: memref<16x8x64xbf16, #tpu.memory_space<vmem>>, %arg2: memref<16x16xf32, #tpu.memory_space<vmem>>, %arg3: memref<16x16xf32, #tpu.memory_space<vmem>>, %arg4: memref<16x16xf32, #tpu.memory_space<vmem>>, %arg5: memref<16x64xf32, #tpu.memory_space<vmem>>) attributes {dimension_semantics = [], scalar_prefetch = 0 : i64, scratch_operands = 0 : i64, tpu.core_type = #tpu.core_type<tc>} {
    %c0 = arith.constant 0 : index
    %c0_0 = arith.constant 0 : index
    %0 = vector.load %arg2[%c0, %c0_0] : memref<16x16xf32, #tpu.memory_space<vmem>>, vector<16x16xf32>
    %c0_1 = arith.constant 0 : index
    %c0_2 = arith.constant 0 : index
    %1 = vector.load %arg0[%c0_1, %c0_2] : memref<16x64xf32, #tpu.memory_space<vmem>>, vector<16x64xf32>
    %2 = arith.truncf %0 : vector<16x16xf32> to vector<16x16xbf16>
    %3 = arith.truncf %1 : vector<16x64xf32> to vector<16x64xbf16>
    %cst = arith.constant dense<0.000000e+00> : vector<16x64xf32>
    %4 = tpu.matmul %2, %3, %cst {dimension_numbers = #tpu.dot_dimension_numbers<[1], [0], [0], [1], [0, 0, 1, 1], [], []>} : vector<16x16xbf16>, vector<16x64xbf16>, vector<16x64xf32> -> vector<16x64xf32>
    %c0_3 = arith.constant 0 : index
    %c0_4 = arith.constant 0 : index
    %5 = vector.load %arg3[%c0_3, %c0_4] : memref<16x16xf32, #tpu.memory_space<vmem>>, vector<16x16xf32>
    %c0_5 = arith.constant 0 : index
    %c0_6 = arith.constant 0 : index
    %c0_7 = arith.constant 0 : index
    %6 = vector.load %arg1[%c0_5, %c0_6, %c0_7] : memref<16x8x64xbf16, #tpu.memory_space<vmem>>, vector<16x8x64xbf16>
    %7 = arith.truncf %5 : vector<16x16xf32> to vector<16x16xbf16>
    %cst_8 = arith.constant dense<0.000000e+00> : vector<16x8x64xf32>
    %8 = tpu.matmul %7, %6, %cst_8 {dimension_numbers = #tpu.dot_dimension_numbers<[1], [0], [0], [1, 2], [0, 0, 1, 1, 1, 2], [], []>} : vector<16x16xbf16>, vector<16x8x64xbf16>, vector<16x8x64xf32> -> vector<16x8x64xf32>
    %9 = vector.shape_cast %4 : vector<16x64xf32> to vector<16x1x64xf32>
    %10 = vector.broadcast %9 : vector<16x1x64xf32> to vector<16x8x64xf32>
    %11 = arith.addf %10, %8 : vector<16x8x64xf32>
    %cst_9 = arith.constant 0.000000e+00 : f32
    %12 = vector.broadcast %cst_9 : f32 to vector<16x8x64xf32>
    %13 = arith.cmpf ogt, %11, %12 : vector<16x8x64xf32>
    %cst_10 = arith.constant 2.000000e-01 : f32
    %14 = vector.broadcast %cst_10 : f32 to vector<16x8x64xf32>
    %15 = arith.mulf %14, %11 : vector<16x8x64xf32>
    %16 = arith.select %13, %11, %15 : vector<16x8x64xi1>, vector<16x8x64xf32>
    %c0_11 = arith.constant 0 : index
    %c0_12 = arith.constant 0 : index
    %17 = vector.load %arg4[%c0_11, %c0_12] : memref<16x16xf32, #tpu.memory_space<vmem>>, vector<16x16xf32>
    %18 = arith.truncf %17 : vector<16x16xf32> to vector<16x16xbf16>
    %19 = arith.truncf %16 : vector<16x8x64xf32> to vector<16x8x64xbf16>
    %cst_13 = arith.constant dense<0.000000e+00> : vector<16x8x64xf32>
    %20 = tpu.matmul %18, %19, %cst_13 {dimension_numbers = #tpu.dot_dimension_numbers<[1], [0], [0], [1, 2], [0, 0, 1, 1, 1, 2], [], []>} : vector<16x16xbf16>, vector<16x8x64xbf16>, vector<16x8x64xf32> -> vector<16x8x64xf32>
    %cst_14 = arith.constant 0.000000e+00 : f32
    %21 = vector.broadcast %cst_14 : f32 to vector<16x8x64xf32>
    %22 = arith.cmpf ogt, %20, %21 : vector<16x8x64xf32>
    %cst_15 = arith.constant 2.000000e-01 : f32
    %23 = vector.broadcast %cst_15 : f32 to vector<16x8x64xf32>
    %24 = arith.mulf %23, %20 : vector<16x8x64xf32>
    %25 = arith.select %22, %20, %24 : vector<16x8x64xi1>, vector<16x8x64xf32>
    %cst_16 = arith.constant dense<0xFF800000> : vector<16x64xf32>
    %26 = vector.multi_reduction <maximumf>, %25, %cst_16 [1] : vector<16x8x64xf32> to vector<16x64xf32>
    %c0_17 = arith.constant 0 : index
    %c0_18 = arith.constant 0 : index
    %27 = vector.load %arg5[%c0_17, %c0_18] : memref<16x64xf32, #tpu.memory_space<vmem>>, vector<16x64xf32>
    tpu.vector_store %arg5[%c0_17, %c0_18], %26 {strides = array<i32>} : memref<16x64xf32, #tpu.memory_space<vmem>>, vector<16x64xf32>,
    return
  }
}

module attributes {stable_mosaic.version = 11 : i64} {
  func.func @_n2p_kernel(%arg0: memref<32x64xf32, #tpu.memory_space<vmem>>, %arg1: memref<32x8x64xbf16, #tpu.memory_space<vmem>>, %arg2: memref<32x32xf32, #tpu.memory_space<vmem>>, %arg3: memref<32x32xf32, #tpu.memory_space<vmem>>, %arg4: memref<64x32xf32, #tpu.memory_space<vmem>>, %arg5: memref<32x64xf32, #tpu.memory_space<vmem>>, %arg6: memref<32x1xf32, #tpu.memory_space<vmem>>, %arg7: memref<32x1xf32, #tpu.memory_space<vmem>>, %arg8: memref<32x1xf32, #tpu.memory_space<vmem>>, %arg9: memref<32x1xf32, #tpu.memory_space<vmem>>, %arg10: memref<32x64xf32, #tpu.memory_space<vmem>>) attributes {dimension_semantics = [], scalar_prefetch = 0 : i64, scratch_operands = 0 : i64, tpu.core_type = #tpu.core_type<tc>} {
    %c0 = arith.constant 0 : index
    %c0_0 = arith.constant 0 : index
    %0 = vector.load %arg0[%c0, %c0_0] : memref<32x64xf32, #tpu.memory_space<vmem>>, vector<32x64xf32>
    %c0_1 = arith.constant 0 : index
    %c0_2 = arith.constant 0 : index
    %c0_3 = arith.constant 0 : index
    %1 = vector.load %arg1[%c0_1, %c0_2, %c0_3] : memref<32x8x64xbf16, #tpu.memory_space<vmem>>, vector<32x8x64xbf16>
    %2 = arith.extf %1 : vector<32x8x64xbf16> to vector<32x8x64xf32>
    %c0_4 = arith.constant 0 : index
    %c0_5 = arith.constant 0 : index
    %3 = vector.load %arg2[%c0_4, %c0_5] : memref<32x32xf32, #tpu.memory_space<vmem>>, vector<32x32xf32>
    %4 = arith.truncf %3 : vector<32x32xf32> to vector<32x32xbf16>
    %5 = arith.truncf %0 : vector<32x64xf32> to vector<32x64xbf16>
    %cst = arith.constant dense<0.000000e+00> : vector<32x64xf32>
    %6 = tpu.matmul %4, %5, %cst {dimension_numbers = #tpu.dot_dimension_numbers<[1], [0], [0], [1], [0, 0, 1, 1], [], []>} : vector<32x32xbf16>, vector<32x64xbf16>, vector<32x64xf32> -> vector<32x64xf32>
    %7 = vector.shape_cast %6 : vector<32x64xf32> to vector<32x1x64xf32>
    %8 = vector.broadcast %7 : vector<32x1x64xf32> to vector<32x8x64xf32>
    %9 = arith.mulf %8, %2 : vector<32x8x64xf32>
    %cst_6 = arith.constant dense<0.000000e+00> : vector<8x64xf32>
    %10 = vector.multi_reduction <add>, %9, %cst_6 [0] : vector<32x8x64xf32> to vector<8x64xf32>
    %cst_7 = arith.constant 0.176776692 : f32
    %11 = vector.broadcast %cst_7 : f32 to vector<8x64xf32>
    %12 = arith.mulf %10, %11 : vector<8x64xf32>
    %cst_8 = arith.constant dense<0xFF800000> : vector<64xf32>
    %13 = vector.multi_reduction <maximumf>, %12, %cst_8 [0] : vector<8x64xf32> to vector<64xf32>
    %14 = vector.shape_cast %13 : vector<64xf32> to vector<1x64xf32>
    %15 = vector.broadcast %14 : vector<1x64xf32> to vector<8x64xf32>
    %16 = arith.subf %12, %15 : vector<8x64xf32>
    %17 = math.exp %16 : vector<8x64xf32>
    %cst_9 = arith.constant dense<0.000000e+00> : vector<64xf32>
    %18 = vector.multi_reduction <add>, %17, %cst_9 [0] : vector<8x64xf32> to vector<64xf32>
    %19 = vector.shape_cast %18 : vector<64xf32> to vector<1x64xf32>
    %20 = tpu.reciprocal %19 {approx = true} : vector<1x64xf32> -> vector<1x64xf32>
    %21 = vector.broadcast %20 : vector<1x64xf32> to vector<8x64xf32>
    %22 = arith.mulf %17, %21 : vector<8x64xf32>
    %23 = vector.shape_cast %22 : vector<8x64xf32> to vector<1x8x64xf32>
    %24 = vector.broadcast %23 : vector<1x8x64xf32> to vector<32x8x64xf32>
    %25 = arith.mulf %24, %2 : vector<32x8x64xf32>
    %cst_10 = arith.constant dense<0.000000e+00> : vector<32x64xf32>
    %26 = vector.multi_reduction <add>, %25, %cst_10 [1] : vector<32x8x64xf32> to vector<32x64xf32>
    %c0_11 = arith.constant 0 : index
    %c0_12 = arith.constant 0 : index
    %27 = vector.load %arg3[%c0_11, %c0_12] : memref<32x32xf32, #tpu.memory_space<vmem>>, vector<32x32xf32>
    %28 = arith.truncf %27 : vector<32x32xf32> to vector<32x32xbf16>
    %29 = arith.truncf %26 : vector<32x64xf32> to vector<32x64xbf16>
    %cst_13 = arith.constant dense<0.000000e+00> : vector<32x64xf32>
    %30 = tpu.matmul %28, %29, %cst_13 {dimension_numbers = #tpu.dot_dimension_numbers<[1], [0], [0], [1], [0, 0, 1, 1], [], []>} : vector<32x32xbf16>, vector<32x64xbf16>, vector<32x64xf32> -> vector<32x64xf32>
    %c0_14 = arith.constant 0 : index
    %c0_15 = arith.constant 0 : index
    %31 = vector.load %arg6[%c0_14, %c0_15] : memref<32x1xf32, #tpu.memory_space<vmem>>, vector<32x1xf32>
    %32 = arith.addf %30, %0 : vector<32x64xf32>
    %33 = vector.broadcast %31 : vector<32x1xf32> to vector<32x64xf32>
    %34 = arith.mulf %33, %32 : vector<32x64xf32>
    %c0_16 = arith.constant 0 : index
    %c0_17 = arith.constant 0 : index
    %35 = vector.load %arg7[%c0_16, %c0_17] : memref<32x1xf32, #tpu.memory_space<vmem>>, vector<32x1xf32>
    %36 = vector.broadcast %35 : vector<32x1xf32> to vector<32x64xf32>
    %37 = arith.addf %34, %36 : vector<32x64xf32>
    %c0_18 = arith.constant 0 : index
    %c0_19 = arith.constant 0 : index
    %38 = vector.load %arg4[%c0_18, %c0_19] : memref<64x32xf32, #tpu.memory_space<vmem>>, vector<64x32xf32>
    %39 = arith.truncf %38 : vector<64x32xf32> to vector<64x32xbf16>
    %40 = arith.truncf %37 : vector<32x64xf32> to vector<32x64xbf16>
    %cst_20 = arith.constant dense<0.000000e+00> : vector<64x64xf32>
    %41 = tpu.matmul %39, %40, %cst_20 {dimension_numbers = #tpu.dot_dimension_numbers<[1], [0], [0], [1], [0, 0, 1, 1], [], []>} : vector<64x32xbf16>, vector<32x64xbf16>, vector<64x64xf32> -> vector<64x64xf32>
    %cst_21 = arith.constant 0.000000e+00 : f32
    %42 = vector.broadcast %cst_21 : f32 to vector<64x64xf32>
    %43 = arith.cmpf ogt, %41, %42 : vector<64x64xf32>
    %cst_22 = arith.constant 2.000000e-01 : f32
    %44 = vector.broadcast %cst_22 : f32 to vector<64x64xf32>
    %45 = arith.mulf %44, %41 : vector<64x64xf32>
    %46 = arith.select %43, %41, %45 : vector<64x64xi1>, vector<64x64xf32>
    %c0_23 = arith.constant 0 : index
    %c0_24 = arith.constant 0 : index
    %47 = vector.load %arg5[%c0_23, %c0_24] : memref<32x64xf32, #tpu.memory_space<vmem>>, vector<32x64xf32>
    %48 = arith.truncf %47 : vector<32x64xf32> to vector<32x64xbf16>
    %49 = arith.truncf %46 : vector<64x64xf32> to vector<64x64xbf16>
    %cst_25 = arith.constant dense<0.000000e+00> : vector<32x64xf32>
    %50 = tpu.matmul %48, %49, %cst_25 {dimension_numbers = #tpu.dot_dimension_numbers<[1], [0], [0], [1], [0, 0, 1, 1], [], []>} : vector<32x64xbf16>, vector<64x64xbf16>, vector<32x64xf32> -> vector<32x64xf32>
    %c0_26 = arith.constant 0 : index
    %c0_27 = arith.constant 0 : index
    %51 = vector.load %arg8[%c0_26, %c0_27] : memref<32x1xf32, #tpu.memory_space<vmem>>, vector<32x1xf32>
    %52 = arith.addf %50, %37 : vector<32x64xf32>
    %53 = vector.broadcast %51 : vector<32x1xf32> to vector<32x64xf32>
    %54 = arith.mulf %53, %52 : vector<32x64xf32>
    %c0_28 = arith.constant 0 : index
    %c0_29 = arith.constant 0 : index
    %55 = vector.load %arg9[%c0_28, %c0_29] : memref<32x1xf32, #tpu.memory_space<vmem>>, vector<32x1xf32>
    %56 = vector.broadcast %55 : vector<32x1xf32> to vector<32x64xf32>
    %57 = arith.addf %54, %56 : vector<32x64xf32>
    %c0_30 = arith.constant 0 : index
    %c0_31 = arith.constant 0 : index
    %58 = vector.load %arg10[%c0_30, %c0_31] : memref<32x64xf32, #tpu.memory_space<vmem>>, vector<32x64xf32>
    tpu.vector_store %arg10[%c0_30, %c0_31], %57 {strides = array<i32>} : memref<32x64xf32, #tpu.memory_space<vmem>>, vector<32x64xf32>,
    return
  }
}

</mosaic_0001>

<llo_original>
// kernel: _stage_pre.8
$region0: #{_stage_pre.8}
  #allocation0 [shape = 'u32[]', space=smem, size = 0x4, offset = 0x4, fixed_abs, tag = 'smem constant byte address 0x4 - core index']
  #allocation1 [shape = 'u32[72,128]{1,0:T(1,128)}', space=vmem, size = 0x9000, scoped, tag = 'internal scratch']
  %s0 = inlined_call_operand.vmem [shape: f32[2,16,32], index: 0, kind: input, shape index: {}, may-alias: {0,1}]
  %s1 = inlined_call_operand.vmem [shape: f32[2,16,32], index: 1, kind: input, shape index: {}, may-alias: {0,1}]
  %s2 = inlined_call_operand.vmem [shape: f32[2,32,32], index: 2, kind: output, shape index: {}]
  %s3 = sld [smem:[#allocation0]]
  $region18: #{_stage_pre.8} parent=0
    _
  %s5 = ssub.s32 1, %s3
  %s6 = scalar_select 0, %s5, %s3
  // Predicated region
  $region2: #{_stage_pre.8} parent=0 // pred_check
    _
  $region3: #{_stage_pre.8} parent=0 // pred_check_branch
    %8 = sbr.rel (0) target = $region5
  $region4: #{_stage_pre.8} parent=0 // pred_region
    _
  $region5: #{_stage_pre.8} parent=0 // pred_fallthru
    _
  // Predicated region
  $region6: #{_stage_pre.8} parent=0 // pred_check
    _
  $region7: #{_stage_pre.8} parent=0 // pred_check_branch
    %10 = sbr.rel (0) target = $region9
  $region8: #{_stage_pre.8} parent=0 // pred_region
    _
  $region9: #{_stage_pre.8} parent=0 // pred_fallthru
    _
  %v12 = vld [vmem:[%s0] sm:$0xff]
  %v13 = vld [vmem:[%s0 + $0x8] sm:$0xff]
  %v14 = vld [vmem:[%s1] sm:$0xff]
  %v15 = vld [vmem:[%s1 + $0x8] sm:$0xff]
  %v16 = vpack.c.bf16 %v13, %v12
  %v17 = vpack.c.bf16 %v15, %v14
  %18 = vxpose.xlu0.c.b16.start [1/8] %v16, 128
  %19 = vxpose.xlu0.c.b16.cont [2/8] 0, 128
  %20 = vxpose.xlu0.c.b16.cont [3/8] 0, 128
  %21 = vxpose.xlu0.c.b16.cont [4/8] 0, 128
  %22 = vxpose.xlu0.c.b16.cont [5/8] 0, 128
  %23 = vxpose.xlu0.c.b16.cont [6/8] 0, 128
  %24 = vxpose.xlu0.c.b16.cont [7/8] 0, 128
  %25 = vxpose.xlu0.c.b16.end [8/8] 0, 128
  %v26 = vpop.trf.xlu0
  %v27 = vpop.trf.xlu0
  %v28 = vpop.trf.xlu0
  %v29 = vpop.trf.xlu0
  %v30 = vpop.trf.xlu0
  %v31 = vpop.trf.xlu0
  %v32 = vpop.trf.xlu0
  %v33 = vpop.trf.xlu0
  %vm34 = vcmask 130048
  %v36 = vsel %vm34, %v26, 0
  %v39 = vsel %vm34, %v27, 0
  %41 = vmatpush.bf16.msra.mxu0 0
  %42 = vmatpush.bf16.msra.mxu0 0
  %43 = vmatpush.bf16.msra.mxu0 0
  %44 = vmatpush.bf16.msra.mxu0 0
  %45 = vmatpush.bf16.msra.mxu0 0
  %46 = vmatpush.bf16.msra.mxu0 0
  %47 = vmatpush.bf16.msra.mxu0 0
  %48 = vmatpush.bf16.msra.mxu0 %v17
  %49 = vmatmul.bf16.gmra.mxu0 %v36
  %v50 = vpop.f32.mrf.mxu0
  %v51 = vadd.f32 0.0, %v50
  %v52 = vpop.f32.mrf.mxu0
  %v53 = vadd.f32 0.0, %v52
  %54 = vmatmul.bf16.gmra.mxu0 %v39
  %v55 = vpop.f32.mrf.mxu0
  %v56 = vadd.f32 0.0, %v55
  %v57 = vpop.f32.mrf.mxu0
  %v58 = vadd.f32 0.0, %v57
  %59 = vdwg.mxu0
  %v60 = vmul.f32 %v14, %v14
  %v61 = vmul.f32 %v15, %v15
  %vm62 = vcmask 261120
  %v63 = vsel %vm62, %v60, 0.0
  %v64 = vsel %vm62, %v61, 0.0
  %v65 = vadd.f32 %v63, %v64
  %v66 = vrot.slane %v65, 4
  %v67 = vadd.f32 %v65, %v66
  %v68 = vrot.slane %v67, 2
  %v69 = vadd.f32 %v67, %v68
  %v70 = vrot.slane %v69, 1
  %v71 = vadd.f32 %v69, %v70
  %v72 = vmul.f32 %v51, 2.0
  %v73 = vmul.f32 %v53, 2.0
  %v74 = vmul.f32 %v56, 2.0
  %v75 = vmul.f32 %v58, 2.0
  %v76 = vsub.f32 %v72, %v71
  %v77 = vsub.f32 %v73, %v71
  %v78 = vsub.f32 %v74, %v71
  %v79 = vsub.f32 %v75, %v71
  %80 = vst.msk [vmem:[%s2] sm:$0xff] %vm62, %v76
  %81 = vst.msk [vmem:[%s2 + $0x8] sm:$0xff] %vm62, %v77
  %82 = vst.msk [vmem:[%s2 + $0x10] sm:$0xff] %vm62, %v78
  %83 = vst.msk [vmem:[%s2 + $0x18] sm:$0xff] %vm62, %v79
  %s84 = scalar_lea.vmem %s0, 16
  %v85 = vld [vmem:[%s84] sm:$0xff]
  %v86 = vld [vmem:[%s84 + $0x8] sm:$0xff]
  %s87 = scalar_lea.vmem %s1, 16
  %v88 = vld [vmem:[%s87] sm:$0xff]
  %v89 = vld [vmem:[%s87 + $0x8] sm:$0xff]
  %v90 = vpack.c.bf16 %v86, %v85
  %v91 = vpack.c.bf16 %v89, %v88
  %92 = vxpose.xlu0.c.b16.start [1/8] %v90, 128
  %93 = vxpose.xlu0.c.b16.cont [2/8] 0, 128
  %94 = vxpose.xlu0.c.b16.cont [3/8] 0, 128
  %95 = vxpose.xlu0.c.b16.cont [4/8] 0, 128
  %96 = vxpose.xlu0.c.b16.cont [5/8] 0, 128
  %97 = vxpose.xlu0.c.b16.cont [6/8] 0, 128
  %98 = vxpose.xlu0.c.b16.cont [7/8] 0, 128
  %99 = vxpose.xlu0.c.b16.end [8/8] 0, 128
  %v100 = vpop.trf.xlu0
  %v101 = vpop.trf.xlu0
  %v102 = vpop.trf.xlu0
  %v103 = vpop.trf.xlu0
  %v104 = vpop.trf.xlu0
  %v105 = vpop.trf.xlu0
  %v106 = vpop.trf.xlu0
  %v107 = vpop.trf.xlu0
  %v109 = vsel %vm34, %v100, 0
  %v112 = vsel %vm34, %v101, 0
  %114 = vmatpush.bf16.msra.mxu0 0
  %115 = vmatpush.bf16.msra.mxu0 0
  %116 = vmatpush.bf16.msra.mxu0 0
  %117 = vmatpush.bf16.msra.mxu0 0
  %118 = vmatpush.bf16.msra.mxu0 0
  %119 = vmatpush.bf16.msra.mxu0 0
  %120 = vmatpush.bf16.msra.mxu0 0
  %121 = vmatpush.bf16.msra.mxu0 %v91
  %122 = vmatmul.bf16.gmra.mxu0 %v109
  %v123 = vpop.f32.mrf.mxu0
  %v124 = vadd.f32 0.0, %v123
  %v125 = vpop.f32.mrf.mxu0
  %v126 = vadd.f32 0.0, %v125
  %127 = vmatmul.bf16.gmra.mxu0 %v112
  %v128 = vpop.f32.mrf.mxu0
  %v129 = vadd.f32 0.0, %v128
  %v130 = vpop.f32.mrf.mxu0
  %v131 = vadd.f32 0.0, %v130
  %132 = vdwg.mxu0
  %v133 = vmul.f32 %v88, %v88
  %v134 = vmul.f32 %v89, %v89
  %v135 = vsel %vm62, %v133, 0.0
  %v136 = vsel %vm62, %v134, 0.0
  %v137 = vadd.f32 %v135, %v136
  %v138 = vrot.slane %v137, 4
  %v139 = vadd.f32 %v137, %v138
  %v140 = vrot.slane %v139, 2
  %v141 = vadd.f32 %v139, %v140
  %v142 = vrot.slane %v141, 1
  %v143 = vadd.f32 %v141, %v142
  %v144 = vmul.f32 %v124, 2.0
  %v145 = vmul.f32 %v126, 2.0
  %v146 = vmul.f32 %v129, 2.0
  %v147 = vmul.f32 %v131, 2.0
  %v148 = vsub.f32 %v144, %v143
  %v149 = vsub.f32 %v145, %v143
  %v150 = vsub.f32 %v146, %v143
  %v151 = vsub.f32 %v147, %v143
  %s152 = scalar_lea.vmem %s2, 32
  %153 = vst.msk [vmem:[%s152] sm:$0xff] %vm62, %v148
  %154 = vst.msk [vmem:[%s152 + $0x8] sm:$0xff] %vm62, %v149
  %155 = vst.msk [vmem:[%s152 + $0x10] sm:$0xff] %vm62, %v150
  %156 = vst.msk [vmem:[%s152 + $0x18] sm:$0xff] %vm62, %v151
  // Predicated region
  $region10: #{_stage_pre.8} parent=0 // pred_check
    _
  $region11: #{_stage_pre.8} parent=0 // pred_check_branch
    %158 = sbr.rel (0) target = $region13
  $region12: #{_stage_pre.8} parent=0 // pred_region
    _
  $region13: #{_stage_pre.8} parent=0 // pred_fallthru
    _
  // Predicated region
  $region14: #{_stage_pre.8} parent=0 // pred_check
    _
  $region15: #{_stage_pre.8} parent=0 // pred_check_branch
    %160 = sbr.rel (0) target = $region17
  $region16: #{_stage_pre.8} parent=0 // pred_region
    _
  $region17: #{_stage_pre.8} parent=0 // pred_fallthru
    _

// kernel: _stage_pre.6
$region0: #{_stage_pre.6}
  #allocation0 [shape = 'u32[]', space=smem, size = 0x4, offset = 0x4, fixed_abs, tag = 'smem constant byte address 0x4 - core index']
  #allocation1 [shape = 'u32[72,128]{1,0:T(1,128)}', space=vmem, size = 0x9000, scoped, tag = 'internal scratch']
  %s0 = inlined_call_operand.vmem [shape: f32[2,3,32], index: 0, kind: input, shape index: {}, may-alias: {0,1}]
  %s1 = inlined_call_operand.vmem [shape: f32[2,3,32], index: 1, kind: input, shape index: {}, may-alias: {0,1}]
  %s2 = inlined_call_operand.vmem [shape: f32[2,32,32], index: 2, kind: output, shape index: {}]
  %s3 = sld [smem:[#allocation0]]
  $region18: #{_stage_pre.6} parent=0
    _
  %s5 = ssub.s32 1, %s3
  %s6 = scalar_select 0, %s5, %s3
  // Predicated region
  $region2: #{_stage_pre.6} parent=0 // pred_check
    _
  $region3: #{_stage_pre.6} parent=0 // pred_check_branch
    %8 = sbr.rel (0) target = $region5
  $region4: #{_stage_pre.6} parent=0 // pred_region
    _
  $region5: #{_stage_pre.6} parent=0 // pred_fallthru
    _
  // Predicated region
  $region6: #{_stage_pre.6} parent=0 // pred_check
    _
  $region7: #{_stage_pre.6} parent=0 // pred_check_branch
    %10 = sbr.rel (0) target = $region9
  $region8: #{_stage_pre.6} parent=0 // pred_region
    _
  $region9: #{_stage_pre.6} parent=0 // pred_fallthru
    _
  %v12 = vld [vmem:[%s0] sm:$0x7]
  %v13 = vld [vmem:[%s1] sm:$0x7]
  %v14 = vpack.c.bf16 %v12, %v12
  %v15 = vpack.c.bf16 %v13, %v13
  %16 = vxpose.xlu0.c.b16.start [1/8] %v14, 128
  %17 = vxpose.xlu0.c.b16.cont [2/8] 0, 128
  %18 = vxpose.xlu0.c.b16.cont [3/8] 0, 128
  %19 = vxpose.xlu0.c.b16.cont [4/8] 0, 128
  %20 = vxpose.xlu0.c.b16.cont [5/8] 0, 128
  %21 = vxpose.xlu0.c.b16.cont [6/8] 0, 128
  %22 = vxpose.xlu0.c.b16.cont [7/8] 0, 128
  %23 = vxpose.xlu0.c.b16.end [8/8] 0, 128
  %v24 = vpop.trf.xlu0
  %v25 = vpop.trf.xlu0
  %v26 = vpop.trf.xlu0
  %v27 = vpop.trf.xlu0
  %v28 = vpop.trf.xlu0
  %v29 = vpop.trf.xlu0
  %v30 = vpop.trf.xlu0
  %v31 = vpop.trf.xlu0
  %vm32 = vcmask 23552
  %v34 = vsel %vm32, %v24, 0
  %v37 = vsel %vm32, %v25, 0
  %vm39 = vcmask 1040384
  %vm40 = vcmask 1041408
  %v41 = vsel %vm39, 4294967295, 65535
  %v42 = vsel %vm40, %v41, 0
  %v44 = vand.u32 %v15, %v42
  %46 = vmatpush.bf16.msra.mxu0 0
  %47 = vmatpush.bf16.msra.mxu0 0
  %48 = vmatpush.bf16.msra.mxu0 0
  %49 = vmatpush.bf16.msra.mxu0 0
  %50 = vmatpush.bf16.msra.mxu0 0
  %51 = vmatpush.bf16.msra.mxu0 0
  %52 = vmatpush.bf16.msra.mxu0 0
  %53 = vmatpush.bf16.msra.mxu0 %v44
  %54 = vmatmul.bf16.gmra.mxu0 %v34
  %v55 = vpop.f32.mrf.mxu0
  %v56 = vadd.f32 0.0, %v55
  %v57 = vpop.f32.mrf.mxu0
  %v58 = vadd.f32 0.0, %v57
  %59 = vmatmul.bf16.gmra.mxu0 %v37
  %v60 = vpop.f32.mrf.mxu0
  %v61 = vadd.f32 0.0, %v60
  %v62 = vpop.f32.mrf.mxu0
  %v63 = vadd.f32 0.0, %v62
  %64 = vdwg.mxu0
  %v65 = vmul.f32 %v13, %v13
  %vm66 = vcmask 256000
  %v67 = vsel %vm66, %v65, 0.0
  %v68 = vrot.slane %v67, 4
  %v69 = vadd.f32 %v67, %v68
  %v70 = vrot.slane %v69, 2
  %v71 = vadd.f32 %v69, %v70
  %v72 = vrot.slane %v71, 1
  %v73 = vadd.f32 %v71, %v72
  %v74 = vmul.f32 %v56, 2.0
  %v75 = vmul.f32 %v58, 2.0
  %v76 = vmul.f32 %v61, 2.0
  %v77 = vmul.f32 %v63, 2.0
  %v78 = vsub.f32 %v74, %v73
  %v79 = vsub.f32 %v75, %v73
  %v80 = vsub.f32 %v76, %v73
  %v81 = vsub.f32 %v77, %v73
  %vm82 = vcmask 261120
  %83 = vst.msk [vmem:[%s2] sm:$0xff] %vm82, %v78
  %84 = vst.msk [vmem:[%s2 + $0x8] sm:$0xff] %vm82, %v79
  %85 = vst.msk [vmem:[%s2 + $0x10] sm:$0xff] %vm82, %v80
  %86 = vst.msk [vmem:[%s2 + $0x18] sm:$0xff] %vm82, %v81
  %s87 = scalar_lea.vmem %s0, 4
  %v88 = vld [vmem:[%s87] sm:$0x7]
  %s89 = scalar_lea.vmem %s1, 4
  %v90 = vld [vmem:[%s89] sm:$0x7]
  %v91 = vpack.c.bf16 %v88, %v88
  %v92 = vpack.c.bf16 %v90, %v90
  %93 = vxpose.xlu0.c.b16.start [1/8] %v91, 128
  %94 = vxpose.xlu0.c.b16.cont [2/8] 0, 128
  %95 = vxpose.xlu0.c.b16.cont [3/8] 0, 128
  %96 = vxpose.xlu0.c.b16.cont [4/8] 0, 128
  %97 = vxpose.xlu0.c.b16.cont [5/8] 0, 128
  %98 = vxpose.xlu0.c.b16.cont [6/8] 0, 128
  %99 = vxpose.xlu0.c.b16.cont [7/8] 0, 128
  %100 = vxpose.xlu0.c.b16.end [8/8] 0, 128
  %v101 = vpop.trf.xlu0
  %v102 = vpop.trf.xlu0
  %v103 = vpop.trf.xlu0
  %v104 = vpop.trf.xlu0
  %v105 = vpop.trf.xlu0
  %v106 = vpop.trf.xlu0
  %v107 = vpop.trf.xlu0
  %v108 = vpop.trf.xlu0
  %v110 = vsel %vm32, %v101, 0
  %v113 = vsel %vm32, %v102, 0
  %v116 = vand.u32 %v92, %v42
  %118 = vmatpush.bf16.msra.mxu0 0
  %119 = vmatpush.bf16.msra.mxu0 0
  %120 = vmatpush.bf16.msra.mxu0 0
  %121 = vmatpush.bf16.msra.mxu0 0
  %122 = vmatpush.bf16.msra.mxu0 0
  %123 = vmatpush.bf16.msra.mxu0 0
  %124 = vmatpush.bf16.msra.mxu0 0
  %125 = vmatpush.bf16.msra.mxu0 %v116
  %126 = vmatmul.bf16.gmra.mxu0 %v110
  %v127 = vpop.f32.mrf.mxu0
  %v128 = vadd.f32 0.0, %v127
  %v129 = vpop.f32.mrf.mxu0
  %v130 = vadd.f32 0.0, %v129
  %131 = vmatmul.bf16.gmra.mxu0 %v113
  %v132 = vpop.f32.mrf.mxu0
  %v133 = vadd.f32 0.0, %v132
  %v134 = vpop.f32.mrf.mxu0
  %v135 = vadd.f32 0.0, %v134
  %136 = vdwg.mxu0
  %v137 = vmul.f32 %v90, %v90
  %v138 = vsel %vm66, %v137, 0.0
  %v139 = vrot.slane %v138, 4
  %v140 = vadd.f32 %v138, %v139
  %v141 = vrot.slane %v140, 2
  %v142 = vadd.f32 %v140, %v141
  %v143 = vrot.slane %v142, 1
  %v144 = vadd.f32 %v142, %v143
  %v145 = vmul.f32 %v128, 2.0
  %v146 = vmul.f32 %v130, 2.0
  %v147 = vmul.f32 %v133, 2.0
  %v148 = vmul.f32 %v135, 2.0
  %v149 = vsub.f32 %v145, %v144
  %v150 = vsub.f32 %v146, %v144
  %v151 = vsub.f32 %v147, %v144
  %v152 = vsub.f32 %v148, %v144
  %s153 = scalar_lea.vmem %s2, 32
  %154 = vst.msk [vmem:[%s153] sm:$0xff] %vm82, %v149
  %155 = vst.msk [vmem:[%s153 + $0x8] sm:$0xff] %vm82, %v150
  %156 = vst.msk [vmem:[%s153 + $0x10] sm:$0xff] %vm82, %v151
  %157 = vst.msk [vmem:[%s153 + $0x18] sm:$0xff] %vm82, %v152
  // Predicated region
  $region10: #{_stage_pre.6} parent=0 // pred_check
    _
  $region11: #{_stage_pre.6} parent=0 // pred_check_branch
    %159 = sbr.rel (0) target = $region13
  $region12: #{_stage_pre.6} parent=0 // pred_region
    _
  $region13: #{_stage_pre.6} parent=0 // pred_fallthru
    _
  // Predicated region
  $region14: #{_stage_pre.6} parent=0 // pred_check
    _
  $region15: #{_stage_pre.6} parent=0 // pred_check_branch
    %161 = sbr.rel (0) target = $region17
  $region16: #{_stage_pre.6} parent=0 // pred_region
    _
  $region17: #{_stage_pre.6} parent=0 // pred_fallthru
    _

// kernel: _stage_pre.10
$region0: #{_stage_pre.10}
  #allocation0 [shape = 'u32[]', space=smem, size = 0x4, offset = 0x4, fixed_abs, tag = 'smem constant byte address 0x4 - core index']
  #allocation1 [shape = 'u32[72,128]{1,0:T(1,128)}', space=vmem, size = 0x9000, scoped, tag = 'internal scratch']
  %s0 = inlined_call_operand.vmem [shape: f32[2,32,32], index: 0, kind: input, shape index: {}, may-alias: {0,1}]
  %s1 = inlined_call_operand.vmem [shape: f32[2,32,32], index: 1, kind: input, shape index: {}, may-alias: {0,1}]
  %s2 = inlined_call_operand.vmem [shape: f32[2,32,32], index: 2, kind: output, shape index: {}]
  %s3 = sld [smem:[#allocation0]]
  $region18: #{_stage_pre.10} parent=0
    _
  %s5 = ssub.s32 1, %s3
  %s6 = scalar_select 0, %s5, %s3
  // Predicated region
  $region2: #{_stage_pre.10} parent=0 // pred_check
    _
  $region3: #{_stage_pre.10} parent=0 // pred_check_branch
    %8 = sbr.rel (0) target = $region5
  $region4: #{_stage_pre.10} parent=0 // pred_region
    _
  $region5: #{_stage_pre.10} parent=0 // pred_fallthru
    _
  // Predicated region
  $region6: #{_stage_pre.10} parent=0 // pred_check
    _
  $region7: #{_stage_pre.10} parent=0 // pred_check_branch
    %10 = sbr.rel (0) target = $region9
  $region8: #{_stage_pre.10} parent=0 // pred_region
    _
  $region9: #{_stage_pre.10} parent=0 // pred_fallthru
    _
  %v12 = vld [vmem:[%s0] sm:$0xff]
  %v13 = vld [vmem:[%s0 + $0x8] sm:$0xff]
  %v14 = vld [vmem:[%s0 + $0x10] sm:$0xff]
  %v15 = vld [vmem:[%s0 + $0x18] sm:$0xff]
  %v16 = vld [vmem:[%s1] sm:$0xff]
  %v17 = vld [vmem:[%s1 + $0x8] sm:$0xff]
  %v18 = vld [vmem:[%s1 + $0x10] sm:$0xff]
  %v19 = vld [vmem:[%s1 + $0x18] sm:$0xff]
  %v20 = vpack.c.bf16 %v13, %v12
  %v21 = vpack.c.bf16 %v15, %v14
  %v22 = vpack.c.bf16 %v17, %v16
  %v23 = vpack.c.bf16 %v19, %v18
  %24 = vxpose.xlu0.c.b16.start [1/8] %v20, 128
  %25 = vxpose.xlu0.c.b16.cont [2/8] %v21, 128
  %26 = vxpose.xlu0.c.b16.cont [3/8] 0, 128
  %27 = vxpose.xlu0.c.b16.cont [4/8] 0, 128
  %28 = vxpose.xlu0.c.b16.cont [5/8] 0, 128
  %29 = vxpose.xlu0.c.b16.cont [6/8] 0, 128
  %30 = vxpose.xlu0.c.b16.cont [7/8] 0, 128
  %31 = vxpose.xlu0.c.b16.end [8/8] 0, 128
  %v32 = vpop.trf.xlu0
  %v33 = vpop.trf.xlu0
  %v34 = vpop.trf.xlu0
  %v35 = vpop.trf.xlu0
  %v36 = vpop.trf.xlu0
  %v37 = vpop.trf.xlu0
  %v38 = vpop.trf.xlu0
  %v39 = vpop.trf.xlu0
  %vm40 = vcmask 261120
  %v42 = vsel %vm40, %v32, 0
  %v45 = vsel %vm40, %v33, 0
  %47 = vmatpush.bf16.msra.mxu0 0
  %48 = vmatpush.bf16.msra.mxu0 0
  %49 = vmatpush.bf16.msra.mxu0 0
  %50 = vmatpush.bf16.msra.mxu0 0
  %51 = vmatpush.bf16.msra.mxu0 0
  %52 = vmatpush.bf16.msra.mxu0 0
  %53 = vmatpush.bf16.msra.mxu0 %v23
  %54 = vmatpush.bf16.msra.mxu0 %v22
  %55 = vmatmul.bf16.gmra.mxu0 %v42
  %v56 = vpop.f32.mrf.mxu0
  %v57 = vadd.f32 0.0, %v56
  %v58 = vpop.f32.mrf.mxu0
  %v59 = vadd.f32 0.0, %v58
  %60 = vmatmul.bf16.gmra.mxu0 %v45
  %v61 = vpop.f32.mrf.mxu0
  %v62 = vadd.f32 0.0, %v61
  %v63 = vpop.f32.mrf.mxu0
  %v64 = vadd.f32 0.0, %v63
  %65 = vdwg.mxu0
  %v66 = vmul.f32 %v16, %v16
  %v67 = vmul.f32 %v17, %v17
  %v68 = vmul.f32 %v18, %v18
  %v69 = vmul.f32 %v19, %v19
  %v70 = vsel %vm40, %v66, 0.0
  %v71 = vsel %vm40, %v67, 0.0
  %v72 = vadd.f32 %v70, %v71
  %v73 = vsel %vm40, %v68, 0.0
  %v74 = vadd.f32 %v72, %v73
  %v75 = vsel %vm40, %v69, 0.0
  %v76 = vadd.f32 %v74, %v75
  %v77 = vrot.slane %v76, 4
  %v78 = vadd.f32 %v76, %v77
  %v79 = vrot.slane %v78, 2
  %v80 = vadd.f32 %v78, %v79
  %v81 = vrot.slane %v80, 1
  %v82 = vadd.f32 %v80, %v81
  %v83 = vmul.f32 %v57, 2.0
  %v84 = vmul.f32 %v59, 2.0
  %v85 = vmul.f32 %v62, 2.0
  %v86 = vmul.f32 %v64, 2.0
  %v87 = vsub.f32 %v83, %v82
  %v88 = vsub.f32 %v84, %v82
  %v89 = vsub.f32 %v85, %v82
  %v90 = vsub.f32 %v86, %v82
  %91 = vst.msk [vmem:[%s2] sm:$0xff] %vm40, %v87
  %92 = vst.msk [vmem:[%s2 + $0x8] sm:$0xff] %vm40, %v88
  %93 = vst.msk [vmem:[%s2 + $0x10] sm:$0xff] %vm40, %v89
  %94 = vst.msk [vmem:[%s2 + $0x18] sm:$0xff] %vm40, %v90
  %s95 = scalar_lea.vmem %s0, 32
  %v96 = vld [vmem:[%s95] sm:$0xff]
  %v97 = vld [vmem:[%s95 + $0x8] sm:$0xff]
  %v98 = vld [vmem:[%s95 + $0x10] sm:$0xff]
  %v99 = vld [vmem:[%s95 + $0x18] sm:$0xff]
  %s100 = scalar_lea.vmem %s1, 32
  %v101 = vld [vmem:[%s100] sm:$0xff]
  %v102 = vld [vmem:[%s100 + $0x8] sm:$0xff]
  %v103 = vld [vmem:[%s100 + $0x10] sm:$0xff]
  %v104 = vld [vmem:[%s100 + $0x18] sm:$0xff]
  %v105 = vpack.c.bf16 %v97, %v96
  %v106 = vpack.c.bf16 %v99, %v98
  %v107 = vpack.c.bf16 %v102, %v101
  %v108 = vpack.c.bf16 %v104, %v103
  %109 = vxpose.xlu0.c.b16.start [1/8] %v105, 128
  %110 = vxpose.xlu0.c.b16.cont [2/8] %v106, 128
  %111 = vxpose.xlu0.c.b16.cont [3/8] 0, 128
  %112 = vxpose.xlu0.c.b16.cont [4/8] 0, 128
  %113 = vxpose.xlu0.c.b16.cont [5/8] 0, 128
  %114 = vxpose.xlu0.c.b16.cont [6/8] 0, 128
  %115 = vxpose.xlu0.c.b16.cont [7/8] 0, 128
  %116 = vxpose.xlu0.c.b16.end [8/8] 0, 128
  %v117 = vpop.trf.xlu0
  %v118 = vpop.trf.xlu0
  %v119 = vpop.trf.xlu0
  %v120 = vpop.trf.xlu0
  %v121 = vpop.trf.xlu0
  %v122 = vpop.trf.xlu0
  %v123 = vpop.trf.xlu0
  %v124 = vpop.trf.xlu0
  %v126 = vsel %vm40, %v117, 0
  %v129 = vsel %vm40, %v118, 0
  %131 = vmatpush.bf16.msra.mxu0 0
  %132 = vmatpush.bf16.msra.mxu0 0
  %133 = vmatpush.bf16.msra.mxu0 0
  %134 = vmatpush.bf16.msra.mxu0 0
  %135 = vmatpush.bf16.msra.mxu0 0
  %136 = vmatpush.bf16.msra.mxu0 0
  %137 = vmatpush.bf16.msra.mxu0 %v108
  %138 = vmatpush.bf16.msra.mxu0 %v107
  %139 = vmatmul.bf16.gmra.mxu0 %v126
  %v140 = vpop.f32.mrf.mxu0
  %v141 = vadd.f32 0.0, %v140
  %v142 = vpop.f32.mrf.mxu0
  %v143 = vadd.f32 0.0, %v142
  %144 = vmatmul.bf16.gmra.mxu0 %v129
  %v145 = vpop.f32.mrf.mxu0
  %v146 = vadd.f32 0.0, %v145
  %v147 = vpop.f32.mrf.mxu0
  %v148 = vadd.f32 0.0, %v147
  %149 = vdwg.mxu0
  %v150 = vmul.f32 %v101, %v101
  %v151 = vmul.f32 %v102, %v102
  %v152 = vmul.f32 %v103, %v103
  %v153 = vmul.f32 %v104, %v104
  %v154 = vsel %vm40, %v150, 0.0
  %v155 = vsel %vm40, %v151, 0.0
  %v156 = vadd.f32 %v154, %v155
  %v157 = vsel %vm40, %v152, 0.0
  %v158 = vadd.f32 %v156, %v157
  %v159 = vsel %vm40, %v153, 0.0
  %v160 = vadd.f32 %v158, %v159
  %v161 = vrot.slane %v160, 4
  %v162 = vadd.f32 %v160, %v161
  %v163 = vrot.slane %v162, 2
  %v164 = vadd.f32 %v162, %v163
  %v165 = vrot.slane %v164, 1
  %v166 = vadd.f32 %v164, %v165
  %v167 = vmul.f32 %v141, 2.0
  %v168 = vmul.f32 %v143, 2.0
  %v169 = vmul.f32 %v146, 2.0
  %v170 = vmul.f32 %v148, 2.0
  %v171 = vsub.f32 %v167, %v166
  %v172 = vsub.f32 %v168, %v166
  %v173 = vsub.f32 %v169, %v166
  %v174 = vsub.f32 %v170, %v166
  %s175 = scalar_lea.vmem %s2, 32
  %176 = vst.msk [vmem:[%s175] sm:$0xff] %vm40, %v171
  %177 = vst.msk [vmem:[%s175 + $0x8] sm:$0xff] %vm40, %v172
  %178 = vst.msk [vmem:[%s175 + $0x10] sm:$0xff] %vm40, %v173
  %179 = vst.msk [vmem:[%s175 + $0x18] sm:$0xff] %vm40, %v174
  // Predicated region
  $region10: #{_stage_pre.10} parent=0 // pred_check
    _
  $region11: #{_stage_pre.10} parent=0 // pred_check_branch
    %181 = sbr.rel (0) target = $region13
  $region12: #{_stage_pre.10} parent=0 // pred_region
    _
  $region13: #{_stage_pre.10} parent=0 // pred_fallthru
    _
  // Predicated region
  $region14: #{_stage_pre.10} parent=0 // pred_check
    _
  $region15: #{_stage_pre.10} parent=0 // pred_check_branch
    %183 = sbr.rel (0) target = $region17
  $region16: #{_stage_pre.10} parent=0 // pred_region
    _
  $region17: #{_stage_pre.10} parent=0 // pred_fallthru
    _

// kernel: _stage_pre.7
$region0: #{_stage_pre.7}
  #allocation0 [shape = 'u32[]', space=smem, size = 0x4, offset = 0x4, fixed_abs, tag = 'smem constant byte address 0x4 - core index']
  #allocation1 [shape = 'u32[72,128]{1,0:T(1,128)}', space=vmem, size = 0x9000, scoped, tag = 'internal scratch']
  %s0 = inlined_call_operand.vmem [shape: f32[3,64], index: 0, kind: input, shape index: {}]
  %s1 = inlined_call_operand.vmem [shape: bf16[3,8,64], index: 1, kind: input, shape index: {}]
  %s2 = inlined_call_operand.vmem [shape: f32[16,3], index: 2, kind: input, shape index: {}]
  %s3 = inlined_call_operand.vmem [shape: f32[16,3], index: 3, kind: input, shape index: {}]
  %s4 = inlined_call_operand.vmem [shape: f32[16,16], index: 4, kind: input, shape index: {}]
  %s5 = inlined_call_operand.vmem [shape: f32[16,64], index: 5, kind: output, shape index: {}]
  %s6 = sld [smem:[#allocation0]]
  $region30: #{_stage_pre.7} parent=0
    _
  %s8 = ssub.s32 1, %s6
  %s9 = scalar_select 0, %s8, %s6
  // Predicated region
  $region2: #{_stage_pre.7} parent=0 // pred_check
    _
  $region3: #{_stage_pre.7} parent=0 // pred_check_branch
    %11 = sbr.rel (0) target = $region5
  $region4: #{_stage_pre.7} parent=0 // pred_region
    _
  $region5: #{_stage_pre.7} parent=0 // pred_fallthru
    _
  // Predicated region
  $region6: #{_stage_pre.7} parent=0 // pred_check
    _
  $region7: #{_stage_pre.7} parent=0 // pred_check_branch
    %13 = sbr.rel (0) target = $region9
  $region8: #{_stage_pre.7} parent=0 // pred_region
    _
  $region9: #{_stage_pre.7} parent=0 // pred_fallthru
    _
  // Predicated region
  $region10: #{_stage_pre.7} parent=0 // pred_check
    _
  $region11: #{_stage_pre.7} parent=0 // pred_check_branch
    %15 = sbr.rel (0) target = $region13
  $region12: #{_stage_pre.7} parent=0 // pred_region
    _
  $region13: #{_stage_pre.7} parent=0 // pred_fallthru
    _
  // Predicated region
  $region14: #{_stage_pre.7} parent=0 // pred_check
    _
  $region15: #{_stage_pre.7} parent=0 // pred_check_branch
    %17 = sbr.rel (0) target = $region17
  $region16: #{_stage_pre.7} parent=0 // pred_region
    _
  $region17: #{_stage_pre.7} parent=0 // pred_fallthru
    _
  // Predicated region
  $region18: #{_stage_pre.7} parent=0 // pred_check
    _
  $region19: #{_stage_pre.7} parent=0 // pred_check_branch
    %19 = sbr.rel (0) target = $region21
  $region20: #{_stage_pre.7} parent=0 // pred_region
    _
  $region21: #{_stage_pre.7} parent=0 // pred_fallthru
    _
  %v21 = vld [vmem:[%s2] sm:$0xff]
  %v22 = vld [vmem:[%s2 + $0x8] sm:$0xff]
  %v23 = vld [vmem:[%s0] sm:$0x7]
  %v24 = vpack.c.bf16 %v22, %v21
  %v25 = vpack.c.bf16 %v23, %v23
  %vm26 = vcmask 23552
  %v28 = vsel %vm26, %v24, 0
  %vm30 = vcmask 1040384
  %vm31 = vcmask 1041408
  %v32 = vsel %vm30, 4294967295, 65535
  %v33 = vsel %vm31, %v32, 0
  %v35 = vand.u32 %v25, %v33
  %37 = vmatpush.bf16.msra.mxu0 0
  %38 = vmatpush.bf16.msra.mxu0 0
  %39 = vmatpush.bf16.msra.mxu0 0
  %40 = vmatpush.bf16.msra.mxu0 0
  %41 = vmatpush.bf16.msra.mxu0 0
  %42 = vmatpush.bf16.msra.mxu0 0
  %43 = vmatpush.bf16.msra.mxu0 0
  %44 = vmatpush.bf16.msra.mxu0 %v35
  %45 = vmatmul.bf16.gmra.mxu0 %v28
  %v46 = vpop.f32.mrf.mxu0
  %v47 = vadd.f32 0.0, %v46
  %v48 = vpop.f32.mrf.mxu0
  %v49 = vadd.f32 0.0, %v48
  %50 = vdwg.mxu0
  %v51 = vld [vmem:[%s3] sm:$0xff]
  %v52 = vld [vmem:[%s3 + $0x8] sm:$0xff]
  %v53 = vld [vmem:[%s1] sm:$0xf]
  %v54 = vld [vmem:[%s1 + $0x4] sm:$0xf]
  %v55 = vld [vmem:[%s1 + $0x8] sm:$0xf]
  %v56 = vpack.c.bf16 %v52, %v51
  %v59 = vpack.i.b16 %v54, %v53
  %v60 = vshrl.u32 %v53, 16
  %v61 = vshrl.u32 %v54, 16
  %v62 = vpack.i.b16 %v61, %v60
  %v65 = vpack.i.b16 0, %v55
  %v66 = vshrl.u32 %v55, 16
  %v67 = vshrl.u32 0, 16
  %v68 = vpack.i.b16 %v67, %v66
  %v71 = vunpack.c.l.s4 1983009808
  %v72 = vunpack.c.0.s8 %v71
  %v73 = vperm.slane %v59, %v72
  %v76 = vunpack.c.l.s4 1983009808
  %v77 = vunpack.c.0.s8 %v76
  %v78 = vperm.slane %v65, %v77
  %v79 = vrot.slane %v78, 4
  %vm80 = vcmask 1047556
  %v81 = vsel %vm80, %v79, %v73
  %v82 = vrot.slane %v73, 4
  %v83 = vsel %vm80, %v78, %v82
  %v85 = vunpack.c.l.s4 1934713408
  %v86 = vunpack.c.0.s8 %v85
  %v87 = vperm.slane %v81, %v86
  %v89 = vunpack.c.l.s4 1934713408
  %v90 = vunpack.c.0.s8 %v89
  %v91 = vperm.slane %v83, %v90
  %v92 = vrot.slane %v87, 4
  %v93 = vsel %vm80, 0, %v92
  %v94 = vrot.slane %v91, 4
  %v95 = vsel %vm80, 0, %v94
  %v98 = vunpack.c.l.s4 1983009808
  %v99 = vunpack.c.0.s8 %v98
  %v100 = vperm.slane %v62, %v99
  %v103 = vunpack.c.l.s4 1983009808
  %v104 = vunpack.c.0.s8 %v103
  %v105 = vperm.slane %v68, %v104
  %v106 = vrot.slane %v105, 4
  %v107 = vsel %vm80, %v106, %v100
  %v108 = vrot.slane %v100, 4
  %v109 = vsel %vm80, %v105, %v108
  %v111 = vunpack.c.l.s4 1934713408
  %v112 = vunpack.c.0.s8 %v111
  %v113 = vperm.slane %v107, %v112
  %v115 = vunpack.c.l.s4 1934713408
  %v116 = vunpack.c.0.s8 %v115
  %v117 = vperm.slane %v109, %v116
  %v118 = vrot.slane %v113, 4
  %v119 = vsel %vm80, 0, %v118
  %v120 = vrot.slane %v117, 4
  %v121 = vsel %vm80, 0, %v120
  %v123 = vunpack.c.l.b16 %v113
  %v124 = vpack.c.b16 %v123, %v123
  %125 = vrot.lane.b32.xlu0 %v124, 64
  %v126 = vpop.permute.xlu0 %125
  %v128 = vunpack.c.l.b16 %v119
  %v129 = vpack.c.b16 %v128, %v128
  %130 = vrot.lane.b32.xlu0 %v129, 64
  %v131 = vpop.permute.xlu0 %130
  %v133 = vunpack.c.l.b16 %v117
  %v134 = vpack.c.b16 %v133, %v133
  %135 = vrot.lane.b32.xlu0 %v134, 64
  %v136 = vpop.permute.xlu0 %135
  %v138 = vunpack.c.l.b16 %v121
  %v139 = vpack.c.b16 %v138, %v138
  %140 = vrot.lane.b32.xlu0 %v139, 64
  %v141 = vpop.permute.xlu0 %140
  %vm142 = vcmask 523264
  %v145 = vsel %vm142, %v87, %v126
  %v148 = vsel %vm142, %v93, %v131
  %v151 = vsel %vm142, %v91, %v136
  %v154 = vsel %vm142, %v95, %v141
  %vm155 = vcmask 1047556
  %v156 = vsel %vm155, 0.0, 0.0
  %v157 = vsel %vm155, 0.0, 0.0
  %v159 = vunpack.c.l.s4 1983009808
  %v160 = vunpack.c.0.s8 %v159
  %v161 = vperm.slane %v156, %v160
  %v163 = vunpack.c.l.s4 1983009808
  %v164 = vunpack.c.0.s8 %v163
  %v165 = vperm.slane %v157, %v164
  %v166 = vrot.slane %v161, 4
  %v167 = vsel %vm155, %v166, %v161
  %v168 = vsel %vm155, %v161, %v166
  %v170 = vunpack.c.l.s4 1934713408
  %v171 = vunpack.c.0.s8 %v170
  %v172 = vperm.slane %v167, %v171
  %v174 = vunpack.c.l.s4 1934713408
  %v175 = vunpack.c.0.s8 %v174
  %v176 = vperm.slane %v168, %v175
  %v177 = vrot.slane %v165, 4
  %v178 = vsel %vm155, %v177, %v165
  %v179 = vsel %vm155, %v165, %v177
  %v181 = vunpack.c.l.s4 1934713408
  %v182 = vunpack.c.0.s8 %v181
  %v183 = vperm.slane %v178, %v182
  %v185 = vunpack.c.l.s4 1934713408
  %v186 = vunpack.c.0.s8 %v185
  %v187 = vperm.slane %v179, %v186
  %v188 = vrot.slane %v172, 4
  %v189 = vsel %vm155, %v188, %v172
  %v190 = vsel %vm155, %v172, %v188
  %v191 = vrot.slane %v176, 4
  %v192 = vsel %vm155, %v191, %v176
  %v193 = vsel %vm155, %v176, %v191
  %v194 = vrot.slane %v183, 4
  %v195 = vsel %vm155, %v194, %v183
  %v196 = vsel %vm155, %v183, %v194
  %v197 = vrot.slane %v187, 4
  %v198 = vsel %vm155, %v197, %v187
  %v199 = vsel %vm155, %v187, %v197
  %201 = vrot.lane.b32.xlu0 %v190, 64
  %v202 = vpop.permute.xlu0 %201
  %205 = vrot.lane.b32.xlu0 %v193, 64
  %v206 = vpop.permute.xlu0 %205
  %209 = vrot.lane.b32.xlu0 %v196, 64
  %v210 = vpop.permute.xlu0 %209
  %213 = vrot.lane.b32.xlu0 %v199, 64
  %v214 = vpop.permute.xlu0 %213
  %v216 = vsel %vm142, %v189, %v202
  %v217 = vsel %vm142, %v192, %v206
  %v218 = vsel %vm142, %v195, %v210
  %v219 = vsel %vm142, %v198, %v214
  %v221 = vsel %vm26, %v56, 0
  %v223 = vand.u32 %v145, %v33
  %v225 = vand.u32 %v148, %v33
  %v227 = vand.u32 %v151, %v33
  %v229 = vand.u32 %v154, %v33
  %231 = vmatpush.bf16.msra.mxu0 0
  %232 = vmatpush.bf16.msra.mxu0 0
  %233 = vmatpush.bf16.msra.mxu0 0
  %234 = vmatpush.bf16.msra.mxu0 0
  %235 = vmatpush.bf16.msra.mxu0 0
  %236 = vmatpush.bf16.msra.mxu0 0
  %237 = vmatpush.bf16.msra.mxu0 0
  %238 = vmatpush.bf16.msra.mxu0 %v223
  %239 = vmatmul.bf16.gmra.mxu0 %v221
  %v240 = vpop.f32.mrf.mxu0
  %v241 = vadd.f32 %v216, %v240
  %v242 = vpop.f32.mrf.mxu0
  %v243 = vadd.f32 %v216, %v242
  %244 = vdwg.mxu0
  %245 = vmatpush.bf16.msra.mxu0 0
  %246 = vmatpush.bf16.msra.mxu0 0
  %247 = vmatpush.bf16.msra.mxu0 0
  %248 = vmatpush.bf16.msra.mxu0 0
  %249 = vmatpush.bf16.msra.mxu0 0
  %250 = vmatpush.bf16.msra.mxu0 0
  %251 = vmatpush.bf16.msra.mxu0 0
  %252 = vmatpush.bf16.msra.mxu0 %v225
  %253 = vmatmul.bf16.gmra.mxu0 %v221
  %v254 = vpop.f32.mrf.mxu0
  %v255 = vadd.f32 %v217, %v254
  %v256 = vpop.f32.mrf.mxu0
  %v257 = vadd.f32 %v217, %v256
  %258 = vdwg.mxu0
  %259 = vmatpush.bf16.msra.mxu0 0
  %260 = vmatpush.bf16.msra.mxu0 0
  %261 = vmatpush.bf16.msra.mxu0 0
  %262 = vmatpush.bf16.msra.mxu0 0
  %263 = vmatpush.bf16.msra.mxu0 0
  %264 = vmatpush.bf16.msra.mxu0 0
  %265 = vmatpush.bf16.msra.mxu0 0
  %266 = vmatpush.bf16.msra.mxu0 %v227
  %267 = vmatmul.bf16.gmra.mxu0 %v221
  %v268 = vpop.f32.mrf.mxu0
  %v269 = vadd.f32 %v218, %v268
  %v270 = vpop.f32.mrf.mxu0
  %v271 = vadd.f32 %v218, %v270
  %272 = vdwg.mxu0
  %273 = vmatpush.bf16.msra.mxu0 0
  %274 = vmatpush.bf16.msra.mxu0 0
  %275 = vmatpush.bf16.msra.mxu0 0
  %276 = vmatpush.bf16.msra.mxu0 0
  %277 = vmatpush.bf16.msra.mxu0 0
  %278 = vmatpush.bf16.msra.mxu0 0
  %279 = vmatpush.bf16.msra.mxu0 0
  %280 = vmatpush.bf16.msra.mxu0 %v229
  %281 = vmatmul.bf16.gmra.mxu0 %v221
  %v282 = vpop.f32.mrf.mxu0
  %v283 = vadd.f32 %v219, %v282
  %v284 = vpop.f32.mrf.mxu0
  %v285 = vadd.f32 %v219, %v284
  %286 = vdwg.mxu0
  %289 = vrot.lane.b32.xlu0 %v241, 64
  %v290 = vpop.permute.xlu0 %289
  %291 = vrot.lane.b32.xlu0 %v243, 64
  %v292 = vpop.permute.xlu0 %291
  %297 = vrot.lane.b32.xlu0 %v255, 64
  %v298 = vpop.permute.xlu0 %297
  %299 = vrot.lane.b32.xlu0 %v257, 64
  %v300 = vpop.permute.xlu0 %299
  %305 = vrot.lane.b32.xlu0 %v269, 64
  %v306 = vpop.permute.xlu0 %305
  %307 = vrot.lane.b32.xlu0 %v271, 64
  %v308 = vpop.permute.xlu0 %307
  %313 = vrot.lane.b32.xlu0 %v283, 64
  %v314 = vpop.permute.xlu0 %313
  %315 = vrot.lane.b32.xlu0 %v285, 64
  %v316 = vpop.permute.xlu0 %315
  %v319 = vrot.slane %v255, 4
  %v320 = vsel %vm155, %v319, %v241
  %v321 = vrot.slane %v241, 4
  %v322 = vsel %vm155, %v255, %v321
  %v324 = vunpack.c.l.s4 1983009808
  %v325 = vunpack.c.0.s8 %v324
  %v326 = vperm.slane %v320, %v325
  %v328 = vunpack.c.l.s4 1983009808
  %v329 = vunpack.c.0.s8 %v328
  %v330 = vperm.slane %v322, %v329
  %v331 = vrot.slane %v298, 4
  %v332 = vsel %vm155, %v331, %v290
  %v333 = vrot.slane %v290, 4
  %v334 = vsel %vm155, %v298, %v333
  %v336 = vunpack.c.l.s4 1983009808
  %v337 = vunpack.c.0.s8 %v336
  %v338 = vperm.slane %v332, %v337
  %v340 = vunpack.c.l.s4 1983009808
  %v341 = vunpack.c.0.s8 %v340
  %v342 = vperm.slane %v334, %v341
  %v343 = vrot.slane %v283, 4
  %v344 = vsel %vm155, %v343, %v269
  %v345 = vrot.slane %v269, 4
  %v346 = vsel %vm155, %v283, %v345
  %v348 = vunpack.c.l.s4 1983009808
  %v349 = vunpack.c.0.s8 %v348
  %v350 = vperm.slane %v344, %v349
  %v352 = vunpack.c.l.s4 1983009808
  %v353 = vunpack.c.0.s8 %v352
  %v354 = vperm.slane %v346, %v353
  %v355 = vrot.slane %v314, 4
  %v356 = vsel %vm155, %v355, %v306
  %v357 = vrot.slane %v306, 4
  %v358 = vsel %vm155, %v314, %v357
  %v360 = vunpack.c.l.s4 1983009808
  %v361 = vunpack.c.0.s8 %v360
  %v362 = vperm.slane %v356, %v361
  %v364 = vunpack.c.l.s4 1983009808
  %v365 = vunpack.c.0.s8 %v364
  %v366 = vperm.slane %v358, %v365
  %v367 = vrot.slane %v338, 4
  %v368 = vsel %vm155, %v367, %v326
  %v369 = vrot.slane %v326, 4
  %v370 = vsel %vm155, %v338, %v369
  %v372 = vunpack.c.l.s4 1934713408
  %v373 = vunpack.c.0.s8 %v372
  %v374 = vperm.slane %v368, %v373
  %v376 = vunpack.c.l.s4 1934713408
  %v377 = vunpack.c.0.s8 %v376
  %v378 = vperm.slane %v370, %v377
  %v379 = vrot.slane %v342, 4
  %v380 = vsel %vm155, %v379, %v330
  %v381 = vrot.slane %v330, 4
  %v382 = vsel %vm155, %v342, %v381
  %v384 = vunpack.c.l.s4 1934713408
  %v385 = vunpack.c.0.s8 %v384
  %v386 = vperm.slane %v380, %v385
  %v388 = vunpack.c.l.s4 1934713408
  %v389 = vunpack.c.0.s8 %v388
  %v390 = vperm.slane %v382, %v389
  %v391 = vrot.slane %v362, 4
  %v392 = vsel %vm155, %v391, %v350
  %v393 = vrot.slane %v350, 4
  %v394 = vsel %vm155, %v362, %v393
  %v396 = vunpack.c.l.s4 1934713408
  %v397 = vunpack.c.0.s8 %v396
  %v398 = vperm.slane %v392, %v397
  %v400 = vunpack.c.l.s4 1934713408
  %v401 = vunpack.c.0.s8 %v400
  %v402 = vperm.slane %v394, %v401
  %v403 = vrot.slane %v366, 4
  %v404 = vsel %vm155, %v403, %v354
  %v405 = vrot.slane %v354, 4
  %v406 = vsel %vm155, %v366, %v405
  %v408 = vunpack.c.l.s4 1934713408
  %v409 = vunpack.c.0.s8 %v408
  %v410 = vperm.slane %v404, %v409
  %v412 = vunpack.c.l.s4 1934713408
  %v413 = vunpack.c.0.s8 %v412
  %v414 = vperm.slane %v406, %v413
  %v415 = vrot.slane %v398, 4
  %v416 = vsel %vm155, %v415, %v374
  %v417 = vrot.slane %v374, 4
  %v418 = vsel %vm155, %v398, %v417
  %v419 = vrot.slane %v402, 4
  %v420 = vsel %vm155, %v419, %v378
  %v421 = vrot.slane %v378, 4
  %v422 = vsel %vm155, %v402, %v421
  %v423 = vrot.slane %v410, 4
  %v424 = vsel %vm155, %v423, %v386
  %v425 = vrot.slane %v386, 4
  %v426 = vsel %vm155, %v410, %v425
  %v427 = vrot.slane %v414, 4
  %v428 = vsel %vm155, %v427, %v390
  %v429 = vrot.slane %v390, 4
  %v430 = vsel %vm155, %v414, %v429
  %v431 = vrot.slane %v257, 4
  %v432 = vsel %vm155, %v431, %v243
  %v433 = vrot.slane %v243, 4
  %v434 = vsel %vm155, %v257, %v433
  %v436 = vunpack.c.l.s4 1983009808
  %v437 = vunpack.c.0.s8 %v436
  %v438 = vperm.slane %v432, %v437
  %v440 = vunpack.c.l.s4 1983009808
  %v441 = vunpack.c.0.s8 %v440
  %v442 = vperm.slane %v434, %v441
  %v443 = vrot.slane %v300, 4
  %v444 = vsel %vm155, %v443, %v292
  %v445 = vrot.slane %v292, 4
  %v446 = vsel %vm155, %v300, %v445
  %v448 = vunpack.c.l.s4 1983009808
  %v449 = vunpack.c.0.s8 %v448
  %v450 = vperm.slane %v444, %v449
  %v452 = vunpack.c.l.s4 1983009808
  %v453 = vunpack.c.0.s8 %v452
  %v454 = vperm.slane %v446, %v453
  %v455 = vrot.slane %v285, 4
  %v456 = vsel %vm155, %v455, %v271
  %v457 = vrot.slane %v271, 4
  %v458 = vsel %vm155, %v285, %v457
  %v460 = vunpack.c.l.s4 1983009808
  %v461 = vunpack.c.0.s8 %v460
  %v462 = vperm.slane %v456, %v461
  %v464 = vunpack.c.l.s4 1983009808
  %v465 = vunpack.c.0.s8 %v464
  %v466 = vperm.slane %v458, %v465
  %v467 = vrot.slane %v316, 4
  %v468 = vsel %vm155, %v467, %v308
  %v469 = vrot.slane %v308, 4
  %v470 = vsel %vm155, %v316, %v469
  %v472 = vunpack.c.l.s4 1983009808
  %v473 = vunpack.c.0.s8 %v472
  %v474 = vperm.slane %v468, %v473
  %v476 = vunpack.c.l.s4 1983009808
  %v477 = vunpack.c.0.s8 %v476
  %v478 = vperm.slane %v470, %v477
  %v479 = vrot.slane %v450, 4
  %v480 = vsel %vm155, %v479, %v438
  %v481 = vrot.slane %v438, 4
  %v482 = vsel %vm155, %v450, %v481
  %v484 = vunpack.c.l.s4 1934713408
  %v485 = vunpack.c.0.s8 %v484
  %v486 = vperm.slane %v480, %v485
  %v488 = vunpack.c.l.s4 1934713408
  %v489 = vunpack.c.0.s8 %v488
  %v490 = vperm.slane %v482, %v489
  %v491 = vrot.slane %v454, 4
  %v492 = vsel %vm155, %v491, %v442
  %v493 = vrot.slane %v442, 4
  %v494 = vsel %vm155, %v454, %v493
  %v496 = vunpack.c.l.s4 1934713408
  %v497 = vunpack.c.0.s8 %v496
  %v498 = vperm.slane %v492, %v497
  %v500 = vunpack.c.l.s4 1934713408
  %v501 = vunpack.c.0.s8 %v500
  %v502 = vperm.slane %v494, %v501
  %v503 = vrot.slane %v474, 4
  %v504 = vsel %vm155, %v503, %v462
  %v505 = vrot.slane %v462, 4
  %v506 = vsel %vm155, %v474, %v505
  %v508 = vunpack.c.l.s4 1934713408
  %v509 = vunpack.c.0.s8 %v508
  %v510 = vperm.slane %v504, %v509
  %v512 = vunpack.c.l.s4 1934713408
  %v513 = vunpack.c.0.s8 %v512
  %v514 = vperm.slane %v506, %v513
  %v515 = vrot.slane %v478, 4
  %v516 = vsel %vm155, %v515, %v466
  %v517 = vrot.slane %v466, 4
  %v518 = vsel %vm155, %v478, %v517
  %v520 = vunpack.c.l.s4 1934713408
  %v521 = vunpack.c.0.s8 %v520
  %v522 = vperm.slane %v516, %v521
  %v524 = vunpack.c.l.s4 1934713408
  %v525 = vunpack.c.0.s8 %v524
  %v526 = vperm.slane %v518, %v525
  %v527 = vrot.slane %v510, 4
  %v528 = vsel %vm155, %v527, %v486
  %v529 = vrot.slane %v486, 4
  %v530 = vsel %vm155, %v510, %v529
  %v531 = vrot.slane %v514, 4
  %v532 = vsel %vm155, %v531, %v490
  %v533 = vrot.slane %v490, 4
  %v534 = vsel %vm155, %v514, %v533
  %v535 = vrot.slane %v522, 4
  %v536 = vsel %vm155, %v535, %v498
  %v537 = vrot.slane %v498, 4
  %v538 = vsel %vm155, %v522, %v537
  %v539 = vrot.slane %v526, 4
  %v540 = vsel %vm155, %v539, %v502
  %v541 = vrot.slane %v502, 4
  %v542 = vsel %vm155, %v526, %v541
  %v545 = vrot.slane %v47, 1
  %v546 = vrot.slane %v47, 2
  %v547 = vrot.slane %v47, 3
  %v548 = vrot.slane %v47, 4
  %v549 = vrot.slane %v47, 5
  %v550 = vrot.slane %v47, 6
  %v551 = vrot.slane %v47, 7
  %v552 = vrot.slane %v49, 1
  %v553 = vrot.slane %v49, 2
  %v554 = vrot.slane %v49, 3
  %v555 = vrot.slane %v49, 4
  %v556 = vrot.slane %v49, 5
  %v557 = vrot.slane %v49, 6
  %v558 = vrot.slane %v49, 7
  %v559 = vperm.slane %v47, 0
  %v560 = vperm.slane %v545, 0
  %v561 = vperm.slane %v546, 0
  %v562 = vperm.slane %v547, 0
  %v563 = vperm.slane %v548, 0
  %v564 = vperm.slane %v549, 0
  %v565 = vperm.slane %v550, 0
  %v566 = vperm.slane %v551, 0
  %v567 = vperm.slane %v49, 0
  %v568 = vperm.slane %v552, 0
  %v569 = vperm.slane %v553, 0
  %v570 = vperm.slane %v554, 0
  %v571 = vperm.slane %v555, 0
  %v572 = vperm.slane %v556, 0
  %v573 = vperm.slane %v557, 0
  %v574 = vperm.slane %v558, 0
  %v591 = vadd.f32 %v559, %v416
  %v592 = vadd.f32 %v560, %v418
  %v593 = vadd.f32 %v561, %v420
  %v594 = vadd.f32 %v562, %v422
  %v595 = vadd.f32 %v563, %v424
  %v596 = vadd.f32 %v564, %v426
  %v597 = vadd.f32 %v565, %v428
  %v598 = vadd.f32 %v566, %v430
  %v599 = vadd.f32 %v567, %v528
  %v600 = vadd.f32 %v568, %v530
  %v601 = vadd.f32 %v569, %v532
  %v602 = vadd.f32 %v570, %v534
  %v603 = vadd.f32 %v571, %v536
  %v604 = vadd.f32 %v572, %v538
  %v605 = vadd.f32 %v573, %v540
  %v606 = vadd.f32 %v574, %v542
  %vm607 = vcmp.gt.f32.partialorder %v591, 0.0
  %vm608 = vcmp.gt.f32.partialorder %v592, 0.0
  %vm609 = vcmp.gt.f32.partialorder %v593, 0.0
  %vm610 = vcmp.gt.f32.partialorder %v594, 0.0
  %vm611 = vcmp.gt.f32.partialorder %v595, 0.0
  %vm612 = vcmp.gt.f32.partialorder %v596, 0.0
  %vm613 = vcmp.gt.f32.partialorder %v597, 0.0
  %vm614 = vcmp.gt.f32.partialorder %v598, 0.0
  %vm615 = vcmp.gt.f32.partialorder %v599, 0.0
  %vm616 = vcmp.gt.f32.partialorder %v600, 0.0
  %vm617 = vcmp.gt.f32.partialorder %v601, 0.0
  %vm618 = vcmp.gt.f32.partialorder %v602, 0.0
  %vm619 = vcmp.gt.f32.partialorder %v603, 0.0
  %vm620 = vcmp.gt.f32.partialorder %v604, 0.0
  %vm621 = vcmp.gt.f32.partialorder %v605, 0.0
  %vm622 = vcmp.gt.f32.partialorder %v606, 0.0
  %v623 = vmul.f32 %v591, 0.2
  %v624 = vmul.f32 %v592, 0.2
  %v625 = vmul.f32 %v593, 0.2
  %v626 = vmul.f32 %v594, 0.2
  %v627 = vmul.f32 %v595, 0.2
  %v628 = vmul.f32 %v596, 0.2
  %v629 = vmul.f32 %v597, 0.2
  %v630 = vmul.f32 %v598, 0.2
  %v631 = vmul.f32 %v599, 0.2
  %v632 = vmul.f32 %v600, 0.2
  %v633 = vmul.f32 %v601, 0.2
  %v634 = vmul.f32 %v602, 0.2
  %v635 = vmul.f32 %v603, 0.2
  %v636 = vmul.f32 %v604, 0.2
  %v637 = vmul.f32 %v605, 0.2
  %v638 = vmul.f32 %v606, 0.2
  %v639 = vsel %vm607, %v591, %v623
  %v640 = vsel %vm608, %v592, %v624
  %v641 = vsel %vm609, %v593, %v625
  %v642 = vsel %vm610, %v594, %v626
  %v643 = vsel %vm611, %v595, %v627
  %v644 = vsel %vm612, %v596, %v628
  %v645 = vsel %vm613, %v597, %v629
  %v646 = vsel %vm614, %v598, %v630
  %v647 = vsel %vm615, %v599, %v631
  %v648 = vsel %vm616, %v600, %v632
  %v649 = vsel %vm617, %v601, %v633
  %v650 = vsel %vm618, %v602, %v634
  %v651 = vsel %vm619, %v603, %v635
  %v652 = vsel %vm620, %v604, %v636
  %v653 = vsel %vm621, %v605, %v637
  %v654 = vsel %vm622, %v606, %v638
  %v655 = vld [vmem:[%s4] sm:$0xff]
  %v656 = vld [vmem:[%s4 + $0x8] sm:$0xff]
  %v657 = vpack.c.bf16 %v656, %v655
  %v658 = vpack.c.bf16 %v639, %v639
  %v659 = vpack.c.bf16 %v640, %v640
  %v660 = vpack.c.bf16 %v641, %v641
  %v661 = vpack.c.bf16 %v642, %v642
  %v662 = vpack.c.bf16 %v643, %v643
  %v663 = vpack.c.bf16 %v644, %v644
  %v664 = vpack.c.bf16 %v645, %v645
  %v665 = vpack.c.bf16 %v646, %v646
  %v666 = vpack.c.bf16 %v647, %v647
  %v667 = vpack.c.bf16 %v648, %v648
  %v668 = vpack.c.bf16 %v649, %v649
  %v669 = vpack.c.bf16 %v650, %v650
  %v670 = vpack.c.bf16 %v651, %v651
  %v671 = vpack.c.bf16 %v652, %v652
  %v672 = vpack.c.bf16 %v653, %v653
  %v673 = vpack.c.bf16 %v654, %v654
  %v674 = vrot.slane %v662, 4
  %v675 = vsel %vm80, %v674, %v658
  %v677 = vunpack.c.l.s4 1983009808
  %v678 = vunpack.c.0.s8 %v677
  %v679 = vperm.slane %v675, %v678
  %v680 = vrot.slane %v664, 4
  %v681 = vsel %vm80, %v680, %v660
  %v683 = vunpack.c.l.s4 1983009808
  %v684 = vunpack.c.0.s8 %v683
  %v685 = vperm.slane %v681, %v684
  %v686 = vrot.slane %v685, 4
  %v687 = vsel %vm80, %v686, %v679
  %v688 = vrot.slane %v679, 4
  %v689 = vsel %vm80, %v685, %v688
  %v691 = vunpack.c.l.s4 1934713408
  %v692 = vunpack.c.0.s8 %v691
  %v693 = vperm.slane %v687, %v692
  %v695 = vunpack.c.l.s4 1934713408
  %v696 = vunpack.c.0.s8 %v695
  %v697 = vperm.slane %v689, %v696
  %v698 = vrot.slane %v693, 4
  %v699 = vsel %vm80, 0, %v698
  %v700 = vrot.slane %v697, 4
  %v701 = vsel %vm80, 0, %v700
  %v702 = vrot.slane %v663, 4
  %v703 = vsel %vm80, %v702, %v659
  %v705 = vunpack.c.l.s4 1983009808
  %v706 = vunpack.c.0.s8 %v705
  %v707 = vperm.slane %v703, %v706
  %v708 = vrot.slane %v665, 4
  %v709 = vsel %vm80, %v708, %v661
  %v711 = vunpack.c.l.s4 1983009808
  %v712 = vunpack.c.0.s8 %v711
  %v713 = vperm.slane %v709, %v712
  %v714 = vrot.slane %v713, 4
  %v715 = vsel %vm80, %v714, %v707
  %v716 = vrot.slane %v707, 4
  %v717 = vsel %vm80, %v713, %v716
  %v719 = vunpack.c.l.s4 1934713408
  %v720 = vunpack.c.0.s8 %v719
  %v721 = vperm.slane %v715, %v720
  %v723 = vunpack.c.l.s4 1934713408
  %v724 = vunpack.c.0.s8 %v723
  %v725 = vperm.slane %v717, %v724
  %v726 = vrot.slane %v721, 4
  %v727 = vsel %vm80, 0, %v726
  %v728 = vrot.slane %v725, 4
  %v729 = vsel %vm80, 0, %v728
  %v730 = vrot.slane %v670, 4
  %v731 = vsel %vm80, %v730, %v666
  %v733 = vunpack.c.l.s4 1983009808
  %v734 = vunpack.c.0.s8 %v733
  %v735 = vperm.slane %v731, %v734
  %v736 = vrot.slane %v672, 4
  %v737 = vsel %vm80, %v736, %v668
  %v739 = vunpack.c.l.s4 1983009808
  %v740 = vunpack.c.0.s8 %v739
  %v741 = vperm.slane %v737, %v740
  %v742 = vrot.slane %v741, 4
  %v743 = vsel %vm80, %v742, %v735
  %v744 = vrot.slane %v735, 4
  %v745 = vsel %vm80, %v741, %v744
  %v747 = vunpack.c.l.s4 1934713408
  %v748 = vunpack.c.0.s8 %v747
  %v749 = vperm.slane %v743, %v748
  %v751 = vunpack.c.l.s4 1934713408
  %v752 = vunpack.c.0.s8 %v751
  %v753 = vperm.slane %v745, %v752
  %v754 = vrot.slane %v749, 4
  %v755 = vsel %vm80, 0, %v754
  %v756 = vrot.slane %v753, 4
  %v757 = vsel %vm80, 0, %v756
  %v758 = vrot.slane %v671, 4
  %v759 = vsel %vm80, %v758, %v667
  %v761 = vunpack.c.l.s4 1983009808
  %v762 = vunpack.c.0.s8 %v761
  %v763 = vperm.slane %v759, %v762
  %v764 = vrot.slane %v673, 4
  %v765 = vsel %vm80, %v764, %v669
  %v767 = vunpack.c.l.s4 1983009808
  %v768 = vunpack.c.0.s8 %v767
  %v769 = vperm.slane %v765, %v768
  %v770 = vrot.slane %v769, 4
  %v771 = vsel %vm80, %v770, %v763
  %v772 = vrot.slane %v763, 4
  %v773 = vsel %vm80, %v769, %v772
  %v775 = vunpack.c.l.s4 1934713408
  %v776 = vunpack.c.0.s8 %v775
  %v777 = vperm.slane %v771, %v776
  %v779 = vunpack.c.l.s4 1934713408
  %v780 = vunpack.c.0.s8 %v779
  %v781 = vperm.slane %v773, %v780
  %v782 = vrot.slane %v777, 4
  %v783 = vsel %vm80, 0, %v782
  %v784 = vrot.slane %v781, 4
  %v785 = vsel %vm80, 0, %v784
  %v788 = vpack.i.b16 %v721, %v693
  %v789 = vshrl.u32 %v693, 16
  %v790 = vshrl.u32 %v721, 16
  %v791 = vpack.i.b16 %v790, %v789
  %v794 = vpack.i.b16 %v727, %v699
  %v795 = vshrl.u32 %v699, 16
  %v796 = vshrl.u32 %v727, 16
  %v797 = vpack.i.b16 %v796, %v795
  %v800 = vpack.i.b16 %v725, %v697
  %v801 = vshrl.u32 %v697, 16
  %v802 = vshrl.u32 %v725, 16
  %v803 = vpack.i.b16 %v802, %v801
  %v806 = vpack.i.b16 %v729, %v701
  %v807 = vshrl.u32 %v701, 16
  %v808 = vshrl.u32 %v729, 16
  %v809 = vpack.i.b16 %v808, %v807
  %v812 = vpack.i.b16 %v777, %v749
  %v813 = vshrl.u32 %v749, 16
  %v814 = vshrl.u32 %v777, 16
  %v815 = vpack.i.b16 %v814, %v813
  %v818 = vpack.i.b16 %v783, %v755
  %v819 = vshrl.u32 %v755, 16
  %v820 = vshrl.u32 %v783, 16
  %v821 = vpack.i.b16 %v820, %v819
  %v824 = vpack.i.b16 %v781, %v753
  %v825 = vshrl.u32 %v753, 16
  %v826 = vshrl.u32 %v781, 16
  %v827 = vpack.i.b16 %v826, %v825
  %v830 = vpack.i.b16 %v785, %v757
  %v831 = vshrl.u32 %v757, 16
  %v832 = vshrl.u32 %v785, 16
  %v833 = vpack.i.b16 %v832, %v831
  %v834 = vunpack.c.l.b16 %v788
  %v835 = vunpack.c.l.b16 %v812
  %v836 = vpack.c.b16 %v835, %v834
  %v837 = vunpack.c.l.b16 %v791
  %v838 = vunpack.c.l.b16 %v815
  %v839 = vpack.c.b16 %v838, %v837
  %840 = vrot.lane.b32.xlu0 %v839, 64
  %v841 = vpop.permute.xlu0 %840
  %v842 = vunpack.c.l.b16 %v794
  %v843 = vunpack.c.l.b16 %v818
  %v844 = vpack.c.b16 %v843, %v842
  %v845 = vunpack.c.l.b16 %v797
  %v846 = vunpack.c.l.b16 %v821
  %v847 = vpack.c.b16 %v846, %v845
  %848 = vrot.lane.b32.xlu0 %v847, 64
  %v849 = vpop.permute.xlu0 %848
  %v850 = vunpack.c.l.b16 %v800
  %v851 = vunpack.c.l.b16 %v824
  %v852 = vpack.c.b16 %v851, %v850
  %v853 = vunpack.c.l.b16 %v803
  %v854 = vunpack.c.l.b16 %v827
  %v855 = vpack.c.b16 %v854, %v853
  %856 = vrot.lane.b32.xlu0 %v855, 64
  %v857 = vpop.permute.xlu0 %856
  %v858 = vunpack.c.l.b16 %v806
  %v859 = vunpack.c.l.b16 %v830
  %v860 = vpack.c.b16 %v859, %v858
  %v861 = vunpack.c.l.b16 %v809
  %v862 = vunpack.c.l.b16 %v833
  %v863 = vpack.c.b16 %v862, %v861
  %864 = vrot.lane.b32.xlu0 %v863, 64
  %v865 = vpop.permute.xlu0 %864
  %v868 = vsel %vm142, %v836, %v841
  %v872 = vsel %vm142, %v844, %v849
  %v876 = vsel %vm142, %v852, %v857
  %v880 = vsel %vm142, %v860, %v865
  %vm882 = vcmask 130048
  %v884 = vsel %vm882, %v657, 0
  %886 = vmatpush.bf16.msra.mxu0 0
  %887 = vmatpush.bf16.msra.mxu0 0
  %888 = vmatpush.bf16.msra.mxu0 0
  %889 = vmatpush.bf16.msra.mxu0 0
  %890 = vmatpush.bf16.msra.mxu0 0
  %891 = vmatpush.bf16.msra.mxu0 0
  %892 = vmatpush.bf16.msra.mxu0 0
  %893 = vmatpush.bf16.msra.mxu0 %v868
  %894 = vmatmul.bf16.gmra.mxu0 %v884
  %v895 = vpop.f32.mrf.mxu0
  %v896 = vadd.f32 %v216, %v895
  %v897 = vpop.f32.mrf.mxu0
  %v898 = vadd.f32 %v216, %v897
  %899 = vdwg.mxu0
  %900 = vmatpush.bf16.msra.mxu0 0
  %901 = vmatpush.bf16.msra.mxu0 0
  %902 = vmatpush.bf16.msra.mxu0 0
  %903 = vmatpush.bf16.msra.mxu0 0
  %904 = vmatpush.bf16.msra.mxu0 0
  %905 = vmatpush.bf16.msra.mxu0 0
  %906 = vmatpush.bf16.msra.mxu0 0
  %907 = vmatpush.bf16.msra.mxu0 %v872
  %908 = vmatmul.bf16.gmra.mxu0 %v884
  %v909 = vpop.f32.mrf.mxu0
  %v910 = vadd.f32 %v217, %v909
  %v911 = vpop.f32.mrf.mxu0
  %v912 = vadd.f32 %v217, %v911
  %913 = vdwg.mxu0
  %914 = vmatpush.bf16.msra.mxu0 0
  %915 = vmatpush.bf16.msra.mxu0 0
  %916 = vmatpush.bf16.msra.mxu0 0
  %917 = vmatpush.bf16.msra.mxu0 0
  %918 = vmatpush.bf16.msra.mxu0 0
  %919 = vmatpush.bf16.msra.mxu0 0
  %920 = vmatpush.bf16.msra.mxu0 0
  %921 = vmatpush.bf16.msra.mxu0 %v876
  %922 = vmatmul.bf16.gmra.mxu0 %v884
  %v923 = vpop.f32.mrf.mxu0
  %v924 = vadd.f32 %v218, %v923
  %v925 = vpop.f32.mrf.mxu0
  %v926 = vadd.f32 %v218, %v925
  %927 = vdwg.mxu0
  %928 = vmatpush.bf16.msra.mxu0 0
  %929 = vmatpush.bf16.msra.mxu0 0
  %930 = vmatpush.bf16.msra.mxu0 0
  %931 = vmatpush.bf16.msra.mxu0 0
  %932 = vmatpush.bf16.msra.mxu0 0
  %933 = vmatpush.bf16.msra.mxu0 0
  %934 = vmatpush.bf16.msra.mxu0 0
  %935 = vmatpush.bf16.msra.mxu0 %v880
  %936 = vmatmul.bf16.gmra.mxu0 %v884
  %v937 = vpop.f32.mrf.mxu0
  %v938 = vadd.f32 %v219, %v937
  %v939 = vpop.f32.mrf.mxu0
  %v940 = vadd.f32 %v219, %v939
  %941 = vdwg.mxu0
  %944 = vrot.lane.b32.xlu0 %v896, 64
  %v945 = vpop.permute.xlu0 %944
  %946 = vrot.lane.b32.xlu0 %v898, 64
  %v947 = vpop.permute.xlu0 %946
  %952 = vrot.lane.b32.xlu0 %v910, 64
  %v953 = vpop.permute.xlu0 %952
  %954 = vrot.lane.b32.xlu0 %v912, 64
  %v955 = vpop.permute.xlu0 %954
  %960 = vrot.lane.b32.xlu0 %v924, 64
  %v961 = vpop.permute.xlu0 %960
  %962 = vrot.lane.b32.xlu0 %v926, 64
  %v963 = vpop.permute.xlu0 %962
  %968 = vrot.lane.b32.xlu0 %v938, 64
  %v969 = vpop.permute.xlu0 %968
  %970 = vrot.lane.b32.xlu0 %v940, 64
  %v971 = vpop.permute.xlu0 %970
  %v974 = vrot.slane %v910, 4
  %v975 = vsel %vm155, %v974, %v896
  %v976 = vrot.slane %v896, 4
  %v977 = vsel %vm155, %v910, %v976
  %v979 = vunpack.c.l.s4 1983009808
  %v980 = vunpack.c.0.s8 %v979
  %v981 = vperm.slane %v975, %v980
  %v983 = vunpack.c.l.s4 1983009808
  %v984 = vunpack.c.0.s8 %v983
  %v985 = vperm.slane %v977, %v984
  %v986 = vrot.slane %v953, 4
  %v987 = vsel %vm155, %v986, %v945
  %v988 = vrot.slane %v945, 4
  %v989 = vsel %vm155, %v953, %v988
  %v991 = vunpack.c.l.s4 1983009808
  %v992 = vunpack.c.0.s8 %v991
  %v993 = vperm.slane %v987, %v992
  %v995 = vunpack.c.l.s4 1983009808
  %v996 = vunpack.c.0.s8 %v995
  %v997 = vperm.slane %v989, %v996
  %v998 = vrot.slane %v938, 4
  %v999 = vsel %vm155, %v998, %v924
  %v1000 = vrot.slane %v924, 4
  %v1001 = vsel %vm155, %v938, %v1000
  %v1003 = vunpack.c.l.s4 1983009808
  %v1004 = vunpack.c.0.s8 %v1003
  %v1005 = vperm.slane %v999, %v1004
  %v1007 = vunpack.c.l.s4 1983009808
  %v1008 = vunpack.c.0.s8 %v1007
  %v1009 = vperm.slane %v1001, %v1008
  %v1010 = vrot.slane %v969, 4
  %v1011 = vsel %vm155, %v1010, %v961
  %v1012 = vrot.slane %v961, 4
  %v1013 = vsel %vm155, %v969, %v1012
  %v1015 = vunpack.c.l.s4 1983009808
  %v1016 = vunpack.c.0.s8 %v1015
  %v1017 = vperm.slane %v1011, %v1016
  %v1019 = vunpack.c.l.s4 1983009808
  %v1020 = vunpack.c.0.s8 %v1019
  %v1021 = vperm.slane %v1013, %v1020
  %v1022 = vrot.slane %v993, 4
  %v1023 = vsel %vm155, %v1022, %v981
  %v1024 = vrot.slane %v981, 4
  %v1025 = vsel %vm155, %v993, %v1024
  %v1027 = vunpack.c.l.s4 1934713408
  %v1028 = vunpack.c.0.s8 %v1027
  %v1029 = vperm.slane %v1023, %v1028
  %v1031 = vunpack.c.l.s4 1934713408
  %v1032 = vunpack.c.0.s8 %v1031
  %v1033 = vperm.slane %v1025, %v1032
  %v1034 = vrot.slane %v997, 4
  %v1035 = vsel %vm155, %v1034, %v985
  %v1036 = vrot.slane %v985, 4
  %v1037 = vsel %vm155, %v997, %v1036
  %v1039 = vunpack.c.l.s4 1934713408
  %v1040 = vunpack.c.0.s8 %v1039
  %v1041 = vperm.slane %v1035, %v1040
  %v1043 = vunpack.c.l.s4 1934713408
  %v1044 = vunpack.c.0.s8 %v1043
  %v1045 = vperm.slane %v1037, %v1044
  %v1046 = vrot.slane %v1017, 4
  %v1047 = vsel %vm155, %v1046, %v1005
  %v1048 = vrot.slane %v1005, 4
  %v1049 = vsel %vm155, %v1017, %v1048
  %v1051 = vunpack.c.l.s4 1934713408
  %v1052 = vunpack.c.0.s8 %v1051
  %v1053 = vperm.slane %v1047, %v1052
  %v1055 = vunpack.c.l.s4 1934713408
  %v1056 = vunpack.c.0.s8 %v1055
  %v1057 = vperm.slane %v1049, %v1056
  %v1058 = vrot.slane %v1021, 4
  %v1059 = vsel %vm155, %v1058, %v1009
  %v1060 = vrot.slane %v1009, 4
  %v1061 = vsel %vm155, %v1021, %v1060
  %v1063 = vunpack.c.l.s4 1934713408
  %v1064 = vunpack.c.0.s8 %v1063
  %v1065 = vperm.slane %v1059, %v1064
  %v1067 = vunpack.c.l.s4 1934713408
  %v1068 = vunpack.c.0.s8 %v1067
  %v1069 = vperm.slane %v1061, %v1068
  %v1070 = vrot.slane %v1053, 4
  %v1071 = vsel %vm155, %v1070, %v1029
  %v1072 = vrot.slane %v1029, 4
  %v1073 = vsel %vm155, %v1053, %v1072
  %v1074 = vrot.slane %v1057, 4
  %v1075 = vsel %vm155, %v1074, %v1033
  %v1076 = vrot.slane %v1033, 4
  %v1077 = vsel %vm155, %v1057, %v1076
  %v1078 = vrot.slane %v1065, 4
  %v1079 = vsel %vm155, %v1078, %v1041
  %v1080 = vrot.slane %v1041, 4
  %v1081 = vsel %vm155, %v1065, %v1080
  %v1082 = vrot.slane %v1069, 4
  %v1083 = vsel %vm155, %v1082, %v1045
  %v1084 = vrot.slane %v1045, 4
  %v1085 = vsel %vm155, %v1069, %v1084
  %v1086 = vrot.slane %v912, 4
  %v1087 = vsel %vm155, %v1086, %v898
  %v1088 = vrot.slane %v898, 4
  %v1089 = vsel %vm155, %v912, %v1088
  %v1091 = vunpack.c.l.s4 1983009808
  %v1092 = vunpack.c.0.s8 %v1091
  %v1093 = vperm.slane %v1087, %v1092
  %v1095 = vunpack.c.l.s4 1983009808
  %v1096 = vunpack.c.0.s8 %v1095
  %v1097 = vperm.slane %v1089, %v1096
  %v1098 = vrot.slane %v955, 4
  %v1099 = vsel %vm155, %v1098, %v947
  %v1100 = vrot.slane %v947, 4
  %v1101 = vsel %vm155, %v955, %v1100
  %v1103 = vunpack.c.l.s4 1983009808
  %v1104 = vunpack.c.0.s8 %v1103
  %v1105 = vperm.slane %v1099, %v1104
  %v1107 = vunpack.c.l.s4 1983009808
  %v1108 = vunpack.c.0.s8 %v1107
  %v1109 = vperm.slane %v1101, %v1108
  %v1110 = vrot.slane %v940, 4
  %v1111 = vsel %vm155, %v1110, %v926
  %v1112 = vrot.slane %v926, 4
  %v1113 = vsel %vm155, %v940, %v1112
  %v1115 = vunpack.c.l.s4 1983009808
  %v1116 = vunpack.c.0.s8 %v1115
  %v1117 = vperm.slane %v1111, %v1116
  %v1119 = vunpack.c.l.s4 1983009808
  %v1120 = vunpack.c.0.s8 %v1119
  %v1121 = vperm.slane %v1113, %v1120
  %v1122 = vrot.slane %v971, 4
  %v1123 = vsel %vm155, %v1122, %v963
  %v1124 = vrot.slane %v963, 4
  %v1125 = vsel %vm155, %v971, %v1124
  %v1127 = vunpack.c.l.s4 1983009808
  %v1128 = vunpack.c.0.s8 %v1127
  %v1129 = vperm.slane %v1123, %v1128
  %v1131 = vunpack.c.l.s4 1983009808
  %v1132 = vunpack.c.0.s8 %v1131
  %v1133 = vperm.slane %v1125, %v1132
  %v1134 = vrot.slane %v1105, 4
  %v1135 = vsel %vm155, %v1134, %v1093
  %v1136 = vrot.slane %v1093, 4
  %v1137 = vsel %vm155, %v1105, %v1136
  %v1139 = vunpack.c.l.s4 1934713408
  %v1140 = vunpack.c.0.s8 %v1139
  %v1141 = vperm.slane %v1135, %v1140
  %v1143 = vunpack.c.l.s4 1934713408
  %v1144 = vunpack.c.0.s8 %v1143
  %v1145 = vperm.slane %v1137, %v1144
  %v1146 = vrot.slane %v1109, 4
  %v1147 = vsel %vm155, %v1146, %v1097
  %v1148 = vrot.slane %v1097, 4
  %v1149 = vsel %vm155, %v1109, %v1148
  %v1151 = vunpack.c.l.s4 1934713408
  %v1152 = vunpack.c.0.s8 %v1151
  %v1153 = vperm.slane %v1147, %v1152
  %v1155 = vunpack.c.l.s4 1934713408
  %v1156 = vunpack.c.0.s8 %v1155
  %v1157 = vperm.slane %v1149, %v1156
  %v1158 = vrot.slane %v1129, 4
  %v1159 = vsel %vm155, %v1158, %v1117
  %v1160 = vrot.slane %v1117, 4
  %v1161 = vsel %vm155, %v1129, %v1160
  %v1163 = vunpack.c.l.s4 1934713408
  %v1164 = vunpack.c.0.s8 %v1163
  %v1165 = vperm.slane %v1159, %v1164
  %v1167 = vunpack.c.l.s4 1934713408
  %v1168 = vunpack.c.0.s8 %v1167
  %v1169 = vperm.slane %v1161, %v1168
  %v1170 = vrot.slane %v1133, 4
  %v1171 = vsel %vm155, %v1170, %v1121
  %v1172 = vrot.slane %v1121, 4
  %v1173 = vsel %vm155, %v1133, %v1172
  %v1175 = vunpack.c.l.s4 1934713408
  %v1176 = vunpack.c.0.s8 %v1175
  %v1177 = vperm.slane %v1171, %v1176
  %v1179 = vunpack.c.l.s4 1934713408
  %v1180 = vunpack.c.0.s8 %v1179
  %v1181 = vperm.slane %v1173, %v1180
  %v1182 = vrot.slane %v1165, 4
  %v1183 = vsel %vm155, %v1182, %v1141
  %v1184 = vrot.slane %v1141, 4
  %v1185 = vsel %vm155, %v1165, %v1184
  %v1186 = vrot.slane %v1169, 4
  %v1187 = vsel %vm155, %v1186, %v1145
  %v1188 = vrot.slane %v1145, 4
  %v1189 = vsel %vm155, %v1169, %v1188
  %v1190 = vrot.slane %v1177, 4
  %v1191 = vsel %vm155, %v1190, %v1153
  %v1192 = vrot.slane %v1153, 4
  %v1193 = vsel %vm155, %v1177, %v1192
  %v1194 = vrot.slane %v1181, 4
  %v1195 = vsel %vm155, %v1194, %v1157
  %v1196 = vrot.slane %v1157, 4
  %v1197 = vsel %vm155, %v1181, %v1196
  %vm1198 = vcmp.gt.f32.partialorder %v1071, 0.0
  %vm1199 = vcmp.gt.f32.partialorder %v1073, 0.0
  %vm1200 = vcmp.gt.f32.partialorder %v1075, 0.0
  %vm1201 = vcmp.gt.f32.partialorder %v1077, 0.0
  %vm1202 = vcmp.gt.f32.partialorder %v1079, 0.0
  %vm1203 = vcmp.gt.f32.partialorder %v1081, 0.0
  %vm1204 = vcmp.gt.f32.partialorder %v1083, 0.0
  %vm1205 = vcmp.gt.f32.partialorder %v1085, 0.0
  %vm1206 = vcmp.gt.f32.partialorder %v1183, 0.0
  %vm1207 = vcmp.gt.f32.partialorder %v1185, 0.0
  %vm1208 = vcmp.gt.f32.partialorder %v1187, 0.0
  %vm1209 = vcmp.gt.f32.partialorder %v1189, 0.0
  %vm1210 = vcmp.gt.f32.partialorder %v1191, 0.0
  %vm1211 = vcmp.gt.f32.partialorder %v1193, 0.0
  %vm1212 = vcmp.gt.f32.partialorder %v1195, 0.0
  %vm1213 = vcmp.gt.f32.partialorder %v1197, 0.0
  %v1214 = vmul.f32 %v1071, 0.2
  %v1215 = vmul.f32 %v1073, 0.2
  %v1216 = vmul.f32 %v1075, 0.2
  %v1217 = vmul.f32 %v1077, 0.2
  %v1218 = vmul.f32 %v1079, 0.2
  %v1219 = vmul.f32 %v1081, 0.2
  %v1220 = vmul.f32 %v1083, 0.2
  %v1221 = vmul.f32 %v1085, 0.2
  %v1222 = vmul.f32 %v1183, 0.2
  %v1223 = vmul.f32 %v1185, 0.2
  %v1224 = vmul.f32 %v1187, 0.2
  %v1225 = vmul.f32 %v1189, 0.2
  %v1226 = vmul.f32 %v1191, 0.2
  %v1227 = vmul.f32 %v1193, 0.2
  %v1228 = vmul.f32 %v1195, 0.2
  %v1229 = vmul.f32 %v1197, 0.2
  %v1230 = vsel %vm1198, %v1071, %v1214
  %v1231 = vsel %vm1199, %v1073, %v1215
  %v1232 = vsel %vm1200, %v1075, %v1216
  %v1233 = vsel %vm1201, %v1077, %v1217
  %v1234 = vsel %vm1202, %v1079, %v1218
  %v1235 = vsel %vm1203, %v1081, %v1219
  %v1236 = vsel %vm1204, %v1083, %v1220
  %v1237 = vsel %vm1205, %v1085, %v1221
  %v1238 = vsel %vm1206, %v1183, %v1222
  %v1239 = vsel %vm1207, %v1185, %v1223
  %v1240 = vsel %vm1208, %v1187, %v1224
  %v1241 = vsel %vm1209, %v1189, %v1225
  %v1242 = vsel %vm1210, %v1191, %v1226
  %v1243 = vsel %vm1211, %v1193, %v1227
  %v1244 = vsel %vm1212, %v1195, %v1228
  %v1245 = vsel %vm1213, %v1197, %v1229
  %v1246 = vsel %vm142, %v1230, -inf
  %v1247 = vrot.slane %v1246, 4
  %v1248 = vmax.f32 %v1246, %v1247
  %v1249 = vrot.slane %v1248, 2
  %v1250 = vmax.f32 %v1248, %v1249
  %v1251 = vrot.slane %v1250, 1
  %v1252 = vmax.f32 %v1250, %v1251
  %v1253 = vsel %vm142, %v1231, -inf
  %v1254 = vrot.slane %v1253, 4
  %v1255 = vmax.f32 %v1253, %v1254
  %v1256 = vrot.slane %v1255, 2
  %v1257 = vmax.f32 %v1255, %v1256
  %v1258 = vrot.slane %v1257, 1
  %v1259 = vmax.f32 %v1257, %v1258
  %v1260 = vsel %vm142, %v1232, -inf
  %v1261 = vrot.slane %v1260, 4
  %v1262 = vmax.f32 %v1260, %v1261
  %v1263 = vrot.slane %v1262, 2
  %v1264 = vmax.f32 %v1262, %v1263
  %v1265 = vrot.slane %v1264, 1
  %v1266 = vmax.f32 %v1264, %v1265
  %v1267 = vsel %vm142, %v1233, -inf
  %v1268 = vrot.slane %v1267, 4
  %v1269 = vmax.f32 %v1267, %v1268
  %v1270 = vrot.slane %v1269, 2
  %v1271 = vmax.f32 %v1269, %v1270
  %v1272 = vrot.slane %v1271, 1
  %v1273 = vmax.f32 %v1271, %v1272
  %v1274 = vsel %vm142, %v1234, -inf
  %v1275 = vrot.slane %v1274, 4
  %v1276 = vmax.f32 %v1274, %v1275
  %v1277 = vrot.slane %v1276, 2
  %v1278 = vmax.f32 %v1276, %v1277
  %v1279 = vrot.slane %v1278, 1
  %v1280 = vmax.f32 %v1278, %v1279
  %v1281 = vsel %vm142, %v1235, -inf
  %v1282 = vrot.slane %v1281, 4
  %v1283 = vmax.f32 %v1281, %v1282
  %v1284 = vrot.slane %v1283, 2
  %v1285 = vmax.f32 %v1283, %v1284
  %v1286 = vrot.slane %v1285, 1
  %v1287 = vmax.f32 %v1285, %v1286
  %v1288 = vsel %vm142, %v1236, -inf
  %v1289 = vrot.slane %v1288, 4
  %v1290 = vmax.f32 %v1288, %v1289
  %v1291 = vrot.slane %v1290, 2
  %v1292 = vmax.f32 %v1290, %v1291
  %v1293 = vrot.slane %v1292, 1
  %v1294 = vmax.f32 %v1292, %v1293
  %v1295 = vsel %vm142, %v1237, -inf
  %v1296 = vrot.slane %v1295, 4
  %v1297 = vmax.f32 %v1295, %v1296
  %v1298 = vrot.slane %v1297, 2
  %v1299 = vmax.f32 %v1297, %v1298
  %v1300 = vrot.slane %v1299, 1
  %v1301 = vmax.f32 %v1299, %v1300
  %v1302 = vsel %vm142, %v1238, -inf
  %v1303 = vrot.slane %v1302, 4
  %v1304 = vmax.f32 %v1302, %v1303
  %v1305 = vrot.slane %v1304, 2
  %v1306 = vmax.f32 %v1304, %v1305
  %v1307 = vrot.slane %v1306, 1
  %v1308 = vmax.f32 %v1306, %v1307
  %v1309 = vsel %vm142, %v1239, -inf
  %v1310 = vrot.slane %v1309, 4
  %v1311 = vmax.f32 %v1309, %v1310
  %v1312 = vrot.slane %v1311, 2
  %v1313 = vmax.f32 %v1311, %v1312
  %v1314 = vrot.slane %v1313, 1
  %v1315 = vmax.f32 %v1313, %v1314
  %v1316 = vsel %vm142, %v1240, -inf
  %v1317 = vrot.slane %v1316, 4
  %v1318 = vmax.f32 %v1316, %v1317
  %v1319 = vrot.slane %v1318, 2
  %v1320 = vmax.f32 %v1318, %v1319
  %v1321 = vrot.slane %v1320, 1
  %v1322 = vmax.f32 %v1320, %v1321
  %v1323 = vsel %vm142, %v1241, -inf
  %v1324 = vrot.slane %v1323, 4
  %v1325 = vmax.f32 %v1323, %v1324
  %v1326 = vrot.slane %v1325, 2
  %v1327 = vmax.f32 %v1325, %v1326
  %v1328 = vrot.slane %v1327, 1
  %v1329 = vmax.f32 %v1327, %v1328
  %v1330 = vsel %vm142, %v1242, -inf
  %v1331 = vrot.slane %v1330, 4
  %v1332 = vmax.f32 %v1330, %v1331
  %v1333 = vrot.slane %v1332, 2
  %v1334 = vmax.f32 %v1332, %v1333
  %v1335 = vrot.slane %v1334, 1
  %v1336 = vmax.f32 %v1334, %v1335
  %v1337 = vsel %vm142, %v1243, -inf
  %v1338 = vrot.slane %v1337, 4
  %v1339 = vmax.f32 %v1337, %v1338
  %v1340 = vrot.slane %v1339, 2
  %v1341 = vmax.f32 %v1339, %v1340
  %v1342 = vrot.slane %v1341, 1
  %v1343 = vmax.f32 %v1341, %v1342
  %v1344 = vsel %vm142, %v1244, -inf
  %v1345 = vrot.slane %v1344, 4
  %v1346 = vmax.f32 %v1344, %v1345
  %v1347 = vrot.slane %v1346, 2
  %v1348 = vmax.f32 %v1346, %v1347
  %v1349 = vrot.slane %v1348, 1
  %v1350 = vmax.f32 %v1348, %v1349
  %v1351 = vsel %vm142, %v1245, -inf
  %v1352 = vrot.slane %v1351, 4
  %v1353 = vmax.f32 %v1351, %v1352
  %v1354 = vrot.slane %v1353, 2
  %v1355 = vmax.f32 %v1353, %v1354
  %v1356 = vrot.slane %v1355, 1
  %v1357 = vmax.f32 %v1355, %v1356
  %vm1374 = vcmask 1041409
  %v1375 = vsel %vm1374, %v1259, %v1252
  %vm1376 = vcmask 1042434
  %v1377 = vsel %vm1376, %v1266, %v1375
  %vm1378 = vcmask 1043459
  %v1379 = vsel %vm1378, %v1273, %v1377
  %vm1380 = vcmask 1044484
  %v1381 = vsel %vm1380, %v1280, %v1379
  %vm1382 = vcmask 1045509
  %v1383 = vsel %vm1382, %v1287, %v1381
  %vm1384 = vcmask 1046534
  %v1385 = vsel %vm1384, %v1294, %v1383
  %vm1386 = vcmask 1047559
  %v1387 = vsel %vm1386, %v1301, %v1385
  %v1388 = vsel %vm1374, %v1315, %v1308
  %v1389 = vsel %vm1376, %v1322, %v1388
  %v1390 = vsel %vm1378, %v1329, %v1389
  %v1391 = vsel %vm1380, %v1336, %v1390
  %v1392 = vsel %vm1382, %v1343, %v1391
  %v1393 = vsel %vm1384, %v1350, %v1392
  %v1394 = vsel %vm1386, %v1357, %v1393
  %1397 = vst.msk [vmem:[%s5] sm:$0xff] %vm142, %v1387
  %1398 = vst.msk [vmem:[%s5 + $0x8] sm:$0xff] %vm142, %v1394
  // Predicated region
  $region22: #{_stage_pre.7} parent=0 // pred_check
    _
  $region23: #{_stage_pre.7} parent=0 // pred_check_branch
    %1400 = sbr.rel (0) target = $region25
  $region24: #{_stage_pre.7} parent=0 // pred_region
    _
  $region25: #{_stage_pre.7} parent=0 // pred_fallthru
    _
  // Predicated region
  $region26: #{_stage_pre.7} parent=0 // pred_check
    _
  $region27: #{_stage_pre.7} parent=0 // pred_check_branch
    %1402 = sbr.rel (0) target = $region29
  $region28: #{_stage_pre.7} parent=0 // pred_region
    _
  $region29: #{_stage_pre.7} parent=0 // pred_fallthru
    _

// kernel: _stage_pre.9
$region0: #{_stage_pre.9}
  #allocation0 [shape = 'u32[]', space=smem, size = 0x4, offset = 0x4, fixed_abs, tag = 'smem constant byte address 0x4 - core index']
  #allocation1 [shape = 'u32[72,128]{1,0:T(1,128)}', space=vmem, size = 0x9000, scoped, tag = 'internal scratch']
  %s0 = inlined_call_operand.vmem [shape: f32[16,64], index: 0, kind: input, shape index: {}]
  %s1 = inlined_call_operand.vmem [shape: bf16[16,8,64], index: 1, kind: input, shape index: {}]
  %s2 = inlined_call_operand.vmem [shape: f32[16,16], index: 2, kind: input, shape index: {}]
  %s3 = inlined_call_operand.vmem [shape: f32[16,16], index: 3, kind: input, shape index: {}]
  %s4 = inlined_call_operand.vmem [shape: f32[16,16], index: 4, kind: input, shape index: {}]
  %s5 = inlined_call_operand.vmem [shape: f32[16,64], index: 5, kind: output, shape index: {}]
  %s6 = sld [smem:[#allocation0]]
  $region30: #{_stage_pre.9} parent=0
    _
  %s8 = ssub.s32 1, %s6
  %s9 = scalar_select 0, %s8, %s6
  // Predicated region
  $region2: #{_stage_pre.9} parent=0 // pred_check
    _
  $region3: #{_stage_pre.9} parent=0 // pred_check_branch
    %11 = sbr.rel (0) target = $region5
  $region4: #{_stage_pre.9} parent=0 // pred_region
    _
  $region5: #{_stage_pre.9} parent=0 // pred_fallthru
    _
  // Predicated region
  $region6: #{_stage_pre.9} parent=0 // pred_check
    _
  $region7: #{_stage_pre.9} parent=0 // pred_check_branch
    %13 = sbr.rel (0) target = $region9
  $region8: #{_stage_pre.9} parent=0 // pred_region
    _
  $region9: #{_stage_pre.9} parent=0 // pred_fallthru
    _
  // Predicated region
  $region10: #{_stage_pre.9} parent=0 // pred_check
    _
  $region11: #{_stage_pre.9} parent=0 // pred_check_branch
    %15 = sbr.rel (0) target = $region13
  $region12: #{_stage_pre.9} parent=0 // pred_region
    _
  $region13: #{_stage_pre.9} parent=0 // pred_fallthru
    _
  // Predicated region
  $region14: #{_stage_pre.9} parent=0 // pred_check
    _
  $region15: #{_stage_pre.9} parent=0 // pred_check_branch
    %17 = sbr.rel (0) target = $region17
  $region16: #{_stage_pre.9} parent=0 // pred_region
    _
  $region17: #{_stage_pre.9} parent=0 // pred_fallthru
    _
  // Predicated region
  $region18: #{_stage_pre.9} parent=0 // pred_check
    _
  $region19: #{_stage_pre.9} parent=0 // pred_check_branch
    %19 = sbr.rel (0) target = $region21
  $region20: #{_stage_pre.9} parent=0 // pred_region
    _
  $region21: #{_stage_pre.9} parent=0 // pred_fallthru
    _
  %v21 = vld [vmem:[%s2] sm:$0xff]
  %v22 = vld [vmem:[%s2 + $0x8] sm:$0xff]
  %v23 = vld [vmem:[%s0] sm:$0xff]
  %v24 = vld [vmem:[%s0 + $0x8] sm:$0xff]
  %v25 = vpack.c.bf16 %v22, %v21
  %v26 = vpack.c.bf16 %v24, %v23
  %vm27 = vcmask 130048
  %v29 = vsel %vm27, %v25, 0
  %31 = vmatpush.bf16.msra.mxu0 0
  %32 = vmatpush.bf16.msra.mxu0 0
  %33 = vmatpush.bf16.msra.mxu0 0
  %34 = vmatpush.bf16.msra.mxu0 0
  %35 = vmatpush.bf16.msra.mxu0 0
  %36 = vmatpush.bf16.msra.mxu0 0
  %37 = vmatpush.bf16.msra.mxu0 0
  %38 = vmatpush.bf16.msra.mxu0 %v26
  %39 = vmatmul.bf16.gmra.mxu0 %v29
  %v40 = vpop.f32.mrf.mxu0
  %v41 = vadd.f32 0.0, %v40
  %v42 = vpop.f32.mrf.mxu0
  %v43 = vadd.f32 0.0, %v42
  %44 = vdwg.mxu0
  %v45 = vld [vmem:[%s3] sm:$0xff]
  %v46 = vld [vmem:[%s3 + $0x8] sm:$0xff]
  %v47 = vld [vmem:[%s1] sm:$0xf]
  %v48 = vld [vmem:[%s1 + $0x4] sm:$0xf]
  %v49 = vld [vmem:[%s1 + $0x8] sm:$0xf]
  %v50 = vld [vmem:[%s1 + $0xc] sm:$0xf]
  %v51 = vld [vmem:[%s1 + $0x10] sm:$0xf]
  %v52 = vld [vmem:[%s1 + $0x14] sm:$0xf]
  %v53 = vld [vmem:[%s1 + $0x18] sm:$0xf]
  %v54 = vld [vmem:[%s1 + $0x1c] sm:$0xf]
  %v55 = vld [vmem:[%s1 + $0x20] sm:$0xf]
  %v56 = vld [vmem:[%s1 + $0x24] sm:$0xf]
  %v57 = vld [vmem:[%s1 + $0x28] sm:$0xf]
  %v58 = vld [vmem:[%s1 + $0x2c] sm:$0xf]
  %v59 = vld [vmem:[%s1 + $0x30] sm:$0xf]
  %v60 = vld [vmem:[%s1 + $0x34] sm:$0xf]
  %v61 = vld [vmem:[%s1 + $0x38] sm:$0xf]
  %v62 = vld [vmem:[%s1 + $0x3c] sm:$0xf]
  %v63 = vpack.c.bf16 %v46, %v45
  %v64 = vrot.slane %v51, 4
  %vm65 = vcmask 1047556
  %v66 = vsel %vm65, %v64, %v47
  %v68 = vunpack.c.l.s4 1983009808
  %v69 = vunpack.c.0.s8 %v68
  %v70 = vperm.slane %v66, %v69
  %v71 = vrot.slane %v53, 4
  %v72 = vsel %vm65, %v71, %v49
  %v74 = vunpack.c.l.s4 1983009808
  %v75 = vunpack.c.0.s8 %v74
  %v76 = vperm.slane %v72, %v75
  %v77 = vrot.slane %v76, 4
  %v78 = vsel %vm65, %v77, %v70
  %v79 = vrot.slane %v70, 4
  %v80 = vsel %vm65, %v76, %v79
  %v82 = vunpack.c.l.s4 1934713408
  %v83 = vunpack.c.0.s8 %v82
  %v84 = vperm.slane %v78, %v83
  %v86 = vunpack.c.l.s4 1934713408
  %v87 = vunpack.c.0.s8 %v86
  %v88 = vperm.slane %v80, %v87
  %v89 = vrot.slane %v84, 4
  %v90 = vsel %vm65, 0, %v89
  %v91 = vrot.slane %v88, 4
  %v92 = vsel %vm65, 0, %v91
  %v93 = vrot.slane %v52, 4
  %v94 = vsel %vm65, %v93, %v48
  %v96 = vunpack.c.l.s4 1983009808
  %v97 = vunpack.c.0.s8 %v96
  %v98 = vperm.slane %v94, %v97
  %v99 = vrot.slane %v54, 4
  %v100 = vsel %vm65, %v99, %v50
  %v102 = vunpack.c.l.s4 1983009808
  %v103 = vunpack.c.0.s8 %v102
  %v104 = vperm.slane %v100, %v103
  %v105 = vrot.slane %v104, 4
  %v106 = vsel %vm65, %v105, %v98
  %v107 = vrot.slane %v98, 4
  %v108 = vsel %vm65, %v104, %v107
  %v110 = vunpack.c.l.s4 1934713408
  %v111 = vunpack.c.0.s8 %v110
  %v112 = vperm.slane %v106, %v111
  %v114 = vunpack.c.l.s4 1934713408
  %v115 = vunpack.c.0.s8 %v114
  %v116 = vperm.slane %v108, %v115
  %v117 = vrot.slane %v112, 4
  %v118 = vsel %vm65, 0, %v117
  %v119 = vrot.slane %v116, 4
  %v120 = vsel %vm65, 0, %v119
  %v121 = vrot.slane %v59, 4
  %v122 = vsel %vm65, %v121, %v55
  %v124 = vunpack.c.l.s4 1983009808
  %v125 = vunpack.c.0.s8 %v124
  %v126 = vperm.slane %v122, %v125
  %v127 = vrot.slane %v61, 4
  %v128 = vsel %vm65, %v127, %v57
  %v130 = vunpack.c.l.s4 1983009808
  %v131 = vunpack.c.0.s8 %v130
  %v132 = vperm.slane %v128, %v131
  %v133 = vrot.slane %v132, 4
  %v134 = vsel %vm65, %v133, %v126
  %v135 = vrot.slane %v126, 4
  %v136 = vsel %vm65, %v132, %v135
  %v138 = vunpack.c.l.s4 1934713408
  %v139 = vunpack.c.0.s8 %v138
  %v140 = vperm.slane %v134, %v139
  %v142 = vunpack.c.l.s4 1934713408
  %v143 = vunpack.c.0.s8 %v142
  %v144 = vperm.slane %v136, %v143
  %v145 = vrot.slane %v140, 4
  %v146 = vsel %vm65, 0, %v145
  %v147 = vrot.slane %v144, 4
  %v148 = vsel %vm65, 0, %v147
  %v149 = vrot.slane %v60, 4
  %v150 = vsel %vm65, %v149, %v56
  %v152 = vunpack.c.l.s4 1983009808
  %v153 = vunpack.c.0.s8 %v152
  %v154 = vperm.slane %v150, %v153
  %v155 = vrot.slane %v62, 4
  %v156 = vsel %vm65, %v155, %v58
  %v158 = vunpack.c.l.s4 1983009808
  %v159 = vunpack.c.0.s8 %v158
  %v160 = vperm.slane %v156, %v159
  %v161 = vrot.slane %v160, 4
  %v162 = vsel %vm65, %v161, %v154
  %v163 = vrot.slane %v154, 4
  %v164 = vsel %vm65, %v160, %v163
  %v166 = vunpack.c.l.s4 1934713408
  %v167 = vunpack.c.0.s8 %v166
  %v168 = vperm.slane %v162, %v167
  %v170 = vunpack.c.l.s4 1934713408
  %v171 = vunpack.c.0.s8 %v170
  %v172 = vperm.slane %v164, %v171
  %v173 = vrot.slane %v168, 4
  %v174 = vsel %vm65, 0, %v173
  %v175 = vrot.slane %v172, 4
  %v176 = vsel %vm65, 0, %v175
  %v179 = vpack.i.b16 %v112, %v84
  %v180 = vshrl.u32 %v84, 16
  %v181 = vshrl.u32 %v112, 16
  %v182 = vpack.i.b16 %v181, %v180
  %v185 = vpack.i.b16 %v118, %v90
  %v186 = vshrl.u32 %v90, 16
  %v187 = vshrl.u32 %v118, 16
  %v188 = vpack.i.b16 %v187, %v186
  %v191 = vpack.i.b16 %v116, %v88
  %v192 = vshrl.u32 %v88, 16
  %v193 = vshrl.u32 %v116, 16
  %v194 = vpack.i.b16 %v193, %v192
  %v197 = vpack.i.b16 %v120, %v92
  %v198 = vshrl.u32 %v92, 16
  %v199 = vshrl.u32 %v120, 16
  %v200 = vpack.i.b16 %v199, %v198
  %v203 = vpack.i.b16 %v168, %v140
  %v204 = vshrl.u32 %v140, 16
  %v205 = vshrl.u32 %v168, 16
  %v206 = vpack.i.b16 %v205, %v204
  %v209 = vpack.i.b16 %v174, %v146
  %v210 = vshrl.u32 %v146, 16
  %v211 = vshrl.u32 %v174, 16
  %v212 = vpack.i.b16 %v211, %v210
  %v215 = vpack.i.b16 %v172, %v144
  %v216 = vshrl.u32 %v144, 16
  %v217 = vshrl.u32 %v172, 16
  %v218 = vpack.i.b16 %v217, %v216
  %v221 = vpack.i.b16 %v176, %v148
  %v222 = vshrl.u32 %v148, 16
  %v223 = vshrl.u32 %v176, 16
  %v224 = vpack.i.b16 %v223, %v222
  %v225 = vunpack.c.l.b16 %v179
  %v226 = vunpack.c.l.b16 %v203
  %v227 = vpack.c.b16 %v226, %v225
  %v228 = vunpack.c.l.b16 %v182
  %v229 = vunpack.c.l.b16 %v206
  %v230 = vpack.c.b16 %v229, %v228
  %231 = vrot.lane.b32.xlu0 %v230, 64
  %v232 = vpop.permute.xlu0 %231
  %v233 = vunpack.c.l.b16 %v185
  %v234 = vunpack.c.l.b16 %v209
  %v235 = vpack.c.b16 %v234, %v233
  %v236 = vunpack.c.l.b16 %v188
  %v237 = vunpack.c.l.b16 %v212
  %v238 = vpack.c.b16 %v237, %v236
  %239 = vrot.lane.b32.xlu0 %v238, 64
  %v240 = vpop.permute.xlu0 %239
  %v241 = vunpack.c.l.b16 %v191
  %v242 = vunpack.c.l.b16 %v215
  %v243 = vpack.c.b16 %v242, %v241
  %v244 = vunpack.c.l.b16 %v194
  %v245 = vunpack.c.l.b16 %v218
  %v246 = vpack.c.b16 %v245, %v244
  %247 = vrot.lane.b32.xlu0 %v246, 64
  %v248 = vpop.permute.xlu0 %247
  %v249 = vunpack.c.l.b16 %v197
  %v250 = vunpack.c.l.b16 %v221
  %v251 = vpack.c.b16 %v250, %v249
  %v252 = vunpack.c.l.b16 %v200
  %v253 = vunpack.c.l.b16 %v224
  %v254 = vpack.c.b16 %v253, %v252
  %255 = vrot.lane.b32.xlu0 %v254, 64
  %v256 = vpop.permute.xlu0 %255
  %vm257 = vcmask 523264
  %v260 = vsel %vm257, %v227, %v232
  %v264 = vsel %vm257, %v235, %v240
  %v268 = vsel %vm257, %v243, %v248
  %v272 = vsel %vm257, %v251, %v256
  %vm274 = vcmask 1047556
  %v275 = vsel %vm274, 0.0, 0.0
  %v276 = vsel %vm274, 0.0, 0.0
  %v278 = vunpack.c.l.s4 1983009808
  %v279 = vunpack.c.0.s8 %v278
  %v280 = vperm.slane %v275, %v279
  %v282 = vunpack.c.l.s4 1983009808
  %v283 = vunpack.c.0.s8 %v282
  %v284 = vperm.slane %v276, %v283
  %v285 = vrot.slane %v280, 4
  %v286 = vsel %vm274, %v285, %v280
  %v287 = vsel %vm274, %v280, %v285
  %v289 = vunpack.c.l.s4 1934713408
  %v290 = vunpack.c.0.s8 %v289
  %v291 = vperm.slane %v286, %v290
  %v293 = vunpack.c.l.s4 1934713408
  %v294 = vunpack.c.0.s8 %v293
  %v295 = vperm.slane %v287, %v294
  %v296 = vrot.slane %v284, 4
  %v297 = vsel %vm274, %v296, %v284
  %v298 = vsel %vm274, %v284, %v296
  %v300 = vunpack.c.l.s4 1934713408
  %v301 = vunpack.c.0.s8 %v300
  %v302 = vperm.slane %v297, %v301
  %v304 = vunpack.c.l.s4 1934713408
  %v305 = vunpack.c.0.s8 %v304
  %v306 = vperm.slane %v298, %v305
  %v307 = vrot.slane %v291, 4
  %v308 = vsel %vm274, %v307, %v291
  %v309 = vsel %vm274, %v291, %v307
  %v310 = vrot.slane %v295, 4
  %v311 = vsel %vm274, %v310, %v295
  %v312 = vsel %vm274, %v295, %v310
  %v313 = vrot.slane %v302, 4
  %v314 = vsel %vm274, %v313, %v302
  %v315 = vsel %vm274, %v302, %v313
  %v316 = vrot.slane %v306, 4
  %v317 = vsel %vm274, %v316, %v306
  %v318 = vsel %vm274, %v306, %v316
  %320 = vrot.lane.b32.xlu0 %v309, 64
  %v321 = vpop.permute.xlu0 %320
  %324 = vrot.lane.b32.xlu0 %v312, 64
  %v325 = vpop.permute.xlu0 %324
  %328 = vrot.lane.b32.xlu0 %v315, 64
  %v329 = vpop.permute.xlu0 %328
  %332 = vrot.lane.b32.xlu0 %v318, 64
  %v333 = vpop.permute.xlu0 %332
  %v335 = vsel %vm257, %v308, %v321
  %v336 = vsel %vm257, %v311, %v325
  %v337 = vsel %vm257, %v314, %v329
  %v338 = vsel %vm257, %v317, %v333
  %v340 = vsel %vm27, %v63, 0
  %342 = vmatpush.bf16.msra.mxu0 0
  %343 = vmatpush.bf16.msra.mxu0 0
  %344 = vmatpush.bf16.msra.mxu0 0
  %345 = vmatpush.bf16.msra.mxu0 0
  %346 = vmatpush.bf16.msra.mxu0 0
  %347 = vmatpush.bf16.msra.mxu0 0
  %348 = vmatpush.bf16.msra.mxu0 0
  %349 = vmatpush.bf16.msra.mxu0 %v260
  %350 = vmatmul.bf16.gmra.mxu0 %v340
  %v351 = vpop.f32.mrf.mxu0
  %v352 = vadd.f32 %v335, %v351
  %v353 = vpop.f32.mrf.mxu0
  %v354 = vadd.f32 %v335, %v353
  %355 = vdwg.mxu0
  %356 = vmatpush.bf16.msra.mxu0 0
  %357 = vmatpush.bf16.msra.mxu0 0
  %358 = vmatpush.bf16.msra.mxu0 0
  %359 = vmatpush.bf16.msra.mxu0 0
  %360 = vmatpush.bf16.msra.mxu0 0
  %361 = vmatpush.bf16.msra.mxu0 0
  %362 = vmatpush.bf16.msra.mxu0 0
  %363 = vmatpush.bf16.msra.mxu0 %v264
  %364 = vmatmul.bf16.gmra.mxu0 %v340
  %v365 = vpop.f32.mrf.mxu0
  %v366 = vadd.f32 %v336, %v365
  %v367 = vpop.f32.mrf.mxu0
  %v368 = vadd.f32 %v336, %v367
  %369 = vdwg.mxu0
  %370 = vmatpush.bf16.msra.mxu0 0
  %371 = vmatpush.bf16.msra.mxu0 0
  %372 = vmatpush.bf16.msra.mxu0 0
  %373 = vmatpush.bf16.msra.mxu0 0
  %374 = vmatpush.bf16.msra.mxu0 0
  %375 = vmatpush.bf16.msra.mxu0 0
  %376 = vmatpush.bf16.msra.mxu0 0
  %377 = vmatpush.bf16.msra.mxu0 %v268
  %378 = vmatmul.bf16.gmra.mxu0 %v340
  %v379 = vpop.f32.mrf.mxu0
  %v380 = vadd.f32 %v337, %v379
  %v381 = vpop.f32.mrf.mxu0
  %v382 = vadd.f32 %v337, %v381
  %383 = vdwg.mxu0
  %384 = vmatpush.bf16.msra.mxu0 0
  %385 = vmatpush.bf16.msra.mxu0 0
  %386 = vmatpush.bf16.msra.mxu0 0
  %387 = vmatpush.bf16.msra.mxu0 0
  %388 = vmatpush.bf16.msra.mxu0 0
  %389 = vmatpush.bf16.msra.mxu0 0
  %390 = vmatpush.bf16.msra.mxu0 0
  %391 = vmatpush.bf16.msra.mxu0 %v272
  %392 = vmatmul.bf16.gmra.mxu0 %v340
  %v393 = vpop.f32.mrf.mxu0
  %v394 = vadd.f32 %v338, %v393
  %v395 = vpop.f32.mrf.mxu0
  %v396 = vadd.f32 %v338, %v395
  %397 = vdwg.mxu0
  %400 = vrot.lane.b32.xlu0 %v352, 64
  %v401 = vpop.permute.xlu0 %400
  %402 = vrot.lane.b32.xlu0 %v354, 64
  %v403 = vpop.permute.xlu0 %402
  %408 = vrot.lane.b32.xlu0 %v366, 64
  %v409 = vpop.permute.xlu0 %408
  %410 = vrot.lane.b32.xlu0 %v368, 64
  %v411 = vpop.permute.xlu0 %410
  %416 = vrot.lane.b32.xlu0 %v380, 64
  %v417 = vpop.permute.xlu0 %416
  %418 = vrot.lane.b32.xlu0 %v382, 64
  %v419 = vpop.permute.xlu0 %418
  %424 = vrot.lane.b32.xlu0 %v394, 64
  %v425 = vpop.permute.xlu0 %424
  %426 = vrot.lane.b32.xlu0 %v396, 64
  %v427 = vpop.permute.xlu0 %426
  %v430 = vrot.slane %v366, 4
  %v431 = vsel %vm274, %v430, %v352
  %v432 = vrot.slane %v352, 4
  %v433 = vsel %vm274, %v366, %v432
  %v435 = vunpack.c.l.s4 1983009808
  %v436 = vunpack.c.0.s8 %v435
  %v437 = vperm.slane %v431, %v436
  %v439 = vunpack.c.l.s4 1983009808
  %v440 = vunpack.c.0.s8 %v439
  %v441 = vperm.slane %v433, %v440
  %v442 = vrot.slane %v409, 4
  %v443 = vsel %vm274, %v442, %v401
  %v444 = vrot.slane %v401, 4
  %v445 = vsel %vm274, %v409, %v444
  %v447 = vunpack.c.l.s4 1983009808
  %v448 = vunpack.c.0.s8 %v447
  %v449 = vperm.slane %v443, %v448
  %v451 = vunpack.c.l.s4 1983009808
  %v452 = vunpack.c.0.s8 %v451
  %v453 = vperm.slane %v445, %v452
  %v454 = vrot.slane %v394, 4
  %v455 = vsel %vm274, %v454, %v380
  %v456 = vrot.slane %v380, 4
  %v457 = vsel %vm274, %v394, %v456
  %v459 = vunpack.c.l.s4 1983009808
  %v460 = vunpack.c.0.s8 %v459
  %v461 = vperm.slane %v455, %v460
  %v463 = vunpack.c.l.s4 1983009808
  %v464 = vunpack.c.0.s8 %v463
  %v465 = vperm.slane %v457, %v464
  %v466 = vrot.slane %v425, 4
  %v467 = vsel %vm274, %v466, %v417
  %v468 = vrot.slane %v417, 4
  %v469 = vsel %vm274, %v425, %v468
  %v471 = vunpack.c.l.s4 1983009808
  %v472 = vunpack.c.0.s8 %v471
  %v473 = vperm.slane %v467, %v472
  %v475 = vunpack.c.l.s4 1983009808
  %v476 = vunpack.c.0.s8 %v475
  %v477 = vperm.slane %v469, %v476
  %v478 = vrot.slane %v449, 4
  %v479 = vsel %vm274, %v478, %v437
  %v480 = vrot.slane %v437, 4
  %v481 = vsel %vm274, %v449, %v480
  %v483 = vunpack.c.l.s4 1934713408
  %v484 = vunpack.c.0.s8 %v483
  %v485 = vperm.slane %v479, %v484
  %v487 = vunpack.c.l.s4 1934713408
  %v488 = vunpack.c.0.s8 %v487
  %v489 = vperm.slane %v481, %v488
  %v490 = vrot.slane %v453, 4
  %v491 = vsel %vm274, %v490, %v441
  %v492 = vrot.slane %v441, 4
  %v493 = vsel %vm274, %v453, %v492
  %v495 = vunpack.c.l.s4 1934713408
  %v496 = vunpack.c.0.s8 %v495
  %v497 = vperm.slane %v491, %v496
  %v499 = vunpack.c.l.s4 1934713408
  %v500 = vunpack.c.0.s8 %v499
  %v501 = vperm.slane %v493, %v500
  %v502 = vrot.slane %v473, 4
  %v503 = vsel %vm274, %v502, %v461
  %v504 = vrot.slane %v461, 4
  %v505 = vsel %vm274, %v473, %v504
  %v507 = vunpack.c.l.s4 1934713408
  %v508 = vunpack.c.0.s8 %v507
  %v509 = vperm.slane %v503, %v508
  %v511 = vunpack.c.l.s4 1934713408
  %v512 = vunpack.c.0.s8 %v511
  %v513 = vperm.slane %v505, %v512
  %v514 = vrot.slane %v477, 4
  %v515 = vsel %vm274, %v514, %v465
  %v516 = vrot.slane %v465, 4
  %v517 = vsel %vm274, %v477, %v516
  %v519 = vunpack.c.l.s4 1934713408
  %v520 = vunpack.c.0.s8 %v519
  %v521 = vperm.slane %v515, %v520
  %v523 = vunpack.c.l.s4 1934713408
  %v524 = vunpack.c.0.s8 %v523
  %v525 = vperm.slane %v517, %v524
  %v526 = vrot.slane %v509, 4
  %v527 = vsel %vm274, %v526, %v485
  %v528 = vrot.slane %v485, 4
  %v529 = vsel %vm274, %v509, %v528
  %v530 = vrot.slane %v513, 4
  %v531 = vsel %vm274, %v530, %v489
  %v532 = vrot.slane %v489, 4
  %v533 = vsel %vm274, %v513, %v532
  %v534 = vrot.slane %v521, 4
  %v535 = vsel %vm274, %v534, %v497
  %v536 = vrot.slane %v497, 4
  %v537 = vsel %vm274, %v521, %v536
  %v538 = vrot.slane %v525, 4
  %v539 = vsel %vm274, %v538, %v501
  %v540 = vrot.slane %v501, 4
  %v541 = vsel %vm274, %v525, %v540
  %v542 = vrot.slane %v368, 4
  %v543 = vsel %vm274, %v542, %v354
  %v544 = vrot.slane %v354, 4
  %v545 = vsel %vm274, %v368, %v544
  %v547 = vunpack.c.l.s4 1983009808
  %v548 = vunpack.c.0.s8 %v547
  %v549 = vperm.slane %v543, %v548
  %v551 = vunpack.c.l.s4 1983009808
  %v552 = vunpack.c.0.s8 %v551
  %v553 = vperm.slane %v545, %v552
  %v554 = vrot.slane %v411, 4
  %v555 = vsel %vm274, %v554, %v403
  %v556 = vrot.slane %v403, 4
  %v557 = vsel %vm274, %v411, %v556
  %v559 = vunpack.c.l.s4 1983009808
  %v560 = vunpack.c.0.s8 %v559
  %v561 = vperm.slane %v555, %v560
  %v563 = vunpack.c.l.s4 1983009808
  %v564 = vunpack.c.0.s8 %v563
  %v565 = vperm.slane %v557, %v564
  %v566 = vrot.slane %v396, 4
  %v567 = vsel %vm274, %v566, %v382
  %v568 = vrot.slane %v382, 4
  %v569 = vsel %vm274, %v396, %v568
  %v571 = vunpack.c.l.s4 1983009808
  %v572 = vunpack.c.0.s8 %v571
  %v573 = vperm.slane %v567, %v572
  %v575 = vunpack.c.l.s4 1983009808
  %v576 = vunpack.c.0.s8 %v575
  %v577 = vperm.slane %v569, %v576
  %v578 = vrot.slane %v427, 4
  %v579 = vsel %vm274, %v578, %v419
  %v580 = vrot.slane %v419, 4
  %v581 = vsel %vm274, %v427, %v580
  %v583 = vunpack.c.l.s4 1983009808
  %v584 = vunpack.c.0.s8 %v583
  %v585 = vperm.slane %v579, %v584
  %v587 = vunpack.c.l.s4 1983009808
  %v588 = vunpack.c.0.s8 %v587
  %v589 = vperm.slane %v581, %v588
  %v590 = vrot.slane %v561, 4
  %v591 = vsel %vm274, %v590, %v549
  %v592 = vrot.slane %v549, 4
  %v593 = vsel %vm274, %v561, %v592
  %v595 = vunpack.c.l.s4 1934713408
  %v596 = vunpack.c.0.s8 %v595
  %v597 = vperm.slane %v591, %v596
  %v599 = vunpack.c.l.s4 1934713408
  %v600 = vunpack.c.0.s8 %v599
  %v601 = vperm.slane %v593, %v600
  %v602 = vrot.slane %v565, 4
  %v603 = vsel %vm274, %v602, %v553
  %v604 = vrot.slane %v553, 4
  %v605 = vsel %vm274, %v565, %v604
  %v607 = vunpack.c.l.s4 1934713408
  %v608 = vunpack.c.0.s8 %v607
  %v609 = vperm.slane %v603, %v608
  %v611 = vunpack.c.l.s4 1934713408
  %v612 = vunpack.c.0.s8 %v611
  %v613 = vperm.slane %v605, %v612
  %v614 = vrot.slane %v585, 4
  %v615 = vsel %vm274, %v614, %v573
  %v616 = vrot.slane %v573, 4
  %v617 = vsel %vm274, %v585, %v616
  %v619 = vunpack.c.l.s4 1934713408
  %v620 = vunpack.c.0.s8 %v619
  %v621 = vperm.slane %v615, %v620
  %v623 = vunpack.c.l.s4 1934713408
  %v624 = vunpack.c.0.s8 %v623
  %v625 = vperm.slane %v617, %v624
  %v626 = vrot.slane %v589, 4
  %v627 = vsel %vm274, %v626, %v577
  %v628 = vrot.slane %v577, 4
  %v629 = vsel %vm274, %v589, %v628
  %v631 = vunpack.c.l.s4 1934713408
  %v632 = vunpack.c.0.s8 %v631
  %v633 = vperm.slane %v627, %v632
  %v635 = vunpack.c.l.s4 1934713408
  %v636 = vunpack.c.0.s8 %v635
  %v637 = vperm.slane %v629, %v636
  %v638 = vrot.slane %v621, 4
  %v639 = vsel %vm274, %v638, %v597
  %v640 = vrot.slane %v597, 4
  %v641 = vsel %vm274, %v621, %v640
  %v642 = vrot.slane %v625, 4
  %v643 = vsel %vm274, %v642, %v601
  %v644 = vrot.slane %v601, 4
  %v645 = vsel %vm274, %v625, %v644
  %v646 = vrot.slane %v633, 4
  %v647 = vsel %vm274, %v646, %v609
  %v648 = vrot.slane %v609, 4
  %v649 = vsel %vm274, %v633, %v648
  %v650 = vrot.slane %v637, 4
  %v651 = vsel %vm274, %v650, %v613
  %v652 = vrot.slane %v613, 4
  %v653 = vsel %vm274, %v637, %v652
  %v656 = vrot.slane %v41, 1
  %v657 = vrot.slane %v41, 2
  %v658 = vrot.slane %v41, 3
  %v659 = vrot.slane %v41, 4
  %v660 = vrot.slane %v41, 5
  %v661 = vrot.slane %v41, 6
  %v662 = vrot.slane %v41, 7
  %v663 = vrot.slane %v43, 1
  %v664 = vrot.slane %v43, 2
  %v665 = vrot.slane %v43, 3
  %v666 = vrot.slane %v43, 4
  %v667 = vrot.slane %v43, 5
  %v668 = vrot.slane %v43, 6
  %v669 = vrot.slane %v43, 7
  %v670 = vperm.slane %v41, 0
  %v671 = vperm.slane %v656, 0
  %v672 = vperm.slane %v657, 0
  %v673 = vperm.slane %v658, 0
  %v674 = vperm.slane %v659, 0
  %v675 = vperm.slane %v660, 0
  %v676 = vperm.slane %v661, 0
  %v677 = vperm.slane %v662, 0
  %v678 = vperm.slane %v43, 0
  %v679 = vperm.slane %v663, 0
  %v680 = vperm.slane %v664, 0
  %v681 = vperm.slane %v665, 0
  %v682 = vperm.slane %v666, 0
  %v683 = vperm.slane %v667, 0
  %v684 = vperm.slane %v668, 0
  %v685 = vperm.slane %v669, 0
  %v702 = vadd.f32 %v670, %v527
  %v703 = vadd.f32 %v671, %v529
  %v704 = vadd.f32 %v672, %v531
  %v705 = vadd.f32 %v673, %v533
  %v706 = vadd.f32 %v674, %v535
  %v707 = vadd.f32 %v675, %v537
  %v708 = vadd.f32 %v676, %v539
  %v709 = vadd.f32 %v677, %v541
  %v710 = vadd.f32 %v678, %v639
  %v711 = vadd.f32 %v679, %v641
  %v712 = vadd.f32 %v680, %v643
  %v713 = vadd.f32 %v681, %v645
  %v714 = vadd.f32 %v682, %v647
  %v715 = vadd.f32 %v683, %v649
  %v716 = vadd.f32 %v684, %v651
  %v717 = vadd.f32 %v685, %v653
  %vm718 = vcmp.gt.f32.partialorder %v702, 0.0
  %vm719 = vcmp.gt.f32.partialorder %v703, 0.0
  %vm720 = vcmp.gt.f32.partialorder %v704, 0.0
  %vm721 = vcmp.gt.f32.partialorder %v705, 0.0
  %vm722 = vcmp.gt.f32.partialorder %v706, 0.0
  %vm723 = vcmp.gt.f32.partialorder %v707, 0.0
  %vm724 = vcmp.gt.f32.partialorder %v708, 0.0
  %vm725 = vcmp.gt.f32.partialorder %v709, 0.0
  %vm726 = vcmp.gt.f32.partialorder %v710, 0.0
  %vm727 = vcmp.gt.f32.partialorder %v711, 0.0
  %vm728 = vcmp.gt.f32.partialorder %v712, 0.0
  %vm729 = vcmp.gt.f32.partialorder %v713, 0.0
  %vm730 = vcmp.gt.f32.partialorder %v714, 0.0
  %vm731 = vcmp.gt.f32.partialorder %v715, 0.0
  %vm732 = vcmp.gt.f32.partialorder %v716, 0.0
  %vm733 = vcmp.gt.f32.partialorder %v717, 0.0
  %v734 = vmul.f32 %v702, 0.2
  %v735 = vmul.f32 %v703, 0.2
  %v736 = vmul.f32 %v704, 0.2
  %v737 = vmul.f32 %v705, 0.2
  %v738 = vmul.f32 %v706, 0.2
  %v739 = vmul.f32 %v707, 0.2
  %v740 = vmul.f32 %v708, 0.2
  %v741 = vmul.f32 %v709, 0.2
  %v742 = vmul.f32 %v710, 0.2
  %v743 = vmul.f32 %v711, 0.2
  %v744 = vmul.f32 %v712, 0.2
  %v745 = vmul.f32 %v713, 0.2
  %v746 = vmul.f32 %v714, 0.2
  %v747 = vmul.f32 %v715, 0.2
  %v748 = vmul.f32 %v716, 0.2
  %v749 = vmul.f32 %v717, 0.2
  %v750 = vsel %vm718, %v702, %v734
  %v751 = vsel %vm719, %v703, %v735
  %v752 = vsel %vm720, %v704, %v736
  %v753 = vsel %vm721, %v705, %v737
  %v754 = vsel %vm722, %v706, %v738
  %v755 = vsel %vm723, %v707, %v739
  %v756 = vsel %vm724, %v708, %v740
  %v757 = vsel %vm725, %v709, %v741
  %v758 = vsel %vm726, %v710, %v742
  %v759 = vsel %vm727, %v711, %v743
  %v760 = vsel %vm728, %v712, %v744
  %v761 = vsel %vm729, %v713, %v745
  %v762 = vsel %vm730, %v714, %v746
  %v763 = vsel %vm731, %v715, %v747
  %v764 = vsel %vm732, %v716, %v748
  %v765 = vsel %vm733, %v717, %v749
  %v766 = vld [vmem:[%s4] sm:$0xff]
  %v767 = vld [vmem:[%s4 + $0x8] sm:$0xff]
  %v768 = vpack.c.bf16 %v767, %v766
  %v769 = vpack.c.bf16 %v750, %v750
  %v770 = vpack.c.bf16 %v751, %v751
  %v771 = vpack.c.bf16 %v752, %v752
  %v772 = vpack.c.bf16 %v753, %v753
  %v773 = vpack.c.bf16 %v754, %v754
  %v774 = vpack.c.bf16 %v755, %v755
  %v775 = vpack.c.bf16 %v756, %v756
  %v776 = vpack.c.bf16 %v757, %v757
  %v777 = vpack.c.bf16 %v758, %v758
  %v778 = vpack.c.bf16 %v759, %v759
  %v779 = vpack.c.bf16 %v760, %v760
  %v780 = vpack.c.bf16 %v761, %v761
  %v781 = vpack.c.bf16 %v762, %v762
  %v782 = vpack.c.bf16 %v763, %v763
  %v783 = vpack.c.bf16 %v764, %v764
  %v784 = vpack.c.bf16 %v765, %v765
  %v785 = vrot.slane %v773, 4
  %v786 = vsel %vm65, %v785, %v769
  %v788 = vunpack.c.l.s4 1983009808
  %v789 = vunpack.c.0.s8 %v788
  %v790 = vperm.slane %v786, %v789
  %v791 = vrot.slane %v775, 4
  %v792 = vsel %vm65, %v791, %v771
  %v794 = vunpack.c.l.s4 1983009808
  %v795 = vunpack.c.0.s8 %v794
  %v796 = vperm.slane %v792, %v795
  %v797 = vrot.slane %v796, 4
  %v798 = vsel %vm65, %v797, %v790
  %v799 = vrot.slane %v790, 4
  %v800 = vsel %vm65, %v796, %v799
  %v802 = vunpack.c.l.s4 1934713408
  %v803 = vunpack.c.0.s8 %v802
  %v804 = vperm.slane %v798, %v803
  %v806 = vunpack.c.l.s4 1934713408
  %v807 = vunpack.c.0.s8 %v806
  %v808 = vperm.slane %v800, %v807
  %v809 = vrot.slane %v804, 4
  %v810 = vsel %vm65, 0, %v809
  %v811 = vrot.slane %v808, 4
  %v812 = vsel %vm65, 0, %v811
  %v813 = vrot.slane %v774, 4
  %v814 = vsel %vm65, %v813, %v770
  %v816 = vunpack.c.l.s4 1983009808
  %v817 = vunpack.c.0.s8 %v816
  %v818 = vperm.slane %v814, %v817
  %v819 = vrot.slane %v776, 4
  %v820 = vsel %vm65, %v819, %v772
  %v822 = vunpack.c.l.s4 1983009808
  %v823 = vunpack.c.0.s8 %v822
  %v824 = vperm.slane %v820, %v823
  %v825 = vrot.slane %v824, 4
  %v826 = vsel %vm65, %v825, %v818
  %v827 = vrot.slane %v818, 4
  %v828 = vsel %vm65, %v824, %v827
  %v830 = vunpack.c.l.s4 1934713408
  %v831 = vunpack.c.0.s8 %v830
  %v832 = vperm.slane %v826, %v831
  %v834 = vunpack.c.l.s4 1934713408
  %v835 = vunpack.c.0.s8 %v834
  %v836 = vperm.slane %v828, %v835
  %v837 = vrot.slane %v832, 4
  %v838 = vsel %vm65, 0, %v837
  %v839 = vrot.slane %v836, 4
  %v840 = vsel %vm65, 0, %v839
  %v841 = vrot.slane %v781, 4
  %v842 = vsel %vm65, %v841, %v777
  %v844 = vunpack.c.l.s4 1983009808
  %v845 = vunpack.c.0.s8 %v844
  %v846 = vperm.slane %v842, %v845
  %v847 = vrot.slane %v783, 4
  %v848 = vsel %vm65, %v847, %v779
  %v850 = vunpack.c.l.s4 1983009808
  %v851 = vunpack.c.0.s8 %v850
  %v852 = vperm.slane %v848, %v851
  %v853 = vrot.slane %v852, 4
  %v854 = vsel %vm65, %v853, %v846
  %v855 = vrot.slane %v846, 4
  %v856 = vsel %vm65, %v852, %v855
  %v858 = vunpack.c.l.s4 1934713408
  %v859 = vunpack.c.0.s8 %v858
  %v860 = vperm.slane %v854, %v859
  %v862 = vunpack.c.l.s4 1934713408
  %v863 = vunpack.c.0.s8 %v862
  %v864 = vperm.slane %v856, %v863
  %v865 = vrot.slane %v860, 4
  %v866 = vsel %vm65, 0, %v865
  %v867 = vrot.slane %v864, 4
  %v868 = vsel %vm65, 0, %v867
  %v869 = vrot.slane %v782, 4
  %v870 = vsel %vm65, %v869, %v778
  %v872 = vunpack.c.l.s4 1983009808
  %v873 = vunpack.c.0.s8 %v872
  %v874 = vperm.slane %v870, %v873
  %v875 = vrot.slane %v784, 4
  %v876 = vsel %vm65, %v875, %v780
  %v878 = vunpack.c.l.s4 1983009808
  %v879 = vunpack.c.0.s8 %v878
  %v880 = vperm.slane %v876, %v879
  %v881 = vrot.slane %v880, 4
  %v882 = vsel %vm65, %v881, %v874
  %v883 = vrot.slane %v874, 4
  %v884 = vsel %vm65, %v880, %v883
  %v886 = vunpack.c.l.s4 1934713408
  %v887 = vunpack.c.0.s8 %v886
  %v888 = vperm.slane %v882, %v887
  %v890 = vunpack.c.l.s4 1934713408
  %v891 = vunpack.c.0.s8 %v890
  %v892 = vperm.slane %v884, %v891
  %v893 = vrot.slane %v888, 4
  %v894 = vsel %vm65, 0, %v893
  %v895 = vrot.slane %v892, 4
  %v896 = vsel %vm65, 0, %v895
  %v899 = vpack.i.b16 %v832, %v804
  %v900 = vshrl.u32 %v804, 16
  %v901 = vshrl.u32 %v832, 16
  %v902 = vpack.i.b16 %v901, %v900
  %v905 = vpack.i.b16 %v838, %v810
  %v906 = vshrl.u32 %v810, 16
  %v907 = vshrl.u32 %v838, 16
  %v908 = vpack.i.b16 %v907, %v906
  %v911 = vpack.i.b16 %v836, %v808
  %v912 = vshrl.u32 %v808, 16
  %v913 = vshrl.u32 %v836, 16
  %v914 = vpack.i.b16 %v913, %v912
  %v917 = vpack.i.b16 %v840, %v812
  %v918 = vshrl.u32 %v812, 16
  %v919 = vshrl.u32 %v840, 16
  %v920 = vpack.i.b16 %v919, %v918
  %v923 = vpack.i.b16 %v888, %v860
  %v924 = vshrl.u32 %v860, 16
  %v925 = vshrl.u32 %v888, 16
  %v926 = vpack.i.b16 %v925, %v924
  %v929 = vpack.i.b16 %v894, %v866
  %v930 = vshrl.u32 %v866, 16
  %v931 = vshrl.u32 %v894, 16
  %v932 = vpack.i.b16 %v931, %v930
  %v935 = vpack.i.b16 %v892, %v864
  %v936 = vshrl.u32 %v864, 16
  %v937 = vshrl.u32 %v892, 16
  %v938 = vpack.i.b16 %v937, %v936
  %v941 = vpack.i.b16 %v896, %v868
  %v942 = vshrl.u32 %v868, 16
  %v943 = vshrl.u32 %v896, 16
  %v944 = vpack.i.b16 %v943, %v942
  %v945 = vunpack.c.l.b16 %v899
  %v946 = vunpack.c.l.b16 %v923
  %v947 = vpack.c.b16 %v946, %v945
  %v948 = vunpack.c.l.b16 %v902
  %v949 = vunpack.c.l.b16 %v926
  %v950 = vpack.c.b16 %v949, %v948
  %951 = vrot.lane.b32.xlu0 %v950, 64
  %v952 = vpop.permute.xlu0 %951
  %v953 = vunpack.c.l.b16 %v905
  %v954 = vunpack.c.l.b16 %v929
  %v955 = vpack.c.b16 %v954, %v953
  %v956 = vunpack.c.l.b16 %v908
  %v957 = vunpack.c.l.b16 %v932
  %v958 = vpack.c.b16 %v957, %v956
  %959 = vrot.lane.b32.xlu0 %v958, 64
  %v960 = vpop.permute.xlu0 %959
  %v961 = vunpack.c.l.b16 %v911
  %v962 = vunpack.c.l.b16 %v935
  %v963 = vpack.c.b16 %v962, %v961
  %v964 = vunpack.c.l.b16 %v914
  %v965 = vunpack.c.l.b16 %v938
  %v966 = vpack.c.b16 %v965, %v964
  %967 = vrot.lane.b32.xlu0 %v966, 64
  %v968 = vpop.permute.xlu0 %967
  %v969 = vunpack.c.l.b16 %v917
  %v970 = vunpack.c.l.b16 %v941
  %v971 = vpack.c.b16 %v970, %v969
  %v972 = vunpack.c.l.b16 %v920
  %v973 = vunpack.c.l.b16 %v944
  %v974 = vpack.c.b16 %v973, %v972
  %975 = vrot.lane.b32.xlu0 %v974, 64
  %v976 = vpop.permute.xlu0 %975
  %v979 = vsel %vm257, %v947, %v952
  %v983 = vsel %vm257, %v955, %v960
  %v987 = vsel %vm257, %v963, %v968
  %v991 = vsel %vm257, %v971, %v976
  %v994 = vsel %vm27, %v768, 0
  %996 = vmatpush.bf16.msra.mxu0 0
  %997 = vmatpush.bf16.msra.mxu0 0
  %998 = vmatpush.bf16.msra.mxu0 0
  %999 = vmatpush.bf16.msra.mxu0 0
  %1000 = vmatpush.bf16.msra.mxu0 0
  %1001 = vmatpush.bf16.msra.mxu0 0
  %1002 = vmatpush.bf16.msra.mxu0 0
  %1003 = vmatpush.bf16.msra.mxu0 %v979
  %1004 = vmatmul.bf16.gmra.mxu0 %v994
  %v1005 = vpop.f32.mrf.mxu0
  %v1006 = vadd.f32 %v335, %v1005
  %v1007 = vpop.f32.mrf.mxu0
  %v1008 = vadd.f32 %v335, %v1007
  %1009 = vdwg.mxu0
  %1010 = vmatpush.bf16.msra.mxu0 0
  %1011 = vmatpush.bf16.msra.mxu0 0
  %1012 = vmatpush.bf16.msra.mxu0 0
  %1013 = vmatpush.bf16.msra.mxu0 0
  %1014 = vmatpush.bf16.msra.mxu0 0
  %1015 = vmatpush.bf16.msra.mxu0 0
  %1016 = vmatpush.bf16.msra.mxu0 0
  %1017 = vmatpush.bf16.msra.mxu0 %v983
  %1018 = vmatmul.bf16.gmra.mxu0 %v994
  %v1019 = vpop.f32.mrf.mxu0
  %v1020 = vadd.f32 %v336, %v1019
  %v1021 = vpop.f32.mrf.mxu0
  %v1022 = vadd.f32 %v336, %v1021
  %1023 = vdwg.mxu0
  %1024 = vmatpush.bf16.msra.mxu0 0
  %1025 = vmatpush.bf16.msra.mxu0 0
  %1026 = vmatpush.bf16.msra.mxu0 0
  %1027 = vmatpush.bf16.msra.mxu0 0
  %1028 = vmatpush.bf16.msra.mxu0 0
  %1029 = vmatpush.bf16.msra.mxu0 0
  %1030 = vmatpush.bf16.msra.mxu0 0
  %1031 = vmatpush.bf16.msra.mxu0 %v987
  %1032 = vmatmul.bf16.gmra.mxu0 %v994
  %v1033 = vpop.f32.mrf.mxu0
  %v1034 = vadd.f32 %v337, %v1033
  %v1035 = vpop.f32.mrf.mxu0
  %v1036 = vadd.f32 %v337, %v1035
  %1037 = vdwg.mxu0
  %1038 = vmatpush.bf16.msra.mxu0 0
  %1039 = vmatpush.bf16.msra.mxu0 0
  %1040 = vmatpush.bf16.msra.mxu0 0
  %1041 = vmatpush.bf16.msra.mxu0 0
  %1042 = vmatpush.bf16.msra.mxu0 0
  %1043 = vmatpush.bf16.msra.mxu0 0
  %1044 = vmatpush.bf16.msra.mxu0 0
  %1045 = vmatpush.bf16.msra.mxu0 %v991
  %1046 = vmatmul.bf16.gmra.mxu0 %v994
  %v1047 = vpop.f32.mrf.mxu0
  %v1048 = vadd.f32 %v338, %v1047
  %v1049 = vpop.f32.mrf.mxu0
  %v1050 = vadd.f32 %v338, %v1049
  %1051 = vdwg.mxu0
  %1054 = vrot.lane.b32.xlu0 %v1006, 64
  %v1055 = vpop.permute.xlu0 %1054
  %1056 = vrot.lane.b32.xlu0 %v1008, 64
  %v1057 = vpop.permute.xlu0 %1056
  %1062 = vrot.lane.b32.xlu0 %v1020, 64
  %v1063 = vpop.permute.xlu0 %1062
  %1064 = vrot.lane.b32.xlu0 %v1022, 64
  %v1065 = vpop.permute.xlu0 %1064
  %1070 = vrot.lane.b32.xlu0 %v1034, 64
  %v1071 = vpop.permute.xlu0 %1070
  %1072 = vrot.lane.b32.xlu0 %v1036, 64
  %v1073 = vpop.permute.xlu0 %1072
  %1078 = vrot.lane.b32.xlu0 %v1048, 64
  %v1079 = vpop.permute.xlu0 %1078
  %1080 = vrot.lane.b32.xlu0 %v1050, 64
  %v1081 = vpop.permute.xlu0 %1080
  %v1084 = vrot.slane %v1020, 4
  %v1085 = vsel %vm274, %v1084, %v1006
  %v1086 = vrot.slane %v1006, 4
  %v1087 = vsel %vm274, %v1020, %v1086
  %v1089 = vunpack.c.l.s4 1983009808
  %v1090 = vunpack.c.0.s8 %v1089
  %v1091 = vperm.slane %v1085, %v1090
  %v1093 = vunpack.c.l.s4 1983009808
  %v1094 = vunpack.c.0.s8 %v1093
  %v1095 = vperm.slane %v1087, %v1094
  %v1096 = vrot.slane %v1063, 4
  %v1097 = vsel %vm274, %v1096, %v1055
  %v1098 = vrot.slane %v1055, 4
  %v1099 = vsel %vm274, %v1063, %v1098
  %v1101 = vunpack.c.l.s4 1983009808
  %v1102 = vunpack.c.0.s8 %v1101
  %v1103 = vperm.slane %v1097, %v1102
  %v1105 = vunpack.c.l.s4 1983009808
  %v1106 = vunpack.c.0.s8 %v1105
  %v1107 = vperm.slane %v1099, %v1106
  %v1108 = vrot.slane %v1048, 4
  %v1109 = vsel %vm274, %v1108, %v1034
  %v1110 = vrot.slane %v1034, 4
  %v1111 = vsel %vm274, %v1048, %v1110
  %v1113 = vunpack.c.l.s4 1983009808
  %v1114 = vunpack.c.0.s8 %v1113
  %v1115 = vperm.slane %v1109, %v1114
  %v1117 = vunpack.c.l.s4 1983009808
  %v1118 = vunpack.c.0.s8 %v1117
  %v1119 = vperm.slane %v1111, %v1118
  %v1120 = vrot.slane %v1079, 4
  %v1121 = vsel %vm274, %v1120, %v1071
  %v1122 = vrot.slane %v1071, 4
  %v1123 = vsel %vm274, %v1079, %v1122
  %v1125 = vunpack.c.l.s4 1983009808
  %v1126 = vunpack.c.0.s8 %v1125
  %v1127 = vperm.slane %v1121, %v1126
  %v1129 = vunpack.c.l.s4 1983009808
  %v1130 = vunpack.c.0.s8 %v1129
  %v1131 = vperm.slane %v1123, %v1130
  %v1132 = vrot.slane %v1103, 4
  %v1133 = vsel %vm274, %v1132, %v1091
  %v1134 = vrot.slane %v1091, 4
  %v1135 = vsel %vm274, %v1103, %v1134
  %v1137 = vunpack.c.l.s4 1934713408
  %v1138 = vunpack.c.0.s8 %v1137
  %v1139 = vperm.slane %v1133, %v1138
  %v1141 = vunpack.c.l.s4 1934713408
  %v1142 = vunpack.c.0.s8 %v1141
  %v1143 = vperm.slane %v1135, %v1142
  %v1144 = vrot.slane %v1107, 4
  %v1145 = vsel %vm274, %v1144, %v1095
  %v1146 = vrot.slane %v1095, 4
  %v1147 = vsel %vm274, %v1107, %v1146
  %v1149 = vunpack.c.l.s4 1934713408
  %v1150 = vunpack.c.0.s8 %v1149
  %v1151 = vperm.slane %v1145, %v1150
  %v1153 = vunpack.c.l.s4 1934713408
  %v1154 = vunpack.c.0.s8 %v1153
  %v1155 = vperm.slane %v1147, %v1154
  %v1156 = vrot.slane %v1127, 4
  %v1157 = vsel %vm274, %v1156, %v1115
  %v1158 = vrot.slane %v1115, 4
  %v1159 = vsel %vm274, %v1127, %v1158
  %v1161 = vunpack.c.l.s4 1934713408
  %v1162 = vunpack.c.0.s8 %v1161
  %v1163 = vperm.slane %v1157, %v1162
  %v1165 = vunpack.c.l.s4 1934713408
  %v1166 = vunpack.c.0.s8 %v1165
  %v1167 = vperm.slane %v1159, %v1166
  %v1168 = vrot.slane %v1131, 4
  %v1169 = vsel %vm274, %v1168, %v1119
  %v1170 = vrot.slane %v1119, 4
  %v1171 = vsel %vm274, %v1131, %v1170
  %v1173 = vunpack.c.l.s4 1934713408
  %v1174 = vunpack.c.0.s8 %v1173
  %v1175 = vperm.slane %v1169, %v1174
  %v1177 = vunpack.c.l.s4 1934713408
  %v1178 = vunpack.c.0.s8 %v1177
  %v1179 = vperm.slane %v1171, %v1178
  %v1180 = vrot.slane %v1163, 4
  %v1181 = vsel %vm274, %v1180, %v1139
  %v1182 = vrot.slane %v1139, 4
  %v1183 = vsel %vm274, %v1163, %v1182
  %v1184 = vrot.slane %v1167, 4
  %v1185 = vsel %vm274, %v1184, %v1143
  %v1186 = vrot.slane %v1143, 4
  %v1187 = vsel %vm274, %v1167, %v1186
  %v1188 = vrot.slane %v1175, 4
  %v1189 = vsel %vm274, %v1188, %v1151
  %v1190 = vrot.slane %v1151, 4
  %v1191 = vsel %vm274, %v1175, %v1190
  %v1192 = vrot.slane %v1179, 4
  %v1193 = vsel %vm274, %v1192, %v1155
  %v1194 = vrot.slane %v1155, 4
  %v1195 = vsel %vm274, %v1179, %v1194
  %v1196 = vrot.slane %v1022, 4
  %v1197 = vsel %vm274, %v1196, %v1008
  %v1198 = vrot.slane %v1008, 4
  %v1199 = vsel %vm274, %v1022, %v1198
  %v1201 = vunpack.c.l.s4 1983009808
  %v1202 = vunpack.c.0.s8 %v1201
  %v1203 = vperm.slane %v1197, %v1202
  %v1205 = vunpack.c.l.s4 1983009808
  %v1206 = vunpack.c.0.s8 %v1205
  %v1207 = vperm.slane %v1199, %v1206
  %v1208 = vrot.slane %v1065, 4
  %v1209 = vsel %vm274, %v1208, %v1057
  %v1210 = vrot.slane %v1057, 4
  %v1211 = vsel %vm274, %v1065, %v1210
  %v1213 = vunpack.c.l.s4 1983009808
  %v1214 = vunpack.c.0.s8 %v1213
  %v1215 = vperm.slane %v1209, %v1214
  %v1217 = vunpack.c.l.s4 1983009808
  %v1218 = vunpack.c.0.s8 %v1217
  %v1219 = vperm.slane %v1211, %v1218
  %v1220 = vrot.slane %v1050, 4
  %v1221 = vsel %vm274, %v1220, %v1036
  %v1222 = vrot.slane %v1036, 4
  %v1223 = vsel %vm274, %v1050, %v1222
  %v1225 = vunpack.c.l.s4 1983009808
  %v1226 = vunpack.c.0.s8 %v1225
  %v1227 = vperm.slane %v1221, %v1226
  %v1229 = vunpack.c.l.s4 1983009808
  %v1230 = vunpack.c.0.s8 %v1229
  %v1231 = vperm.slane %v1223, %v1230
  %v1232 = vrot.slane %v1081, 4
  %v1233 = vsel %vm274, %v1232, %v1073
  %v1234 = vrot.slane %v1073, 4
  %v1235 = vsel %vm274, %v1081, %v1234
  %v1237 = vunpack.c.l.s4 1983009808
  %v1238 = vunpack.c.0.s8 %v1237
  %v1239 = vperm.slane %v1233, %v1238
  %v1241 = vunpack.c.l.s4 1983009808
  %v1242 = vunpack.c.0.s8 %v1241
  %v1243 = vperm.slane %v1235, %v1242
  %v1244 = vrot.slane %v1215, 4
  %v1245 = vsel %vm274, %v1244, %v1203
  %v1246 = vrot.slane %v1203, 4
  %v1247 = vsel %vm274, %v1215, %v1246
  %v1249 = vunpack.c.l.s4 1934713408
  %v1250 = vunpack.c.0.s8 %v1249
  %v1251 = vperm.slane %v1245, %v1250
  %v1253 = vunpack.c.l.s4 1934713408
  %v1254 = vunpack.c.0.s8 %v1253
  %v1255 = vperm.slane %v1247, %v1254
  %v1256 = vrot.slane %v1219, 4
  %v1257 = vsel %vm274, %v1256, %v1207
  %v1258 = vrot.slane %v1207, 4
  %v1259 = vsel %vm274, %v1219, %v1258
  %v1261 = vunpack.c.l.s4 1934713408
  %v1262 = vunpack.c.0.s8 %v1261
  %v1263 = vperm.slane %v1257, %v1262
  %v1265 = vunpack.c.l.s4 1934713408
  %v1266 = vunpack.c.0.s8 %v1265
  %v1267 = vperm.slane %v1259, %v1266
  %v1268 = vrot.slane %v1239, 4
  %v1269 = vsel %vm274, %v1268, %v1227
  %v1270 = vrot.slane %v1227, 4
  %v1271 = vsel %vm274, %v1239, %v1270
  %v1273 = vunpack.c.l.s4 1934713408
  %v1274 = vunpack.c.0.s8 %v1273
  %v1275 = vperm.slane %v1269, %v1274
  %v1277 = vunpack.c.l.s4 1934713408
  %v1278 = vunpack.c.0.s8 %v1277
  %v1279 = vperm.slane %v1271, %v1278
  %v1280 = vrot.slane %v1243, 4
  %v1281 = vsel %vm274, %v1280, %v1231
  %v1282 = vrot.slane %v1231, 4
  %v1283 = vsel %vm274, %v1243, %v1282
  %v1285 = vunpack.c.l.s4 1934713408
  %v1286 = vunpack.c.0.s8 %v1285
  %v1287 = vperm.slane %v1281, %v1286
  %v1289 = vunpack.c.l.s4 1934713408
  %v1290 = vunpack.c.0.s8 %v1289
  %v1291 = vperm.slane %v1283, %v1290
  %v1292 = vrot.slane %v1275, 4
  %v1293 = vsel %vm274, %v1292, %v1251
  %v1294 = vrot.slane %v1251, 4
  %v1295 = vsel %vm274, %v1275, %v1294
  %v1296 = vrot.slane %v1279, 4
  %v1297 = vsel %vm274, %v1296, %v1255
  %v1298 = vrot.slane %v1255, 4
  %v1299 = vsel %vm274, %v1279, %v1298
  %v1300 = vrot.slane %v1287, 4
  %v1301 = vsel %vm274, %v1300, %v1263
  %v1302 = vrot.slane %v1263, 4
  %v1303 = vsel %vm274, %v1287, %v1302
  %v1304 = vrot.slane %v1291, 4
  %v1305 = vsel %vm274, %v1304, %v1267
  %v1306 = vrot.slane %v1267, 4
  %v1307 = vsel %vm274, %v1291, %v1306
  %vm1308 = vcmp.gt.f32.partialorder %v1181, 0.0
  %vm1309 = vcmp.gt.f32.partialorder %v1183, 0.0
  %vm1310 = vcmp.gt.f32.partialorder %v1185, 0.0
  %vm1311 = vcmp.gt.f32.partialorder %v1187, 0.0
  %vm1312 = vcmp.gt.f32.partialorder %v1189, 0.0
  %vm1313 = vcmp.gt.f32.partialorder %v1191, 0.0
  %vm1314 = vcmp.gt.f32.partialorder %v1193, 0.0
  %vm1315 = vcmp.gt.f32.partialorder %v1195, 0.0
  %vm1316 = vcmp.gt.f32.partialorder %v1293, 0.0
  %vm1317 = vcmp.gt.f32.partialorder %v1295, 0.0
  %vm1318 = vcmp.gt.f32.partialorder %v1297, 0.0
  %vm1319 = vcmp.gt.f32.partialorder %v1299, 0.0
  %vm1320 = vcmp.gt.f32.partialorder %v1301, 0.0
  %vm1321 = vcmp.gt.f32.partialorder %v1303, 0.0
  %vm1322 = vcmp.gt.f32.partialorder %v1305, 0.0
  %vm1323 = vcmp.gt.f32.partialorder %v1307, 0.0
  %v1324 = vmul.f32 %v1181, 0.2
  %v1325 = vmul.f32 %v1183, 0.2
  %v1326 = vmul.f32 %v1185, 0.2
  %v1327 = vmul.f32 %v1187, 0.2
  %v1328 = vmul.f32 %v1189, 0.2
  %v1329 = vmul.f32 %v1191, 0.2
  %v1330 = vmul.f32 %v1193, 0.2
  %v1331 = vmul.f32 %v1195, 0.2
  %v1332 = vmul.f32 %v1293, 0.2
  %v1333 = vmul.f32 %v1295, 0.2
  %v1334 = vmul.f32 %v1297, 0.2
  %v1335 = vmul.f32 %v1299, 0.2
  %v1336 = vmul.f32 %v1301, 0.2
  %v1337 = vmul.f32 %v1303, 0.2
  %v1338 = vmul.f32 %v1305, 0.2
  %v1339 = vmul.f32 %v1307, 0.2
  %v1340 = vsel %vm1308, %v1181, %v1324
  %v1341 = vsel %vm1309, %v1183, %v1325
  %v1342 = vsel %vm1310, %v1185, %v1326
  %v1343 = vsel %vm1311, %v1187, %v1327
  %v1344 = vsel %vm1312, %v1189, %v1328
  %v1345 = vsel %vm1313, %v1191, %v1329
  %v1346 = vsel %vm1314, %v1193, %v1330
  %v1347 = vsel %vm1315, %v1195, %v1331
  %v1348 = vsel %vm1316, %v1293, %v1332
  %v1349 = vsel %vm1317, %v1295, %v1333
  %v1350 = vsel %vm1318, %v1297, %v1334
  %v1351 = vsel %vm1319, %v1299, %v1335
  %v1352 = vsel %vm1320, %v1301, %v1336
  %v1353 = vsel %vm1321, %v1303, %v1337
  %v1354 = vsel %vm1322, %v1305, %v1338
  %v1355 = vsel %vm1323, %v1307, %v1339
  %v1356 = vsel %vm257, %v1340, -inf
  %v1357 = vrot.slane %v1356, 4
  %v1358 = vmax.f32 %v1356, %v1357
  %v1359 = vrot.slane %v1358, 2
  %v1360 = vmax.f32 %v1358, %v1359
  %v1361 = vrot.slane %v1360, 1
  %v1362 = vmax.f32 %v1360, %v1361
  %v1363 = vsel %vm257, %v1341, -inf
  %v1364 = vrot.slane %v1363, 4
  %v1365 = vmax.f32 %v1363, %v1364
  %v1366 = vrot.slane %v1365, 2
  %v1367 = vmax.f32 %v1365, %v1366
  %v1368 = vrot.slane %v1367, 1
  %v1369 = vmax.f32 %v1367, %v1368
  %v1370 = vsel %vm257, %v1342, -inf
  %v1371 = vrot.slane %v1370, 4
  %v1372 = vmax.f32 %v1370, %v1371
  %v1373 = vrot.slane %v1372, 2
  %v1374 = vmax.f32 %v1372, %v1373
  %v1375 = vrot.slane %v1374, 1
  %v1376 = vmax.f32 %v1374, %v1375
  %v1377 = vsel %vm257, %v1343, -inf
  %v1378 = vrot.slane %v1377, 4
  %v1379 = vmax.f32 %v1377, %v1378
  %v1380 = vrot.slane %v1379, 2
  %v1381 = vmax.f32 %v1379, %v1380
  %v1382 = vrot.slane %v1381, 1
  %v1383 = vmax.f32 %v1381, %v1382
  %v1384 = vsel %vm257, %v1344, -inf
  %v1385 = vrot.slane %v1384, 4
  %v1386 = vmax.f32 %v1384, %v1385
  %v1387 = vrot.slane %v1386, 2
  %v1388 = vmax.f32 %v1386, %v1387
  %v1389 = vrot.slane %v1388, 1
  %v1390 = vmax.f32 %v1388, %v1389
  %v1391 = vsel %vm257, %v1345, -inf
  %v1392 = vrot.slane %v1391, 4
  %v1393 = vmax.f32 %v1391, %v1392
  %v1394 = vrot.slane %v1393, 2
  %v1395 = vmax.f32 %v1393, %v1394
  %v1396 = vrot.slane %v1395, 1
  %v1397 = vmax.f32 %v1395, %v1396
  %v1398 = vsel %vm257, %v1346, -inf
  %v1399 = vrot.slane %v1398, 4
  %v1400 = vmax.f32 %v1398, %v1399
  %v1401 = vrot.slane %v1400, 2
  %v1402 = vmax.f32 %v1400, %v1401
  %v1403 = vrot.slane %v1402, 1
  %v1404 = vmax.f32 %v1402, %v1403
  %v1405 = vsel %vm257, %v1347, -inf
  %v1406 = vrot.slane %v1405, 4
  %v1407 = vmax.f32 %v1405, %v1406
  %v1408 = vrot.slane %v1407, 2
  %v1409 = vmax.f32 %v1407, %v1408
  %v1410 = vrot.slane %v1409, 1
  %v1411 = vmax.f32 %v1409, %v1410
  %v1412 = vsel %vm257, %v1348, -inf
  %v1413 = vrot.slane %v1412, 4
  %v1414 = vmax.f32 %v1412, %v1413
  %v1415 = vrot.slane %v1414, 2
  %v1416 = vmax.f32 %v1414, %v1415
  %v1417 = vrot.slane %v1416, 1
  %v1418 = vmax.f32 %v1416, %v1417
  %v1419 = vsel %vm257, %v1349, -inf
  %v1420 = vrot.slane %v1419, 4
  %v1421 = vmax.f32 %v1419, %v1420
  %v1422 = vrot.slane %v1421, 2
  %v1423 = vmax.f32 %v1421, %v1422
  %v1424 = vrot.slane %v1423, 1
  %v1425 = vmax.f32 %v1423, %v1424
  %v1426 = vsel %vm257, %v1350, -inf
  %v1427 = vrot.slane %v1426, 4
  %v1428 = vmax.f32 %v1426, %v1427
  %v1429 = vrot.slane %v1428, 2
  %v1430 = vmax.f32 %v1428, %v1429
  %v1431 = vrot.slane %v1430, 1
  %v1432 = vmax.f32 %v1430, %v1431
  %v1433 = vsel %vm257, %v1351, -inf
  %v1434 = vrot.slane %v1433, 4
  %v1435 = vmax.f32 %v1433, %v1434
  %v1436 = vrot.slane %v1435, 2
  %v1437 = vmax.f32 %v1435, %v1436
  %v1438 = vrot.slane %v1437, 1
  %v1439 = vmax.f32 %v1437, %v1438
  %v1440 = vsel %vm257, %v1352, -inf
  %v1441 = vrot.slane %v1440, 4
  %v1442 = vmax.f32 %v1440, %v1441
  %v1443 = vrot.slane %v1442, 2
  %v1444 = vmax.f32 %v1442, %v1443
  %v1445 = vrot.slane %v1444, 1
  %v1446 = vmax.f32 %v1444, %v1445
  %v1447 = vsel %vm257, %v1353, -inf
  %v1448 = vrot.slane %v1447, 4
  %v1449 = vmax.f32 %v1447, %v1448
  %v1450 = vrot.slane %v1449, 2
  %v1451 = vmax.f32 %v1449, %v1450
  %v1452 = vrot.slane %v1451, 1
  %v1453 = vmax.f32 %v1451, %v1452
  %v1454 = vsel %vm257, %v1354, -inf
  %v1455 = vrot.slane %v1454, 4
  %v1456 = vmax.f32 %v1454, %v1455
  %v1457 = vrot.slane %v1456, 2
  %v1458 = vmax.f32 %v1456, %v1457
  %v1459 = vrot.slane %v1458, 1
  %v1460 = vmax.f32 %v1458, %v1459
  %v1461 = vsel %vm257, %v1355, -inf
  %v1462 = vrot.slane %v1461, 4
  %v1463 = vmax.f32 %v1461, %v1462
  %v1464 = vrot.slane %v1463, 2
  %v1465 = vmax.f32 %v1463, %v1464
  %v1466 = vrot.slane %v1465, 1
  %v1467 = vmax.f32 %v1465, %v1466
  %vm1484 = vcmask 1041409
  %v1485 = vsel %vm1484, %v1369, %v1362
  %vm1486 = vcmask 1042434
  %v1487 = vsel %vm1486, %v1376, %v1485
  %vm1488 = vcmask 1043459
  %v1489 = vsel %vm1488, %v1383, %v1487
  %vm1490 = vcmask 1044484
  %v1491 = vsel %vm1490, %v1390, %v1489
  %vm1492 = vcmask 1045509
  %v1493 = vsel %vm1492, %v1397, %v1491
  %vm1494 = vcmask 1046534
  %v1495 = vsel %vm1494, %v1404, %v1493
  %vm1496 = vcmask 1047559
  %v1497 = vsel %vm1496, %v1411, %v1495
  %v1498 = vsel %vm1484, %v1425, %v1418
  %v1499 = vsel %vm1486, %v1432, %v1498
  %v1500 = vsel %vm1488, %v1439, %v1499
  %v1501 = vsel %vm1490, %v1446, %v1500
  %v1502 = vsel %vm1492, %v1453, %v1501
  %v1503 = vsel %vm1494, %v1460, %v1502
  %v1504 = vsel %vm1496, %v1467, %v1503
  %1507 = vst.msk [vmem:[%s5] sm:$0xff] %vm257, %v1497
  %1508 = vst.msk [vmem:[%s5 + $0x8] sm:$0xff] %vm257, %v1504
  // Predicated region
  $region22: #{_stage_pre.9} parent=0 // pred_check
    _
  $region23: #{_stage_pre.9} parent=0 // pred_check_branch
    %1510 = sbr.rel (0) target = $region25
  $region24: #{_stage_pre.9} parent=0 // pred_region
    _
  $region25: #{_stage_pre.9} parent=0 // pred_fallthru
    _
  // Predicated region
  $region26: #{_stage_pre.9} parent=0 // pred_check
    _
  $region27: #{_stage_pre.9} parent=0 // pred_check_branch
    %1512 = sbr.rel (0) target = $region29
  $region28: #{_stage_pre.9} parent=0 // pred_region
    _
  $region29: #{_stage_pre.9} parent=0 // pred_fallthru
    _

// kernel: _stage_pre.11
$region0: #{_stage_pre.11}
  #allocation0 [shape = 'u32[]', space=smem, size = 0x4, offset = 0x4, fixed_abs, tag = 'smem constant byte address 0x4 - core index']
  #allocation1 [shape = 'u32[72,128]{1,0:T(1,128)}', space=vmem, size = 0x9000, scoped, tag = 'internal scratch']
  %s0 = inlined_call_operand.vmem [shape: f32[32,64], index: 0, kind: input, shape index: {}]
  %s1 = inlined_call_operand.vmem [shape: bf16[32,8,64], index: 1, kind: input, shape index: {}]
  %s2 = inlined_call_operand.vmem [shape: f32[32,32], index: 2, kind: input, shape index: {}]
  %s3 = inlined_call_operand.vmem [shape: f32[32,32], index: 3, kind: input, shape index: {}]
  %s4 = inlined_call_operand.vmem [shape: f32[64,32], index: 4, kind: input, shape index: {}]
  %s5 = inlined_call_operand.vmem [shape: f32[32,64], index: 5, kind: input, shape index: {}]
  %s6 = inlined_call_operand.vmem [shape: f32[32,1], index: 6, kind: input, shape index: {}]
  %s7 = inlined_call_operand.vmem [shape: f32[32,1], index: 7, kind: input, shape index: {}]
  %s8 = inlined_call_operand.vmem [shape: f32[32,1], index: 8, kind: input, shape index: {}]
  %s9 = inlined_call_operand.vmem [shape: f32[32,1], index: 9, kind: input, shape index: {}]
  %s10 = inlined_call_operand.vmem [shape: f32[32,64], index: 10, kind: output, shape index: {}]
  %s11 = sld [smem:[#allocation0]]
  $region50: #{_stage_pre.11} parent=0
    _
  %s13 = ssub.s32 1, %s11
  %s14 = scalar_select 0, %s13, %s11
  // Predicated region
  $region2: #{_stage_pre.11} parent=0 // pred_check
    _
  $region3: #{_stage_pre.11} parent=0 // pred_check_branch
    %16 = sbr.rel (0) target = $region5
  $region4: #{_stage_pre.11} parent=0 // pred_region
    _
  $region5: #{_stage_pre.11} parent=0 // pred_fallthru
    _
  // Predicated region
  $region6: #{_stage_pre.11} parent=0 // pred_check
    _
  $region7: #{_stage_pre.11} parent=0 // pred_check_branch
    %18 = sbr.rel (0) target = $region9
  $region8: #{_stage_pre.11} parent=0 // pred_region
    _
  $region9: #{_stage_pre.11} parent=0 // pred_fallthru
    _
  // Predicated region
  $region10: #{_stage_pre.11} parent=0 // pred_check
    _
  $region11: #{_stage_pre.11} parent=0 // pred_check_branch
    %20 = sbr.rel (0) target = $region13
  $region12: #{_stage_pre.11} parent=0 // pred_region
    _
  $region13: #{_stage_pre.11} parent=0 // pred_fallthru
    _
  // Predicated region
  $region14: #{_stage_pre.11} parent=0 // pred_check
    _
  $region15: #{_stage_pre.11} parent=0 // pred_check_branch
    %22 = sbr.rel (0) target = $region17
  $region16: #{_stage_pre.11} parent=0 // pred_region
    _
  $region17: #{_stage_pre.11} parent=0 // pred_fallthru
    _
  // Predicated region
  $region18: #{_stage_pre.11} parent=0 // pred_check
    _
  $region19: #{_stage_pre.11} parent=0 // pred_check_branch
    %24 = sbr.rel (0) target = $region21
  $region20: #{_stage_pre.11} parent=0 // pred_region
    _
  $region21: #{_stage_pre.11} parent=0 // pred_fallthru
    _
  // Predicated region
  $region22: #{_stage_pre.11} parent=0 // pred_check
    _
  $region23: #{_stage_pre.11} parent=0 // pred_check_branch
    %26 = sbr.rel (0) target = $region25
  $region24: #{_stage_pre.11} parent=0 // pred_region
    _
  $region25: #{_stage_pre.11} parent=0 // pred_fallthru
    _
  // Predicated region
  $region26: #{_stage_pre.11} parent=0 // pred_check
    _
  $region27: #{_stage_pre.11} parent=0 // pred_check_branch
    %28 = sbr.rel (0) target = $region29
  $region28: #{_stage_pre.11} parent=0 // pred_region
    _
  $region29: #{_stage_pre.11} parent=0 // pred_fallthru
    _
  // Predicated region
  $region30: #{_stage_pre.11} parent=0 // pred_check
    _
  $region31: #{_stage_pre.11} parent=0 // pred_check_branch
    %30 = sbr.rel (0) target = $region33
  $region32: #{_stage_pre.11} parent=0 // pred_region
    _
  $region33: #{_stage_pre.11} parent=0 // pred_fallthru
    _
  // Predicated region
  $region34: #{_stage_pre.11} parent=0 // pred_check
    _
  $region35: #{_stage_pre.11} parent=0 // pred_check_branch
    %32 = sbr.rel (0) target = $region37
  $region36: #{_stage_pre.11} parent=0 // pred_region
    _
  $region37: #{_stage_pre.11} parent=0 // pred_fallthru
    _
  // Predicated region
  $region38: #{_stage_pre.11} parent=0 // pred_check
    _
  $region39: #{_stage_pre.11} parent=0 // pred_check_branch
    %34 = sbr.rel (0) target = $region41
  $region40: #{_stage_pre.11} parent=0 // pred_region
    _
  $region41: #{_stage_pre.11} parent=0 // pred_fallthru
    _
  %v36 = vld [vmem:[%s0] sm:$0xff]
  %v37 = vld [vmem:[%s0 + $0x8] sm:$0xff]
  %v38 = vld [vmem:[%s0 + $0x10] sm:$0xff]
  %v39 = vld [vmem:[%s0 + $0x18] sm:$0xff]
  %v40 = vld [vmem:[%s1] sm:$0xf]
  %v41 = vld [vmem:[%s1 + $0x4] sm:$0xf]
  %v42 = vld [vmem:[%s1 + $0x8] sm:$0xf]
  %v43 = vld [vmem:[%s1 + $0xc] sm:$0xf]
  %v44 = vld [vmem:[%s1 + $0x10] sm:$0xf]
  %v45 = vld [vmem:[%s1 + $0x14] sm:$0xf]
  %v46 = vld [vmem:[%s1 + $0x18] sm:$0xf]
  %v47 = vld [vmem:[%s1 + $0x1c] sm:$0xf]
  %v48 = vld [vmem:[%s1 + $0x20] sm:$0xf]
  %v49 = vld [vmem:[%s1 + $0x24] sm:$0xf]
  %v50 = vld [vmem:[%s1 + $0x28] sm:$0xf]
  %v51 = vld [vmem:[%s1 + $0x2c] sm:$0xf]
  %v52 = vld [vmem:[%s1 + $0x30] sm:$0xf]
  %v53 = vld [vmem:[%s1 + $0x34] sm:$0xf]
  %v54 = vld [vmem:[%s1 + $0x38] sm:$0xf]
  %v55 = vld [vmem:[%s1 + $0x3c] sm:$0xf]
  %v56 = vld [vmem:[%s1 + $0x40] sm:$0xf]
  %v57 = vld [vmem:[%s1 + $0x44] sm:$0xf]
  %v58 = vld [vmem:[%s1 + $0x48] sm:$0xf]
  %v59 = vld [vmem:[%s1 + $0x4c] sm:$0xf]
  %v60 = vld [vmem:[%s1 + $0x50] sm:$0xf]
  %v61 = vld [vmem:[%s1 + $0x54] sm:$0xf]
  %v62 = vld [vmem:[%s1 + $0x58] sm:$0xf]
  %v63 = vld [vmem:[%s1 + $0x5c] sm:$0xf]
  %v64 = vld [vmem:[%s1 + $0x60] sm:$0xf]
  %v65 = vld [vmem:[%s1 + $0x64] sm:$0xf]
  %v66 = vld [vmem:[%s1 + $0x68] sm:$0xf]
  %v67 = vld [vmem:[%s1 + $0x6c] sm:$0xf]
  %v68 = vld [vmem:[%s1 + $0x70] sm:$0xf]
  %v69 = vld [vmem:[%s1 + $0x74] sm:$0xf]
  %v70 = vld [vmem:[%s1 + $0x78] sm:$0xf]
  %v71 = vld [vmem:[%s1 + $0x7c] sm:$0xf]
  %v72 = vunpack.c.l.bf16 %v40
  %v73 = vunpack.c.l.bf16 %v41
  %v74 = vunpack.c.l.bf16 %v42
  %v75 = vunpack.c.l.bf16 %v43
  %v76 = vunpack.c.l.bf16 %v44
  %v77 = vunpack.c.l.bf16 %v45
  %v78 = vunpack.c.l.bf16 %v46
  %v79 = vunpack.c.l.bf16 %v47
  %v80 = vunpack.c.l.bf16 %v48
  %v81 = vunpack.c.l.bf16 %v49
  %v82 = vunpack.c.l.bf16 %v50
  %v83 = vunpack.c.l.bf16 %v51
  %v84 = vunpack.c.l.bf16 %v52
  %v85 = vunpack.c.l.bf16 %v53
  %v86 = vunpack.c.l.bf16 %v54
  %v87 = vunpack.c.l.bf16 %v55
  %v88 = vunpack.c.l.bf16 %v56
  %v89 = vunpack.c.l.bf16 %v57
  %v90 = vunpack.c.l.bf16 %v58
  %v91 = vunpack.c.l.bf16 %v59
  %v92 = vunpack.c.l.bf16 %v60
  %v93 = vunpack.c.l.bf16 %v61
  %v94 = vunpack.c.l.bf16 %v62
  %v95 = vunpack.c.l.bf16 %v63
  %v96 = vunpack.c.l.bf16 %v64
  %v97 = vunpack.c.l.bf16 %v65
  %v98 = vunpack.c.l.bf16 %v66
  %v99 = vunpack.c.l.bf16 %v67
  %v100 = vunpack.c.l.bf16 %v68
  %v101 = vunpack.c.l.bf16 %v69
  %v102 = vunpack.c.l.bf16 %v70
  %v103 = vunpack.c.l.bf16 %v71
  %v104 = vld [vmem:[%s2] sm:$0xff]
  %v105 = vld [vmem:[%s2 + $0x8] sm:$0xff]
  %v106 = vld [vmem:[%s2 + $0x10] sm:$0xff]
  %v107 = vld [vmem:[%s2 + $0x18] sm:$0xff]
  %v108 = vpack.c.bf16 %v105, %v104
  %v109 = vpack.c.bf16 %v107, %v106
  %v110 = vpack.c.bf16 %v37, %v36
  %v111 = vpack.c.bf16 %v39, %v38
  %vm112 = vcmask 261120
  %v114 = vsel %vm112, %v108, 0
  %v117 = vsel %vm112, %v109, 0
  %119 = vmatpush.bf16.msra.mxu0 0
  %120 = vmatpush.bf16.msra.mxu0 0
  %121 = vmatpush.bf16.msra.mxu0 0
  %122 = vmatpush.bf16.msra.mxu0 0
  %123 = vmatpush.bf16.msra.mxu0 0
  %124 = vmatpush.bf16.msra.mxu0 0
  %125 = vmatpush.bf16.msra.mxu0 %v111
  %126 = vmatpush.bf16.msra.mxu0 %v110
  %127 = vmatmul.bf16.gmra.mxu0 %v114
  %v128 = vpop.f32.mrf.mxu0
  %v129 = vadd.f32 0.0, %v128
  %v130 = vpop.f32.mrf.mxu0
  %v131 = vadd.f32 0.0, %v130
  %132 = vmatmul.bf16.gmra.mxu0 %v117
  %v133 = vpop.f32.mrf.mxu0
  %v134 = vadd.f32 0.0, %v133
  %v135 = vpop.f32.mrf.mxu0
  %v136 = vadd.f32 0.0, %v135
  %137 = vdwg.mxu0
  %v142 = vrot.slane %v129, 1
  %v143 = vrot.slane %v129, 2
  %v144 = vrot.slane %v129, 3
  %v145 = vrot.slane %v129, 4
  %v146 = vrot.slane %v129, 5
  %v147 = vrot.slane %v129, 6
  %v148 = vrot.slane %v129, 7
  %v149 = vrot.slane %v131, 1
  %v150 = vrot.slane %v131, 2
  %v151 = vrot.slane %v131, 3
  %v152 = vrot.slane %v131, 4
  %v153 = vrot.slane %v131, 5
  %v154 = vrot.slane %v131, 6
  %v155 = vrot.slane %v131, 7
  %v156 = vrot.slane %v134, 1
  %v157 = vrot.slane %v134, 2
  %v158 = vrot.slane %v134, 3
  %v159 = vrot.slane %v134, 4
  %v160 = vrot.slane %v134, 5
  %v161 = vrot.slane %v134, 6
  %v162 = vrot.slane %v134, 7
  %v163 = vrot.slane %v136, 1
  %v164 = vrot.slane %v136, 2
  %v165 = vrot.slane %v136, 3
  %v166 = vrot.slane %v136, 4
  %v167 = vrot.slane %v136, 5
  %v168 = vrot.slane %v136, 6
  %v169 = vrot.slane %v136, 7
  %v170 = vperm.slane %v129, 0
  %v171 = vperm.slane %v142, 0
  %v172 = vperm.slane %v143, 0
  %v173 = vperm.slane %v144, 0
  %v174 = vperm.slane %v145, 0
  %v175 = vperm.slane %v146, 0
  %v176 = vperm.slane %v147, 0
  %v177 = vperm.slane %v148, 0
  %v178 = vperm.slane %v131, 0
  %v179 = vperm.slane %v149, 0
  %v180 = vperm.slane %v150, 0
  %v181 = vperm.slane %v151, 0
  %v182 = vperm.slane %v152, 0
  %v183 = vperm.slane %v153, 0
  %v184 = vperm.slane %v154, 0
  %v185 = vperm.slane %v155, 0
  %v186 = vperm.slane %v134, 0
  %v187 = vperm.slane %v156, 0
  %v188 = vperm.slane %v157, 0
  %v189 = vperm.slane %v158, 0
  %v190 = vperm.slane %v159, 0
  %v191 = vperm.slane %v160, 0
  %v192 = vperm.slane %v161, 0
  %v193 = vperm.slane %v162, 0
  %v194 = vperm.slane %v136, 0
  %v195 = vperm.slane %v163, 0
  %v196 = vperm.slane %v164, 0
  %v197 = vperm.slane %v165, 0
  %v198 = vperm.slane %v166, 0
  %v199 = vperm.slane %v167, 0
  %v200 = vperm.slane %v168, 0
  %v201 = vperm.slane %v169, 0
  %v234 = vmul.f32 %v170, %v72
  %v235 = vmul.f32 %v171, %v73
  %v236 = vmul.f32 %v172, %v74
  %v237 = vmul.f32 %v173, %v75
  %v238 = vmul.f32 %v174, %v76
  %v239 = vmul.f32 %v175, %v77
  %v240 = vmul.f32 %v176, %v78
  %v241 = vmul.f32 %v177, %v79
  %v242 = vmul.f32 %v178, %v80
  %v243 = vmul.f32 %v179, %v81
  %v244 = vmul.f32 %v180, %v82
  %v245 = vmul.f32 %v181, %v83
  %v246 = vmul.f32 %v182, %v84
  %v247 = vmul.f32 %v183, %v85
  %v248 = vmul.f32 %v184, %v86
  %v249 = vmul.f32 %v185, %v87
  %v250 = vmul.f32 %v186, %v88
  %v251 = vmul.f32 %v187, %v89
  %v252 = vmul.f32 %v188, %v90
  %v253 = vmul.f32 %v189, %v91
  %v254 = vmul.f32 %v190, %v92
  %v255 = vmul.f32 %v191, %v93
  %v256 = vmul.f32 %v192, %v94
  %v257 = vmul.f32 %v193, %v95
  %v258 = vmul.f32 %v194, %v96
  %v259 = vmul.f32 %v195, %v97
  %v260 = vmul.f32 %v196, %v98
  %v261 = vmul.f32 %v197, %v99
  %v262 = vmul.f32 %v198, %v100
  %v263 = vmul.f32 %v199, %v101
  %v264 = vmul.f32 %v200, %v102
  %v265 = vmul.f32 %v201, %v103
  %vm266 = vcmask 523264
  %v267 = vsel %vm266, %v234, 0.0
  %v268 = vsel %vm266, %v235, 0.0
  %v269 = vadd.f32 %v267, %v268
  %v270 = vsel %vm266, %v236, 0.0
  %v271 = vadd.f32 %v269, %v270
  %v272 = vsel %vm266, %v237, 0.0
  %v273 = vadd.f32 %v271, %v272
  %v274 = vsel %vm266, %v238, 0.0
  %v275 = vadd.f32 %v273, %v274
  %v276 = vsel %vm266, %v239, 0.0
  %v277 = vadd.f32 %v275, %v276
  %v278 = vsel %vm266, %v240, 0.0
  %v279 = vadd.f32 %v277, %v278
  %v280 = vsel %vm266, %v241, 0.0
  %v281 = vadd.f32 %v279, %v280
  %v282 = vsel %vm266, %v242, 0.0
  %v283 = vadd.f32 %v281, %v282
  %v284 = vsel %vm266, %v243, 0.0
  %v285 = vadd.f32 %v283, %v284
  %v286 = vsel %vm266, %v244, 0.0
  %v287 = vadd.f32 %v285, %v286
  %v288 = vsel %vm266, %v245, 0.0
  %v289 = vadd.f32 %v287, %v288
  %v290 = vsel %vm266, %v246, 0.0
  %v291 = vadd.f32 %v289, %v290
  %v292 = vsel %vm266, %v247, 0.0
  %v293 = vadd.f32 %v291, %v292
  %v294 = vsel %vm266, %v248, 0.0
  %v295 = vadd.f32 %v293, %v294
  %v296 = vsel %vm266, %v249, 0.0
  %v297 = vadd.f32 %v295, %v296
  %v298 = vsel %vm266, %v250, 0.0
  %v299 = vadd.f32 %v297, %v298
  %v300 = vsel %vm266, %v251, 0.0
  %v301 = vadd.f32 %v299, %v300
  %v302 = vsel %vm266, %v252, 0.0
  %v303 = vadd.f32 %v301, %v302
  %v304 = vsel %vm266, %v253, 0.0
  %v305 = vadd.f32 %v303, %v304
  %v306 = vsel %vm266, %v254, 0.0
  %v307 = vadd.f32 %v305, %v306
  %v308 = vsel %vm266, %v255, 0.0
  %v309 = vadd.f32 %v307, %v308
  %v310 = vsel %vm266, %v256, 0.0
  %v311 = vadd.f32 %v309, %v310
  %v312 = vsel %vm266, %v257, 0.0
  %v313 = vadd.f32 %v311, %v312
  %v314 = vsel %vm266, %v258, 0.0
  %v315 = vadd.f32 %v313, %v314
  %v316 = vsel %vm266, %v259, 0.0
  %v317 = vadd.f32 %v315, %v316
  %v318 = vsel %vm266, %v260, 0.0
  %v319 = vadd.f32 %v317, %v318
  %v320 = vsel %vm266, %v261, 0.0
  %v321 = vadd.f32 %v319, %v320
  %v322 = vsel %vm266, %v262, 0.0
  %v323 = vadd.f32 %v321, %v322
  %v324 = vsel %vm266, %v263, 0.0
  %v325 = vadd.f32 %v323, %v324
  %v326 = vsel %vm266, %v264, 0.0
  %v327 = vadd.f32 %v325, %v326
  %v328 = vsel %vm266, %v265, 0.0
  %v329 = vadd.f32 %v327, %v328
  %v330 = vmul.f32 %v329, 0.17677669
  %v331 = vsel %vm266, %v330, -inf
  %v332 = vrot.slane %v331, 4
  %v333 = vmax.f32 %v331, %v332
  %v334 = vrot.slane %v333, 2
  %v335 = vmax.f32 %v333, %v334
  %v336 = vrot.slane %v335, 1
  %v337 = vmax.f32 %v335, %v336
  %v338 = vsub.f32 %v330, %v337
  %v339 = vmul.f32 %v338, 1.442695
  %v340 = vpow.pop %v339
  %v341 = vsel %vm266, %v340, 0.0
  %v342 = vrot.slane %v341, 4
  %v343 = vadd.f32 %v341, %v342
  %v344 = vrot.slane %v343, 2
  %v345 = vadd.f32 %v343, %v344
  %v346 = vrot.slane %v345, 1
  %v347 = vadd.f32 %v345, %v346
  %v348 = vrcp.pop %v347
  %v349 = vmul.f32 %v340, %v348
  %v350 = vmul.f32 %v349, %v72
  %v351 = vmul.f32 %v349, %v73
  %v352 = vmul.f32 %v349, %v74
  %v353 = vmul.f32 %v349, %v75
  %v354 = vmul.f32 %v349, %v76
  %v355 = vmul.f32 %v349, %v77
  %v356 = vmul.f32 %v349, %v78
  %v357 = vmul.f32 %v349, %v79
  %v358 = vmul.f32 %v349, %v80
  %v359 = vmul.f32 %v349, %v81
  %v360 = vmul.f32 %v349, %v82
  %v361 = vmul.f32 %v349, %v83
  %v362 = vmul.f32 %v349, %v84
  %v363 = vmul.f32 %v349, %v85
  %v364 = vmul.f32 %v349, %v86
  %v365 = vmul.f32 %v349, %v87
  %v366 = vmul.f32 %v349, %v88
  %v367 = vmul.f32 %v349, %v89
  %v368 = vmul.f32 %v349, %v90
  %v369 = vmul.f32 %v349, %v91
  %v370 = vmul.f32 %v349, %v92
  %v371 = vmul.f32 %v349, %v93
  %v372 = vmul.f32 %v349, %v94
  %v373 = vmul.f32 %v349, %v95
  %v374 = vmul.f32 %v349, %v96
  %v375 = vmul.f32 %v349, %v97
  %v376 = vmul.f32 %v349, %v98
  %v377 = vmul.f32 %v349, %v99
  %v378 = vmul.f32 %v349, %v100
  %v379 = vmul.f32 %v349, %v101
  %v380 = vmul.f32 %v349, %v102
  %v381 = vmul.f32 %v349, %v103
  %v382 = vsel %vm266, %v350, 0.0
  %v383 = vrot.slane %v382, 4
  %v384 = vadd.f32 %v382, %v383
  %v385 = vrot.slane %v384, 2
  %v386 = vadd.f32 %v384, %v385
  %v387 = vrot.slane %v386, 1
  %v388 = vadd.f32 %v386, %v387
  %v389 = vsel %vm266, %v351, 0.0
  %v390 = vrot.slane %v389, 4
  %v391 = vadd.f32 %v389, %v390
  %v392 = vrot.slane %v391, 2
  %v393 = vadd.f32 %v391, %v392
  %v394 = vrot.slane %v393, 1
  %v395 = vadd.f32 %v393, %v394
  %v396 = vsel %vm266, %v352, 0.0
  %v397 = vrot.slane %v396, 4
  %v398 = vadd.f32 %v396, %v397
  %v399 = vrot.slane %v398, 2
  %v400 = vadd.f32 %v398, %v399
  %v401 = vrot.slane %v400, 1
  %v402 = vadd.f32 %v400, %v401
  %v403 = vsel %vm266, %v353, 0.0
  %v404 = vrot.slane %v403, 4
  %v405 = vadd.f32 %v403, %v404
  %v406 = vrot.slane %v405, 2
  %v407 = vadd.f32 %v405, %v406
  %v408 = vrot.slane %v407, 1
  %v409 = vadd.f32 %v407, %v408
  %v410 = vsel %vm266, %v354, 0.0
  %v411 = vrot.slane %v410, 4
  %v412 = vadd.f32 %v410, %v411
  %v413 = vrot.slane %v412, 2
  %v414 = vadd.f32 %v412, %v413
  %v415 = vrot.slane %v414, 1
  %v416 = vadd.f32 %v414, %v415
  %v417 = vsel %vm266, %v355, 0.0
  %v418 = vrot.slane %v417, 4
  %v419 = vadd.f32 %v417, %v418
  %v420 = vrot.slane %v419, 2
  %v421 = vadd.f32 %v419, %v420
  %v422 = vrot.slane %v421, 1
  %v423 = vadd.f32 %v421, %v422
  %v424 = vsel %vm266, %v356, 0.0
  %v425 = vrot.slane %v424, 4
  %v426 = vadd.f32 %v424, %v425
  %v427 = vrot.slane %v426, 2
  %v428 = vadd.f32 %v426, %v427
  %v429 = vrot.slane %v428, 1
  %v430 = vadd.f32 %v428, %v429
  %v431 = vsel %vm266, %v357, 0.0
  %v432 = vrot.slane %v431, 4
  %v433 = vadd.f32 %v431, %v432
  %v434 = vrot.slane %v433, 2
  %v435 = vadd.f32 %v433, %v434
  %v436 = vrot.slane %v435, 1
  %v437 = vadd.f32 %v435, %v436
  %v438 = vsel %vm266, %v358, 0.0
  %v439 = vrot.slane %v438, 4
  %v440 = vadd.f32 %v438, %v439
  %v441 = vrot.slane %v440, 2
  %v442 = vadd.f32 %v440, %v441
  %v443 = vrot.slane %v442, 1
  %v444 = vadd.f32 %v442, %v443
  %v445 = vsel %vm266, %v359, 0.0
  %v446 = vrot.slane %v445, 4
  %v447 = vadd.f32 %v445, %v446
  %v448 = vrot.slane %v447, 2
  %v449 = vadd.f32 %v447, %v448
  %v450 = vrot.slane %v449, 1
  %v451 = vadd.f32 %v449, %v450
  %v452 = vsel %vm266, %v360, 0.0
  %v453 = vrot.slane %v452, 4
  %v454 = vadd.f32 %v452, %v453
  %v455 = vrot.slane %v454, 2
  %v456 = vadd.f32 %v454, %v455
  %v457 = vrot.slane %v456, 1
  %v458 = vadd.f32 %v456, %v457
  %v459 = vsel %vm266, %v361, 0.0
  %v460 = vrot.slane %v459, 4
  %v461 = vadd.f32 %v459, %v460
  %v462 = vrot.slane %v461, 2
  %v463 = vadd.f32 %v461, %v462
  %v464 = vrot.slane %v463, 1
  %v465 = vadd.f32 %v463, %v464
  %v466 = vsel %vm266, %v362, 0.0
  %v467 = vrot.slane %v466, 4
  %v468 = vadd.f32 %v466, %v467
  %v469 = vrot.slane %v468, 2
  %v470 = vadd.f32 %v468, %v469
  %v471 = vrot.slane %v470, 1
  %v472 = vadd.f32 %v470, %v471
  %v473 = vsel %vm266, %v363, 0.0
  %v474 = vrot.slane %v473, 4
  %v475 = vadd.f32 %v473, %v474
  %v476 = vrot.slane %v475, 2
  %v477 = vadd.f32 %v475, %v476
  %v478 = vrot.slane %v477, 1
  %v479 = vadd.f32 %v477, %v478
  %v480 = vsel %vm266, %v364, 0.0
  %v481 = vrot.slane %v480, 4
  %v482 = vadd.f32 %v480, %v481
  %v483 = vrot.slane %v482, 2
  %v484 = vadd.f32 %v482, %v483
  %v485 = vrot.slane %v484, 1
  %v486 = vadd.f32 %v484, %v485
  %v487 = vsel %vm266, %v365, 0.0
  %v488 = vrot.slane %v487, 4
  %v489 = vadd.f32 %v487, %v488
  %v490 = vrot.slane %v489, 2
  %v491 = vadd.f32 %v489, %v490
  %v492 = vrot.slane %v491, 1
  %v493 = vadd.f32 %v491, %v492
  %v494 = vsel %vm266, %v366, 0.0
  %v495 = vrot.slane %v494, 4
  %v496 = vadd.f32 %v494, %v495
  %v497 = vrot.slane %v496, 2
  %v498 = vadd.f32 %v496, %v497
  %v499 = vrot.slane %v498, 1
  %v500 = vadd.f32 %v498, %v499
  %v501 = vsel %vm266, %v367, 0.0
  %v502 = vrot.slane %v501, 4
  %v503 = vadd.f32 %v501, %v502
  %v504 = vrot.slane %v503, 2
  %v505 = vadd.f32 %v503, %v504
  %v506 = vrot.slane %v505, 1
  %v507 = vadd.f32 %v505, %v506
  %v508 = vsel %vm266, %v368, 0.0
  %v509 = vrot.slane %v508, 4
  %v510 = vadd.f32 %v508, %v509
  %v511 = vrot.slane %v510, 2
  %v512 = vadd.f32 %v510, %v511
  %v513 = vrot.slane %v512, 1
  %v514 = vadd.f32 %v512, %v513
  %v515 = vsel %vm266, %v369, 0.0
  %v516 = vrot.slane %v515, 4
  %v517 = vadd.f32 %v515, %v516
  %v518 = vrot.slane %v517, 2
  %v519 = vadd.f32 %v517, %v518
  %v520 = vrot.slane %v519, 1
  %v521 = vadd.f32 %v519, %v520
  %v522 = vsel %vm266, %v370, 0.0
  %v523 = vrot.slane %v522, 4
  %v524 = vadd.f32 %v522, %v523
  %v525 = vrot.slane %v524, 2
  %v526 = vadd.f32 %v524, %v525
  %v527 = vrot.slane %v526, 1
  %v528 = vadd.f32 %v526, %v527
  %v529 = vsel %vm266, %v371, 0.0
  %v530 = vrot.slane %v529, 4
  %v531 = vadd.f32 %v529, %v530
  %v532 = vrot.slane %v531, 2
  %v533 = vadd.f32 %v531, %v532
  %v534 = vrot.slane %v533, 1
  %v535 = vadd.f32 %v533, %v534
  %v536 = vsel %vm266, %v372, 0.0
  %v537 = vrot.slane %v536, 4
  %v538 = vadd.f32 %v536, %v537
  %v539 = vrot.slane %v538, 2
  %v540 = vadd.f32 %v538, %v539
  %v541 = vrot.slane %v540, 1
  %v542 = vadd.f32 %v540, %v541
  %v543 = vsel %vm266, %v373, 0.0
  %v544 = vrot.slane %v543, 4
  %v545 = vadd.f32 %v543, %v544
  %v546 = vrot.slane %v545, 2
  %v547 = vadd.f32 %v545, %v546
  %v548 = vrot.slane %v547, 1
  %v549 = vadd.f32 %v547, %v548
  %v550 = vsel %vm266, %v374, 0.0
  %v551 = vrot.slane %v550, 4
  %v552 = vadd.f32 %v550, %v551
  %v553 = vrot.slane %v552, 2
  %v554 = vadd.f32 %v552, %v553
  %v555 = vrot.slane %v554, 1
  %v556 = vadd.f32 %v554, %v555
  %v557 = vsel %vm266, %v375, 0.0
  %v558 = vrot.slane %v557, 4
  %v559 = vadd.f32 %v557, %v558
  %v560 = vrot.slane %v559, 2
  %v561 = vadd.f32 %v559, %v560
  %v562 = vrot.slane %v561, 1
  %v563 = vadd.f32 %v561, %v562
  %v564 = vsel %vm266, %v376, 0.0
  %v565 = vrot.slane %v564, 4
  %v566 = vadd.f32 %v564, %v565
  %v567 = vrot.slane %v566, 2
  %v568 = vadd.f32 %v566, %v567
  %v569 = vrot.slane %v568, 1
  %v570 = vadd.f32 %v568, %v569
  %v571 = vsel %vm266, %v377, 0.0
  %v572 = vrot.slane %v571, 4
  %v573 = vadd.f32 %v571, %v572
  %v574 = vrot.slane %v573, 2
  %v575 = vadd.f32 %v573, %v574
  %v576 = vrot.slane %v575, 1
  %v577 = vadd.f32 %v575, %v576
  %v578 = vsel %vm266, %v378, 0.0
  %v579 = vrot.slane %v578, 4
  %v580 = vadd.f32 %v578, %v579
  %v581 = vrot.slane %v580, 2
  %v582 = vadd.f32 %v580, %v581
  %v583 = vrot.slane %v582, 1
  %v584 = vadd.f32 %v582, %v583
  %v585 = vsel %vm266, %v379, 0.0
  %v586 = vrot.slane %v585, 4
  %v587 = vadd.f32 %v585, %v586
  %v588 = vrot.slane %v587, 2
  %v589 = vadd.f32 %v587, %v588
  %v590 = vrot.slane %v589, 1
  %v591 = vadd.f32 %v589, %v590
  %v592 = vsel %vm266, %v380, 0.0
  %v593 = vrot.slane %v592, 4
  %v594 = vadd.f32 %v592, %v593
  %v595 = vrot.slane %v594, 2
  %v596 = vadd.f32 %v594, %v595
  %v597 = vrot.slane %v596, 1
  %v598 = vadd.f32 %v596, %v597
  %v599 = vsel %vm266, %v381, 0.0
  %v600 = vrot.slane %v599, 4
  %v601 = vadd.f32 %v599, %v600
  %v602 = vrot.slane %v601, 2
  %v603 = vadd.f32 %v601, %v602
  %v604 = vrot.slane %v603, 1
  %v605 = vadd.f32 %v603, %v604
  %v606 = vld [vmem:[%s3] sm:$0xff]
  %v607 = vld [vmem:[%s3 + $0x8] sm:$0xff]
  %v608 = vld [vmem:[%s3 + $0x10] sm:$0xff]
  %v609 = vld [vmem:[%s3 + $0x18] sm:$0xff]
  %v610 = vpack.c.bf16 %v607, %v606
  %v611 = vpack.c.bf16 %v609, %v608
  %v612 = vpack.c.bf16 %v388, %v388
  %v613 = vpack.c.bf16 %v395, %v395
  %v614 = vpack.c.bf16 %v402, %v402
  %v615 = vpack.c.bf16 %v409, %v409
  %v616 = vpack.c.bf16 %v416, %v416
  %v617 = vpack.c.bf16 %v423, %v423
  %v618 = vpack.c.bf16 %v430, %v430
  %v619 = vpack.c.bf16 %v437, %v437
  %v620 = vpack.c.bf16 %v444, %v444
  %v621 = vpack.c.bf16 %v451, %v451
  %v622 = vpack.c.bf16 %v458, %v458
  %v623 = vpack.c.bf16 %v465, %v465
  %v624 = vpack.c.bf16 %v472, %v472
  %v625 = vpack.c.bf16 %v479, %v479
  %v626 = vpack.c.bf16 %v486, %v486
  %v627 = vpack.c.bf16 %v493, %v493
  %v628 = vpack.c.bf16 %v500, %v500
  %v629 = vpack.c.bf16 %v507, %v507
  %v630 = vpack.c.bf16 %v514, %v514
  %v631 = vpack.c.bf16 %v521, %v521
  %v632 = vpack.c.bf16 %v528, %v528
  %v633 = vpack.c.bf16 %v535, %v535
  %v634 = vpack.c.bf16 %v542, %v542
  %v635 = vpack.c.bf16 %v549, %v549
  %v636 = vpack.c.bf16 %v556, %v556
  %v637 = vpack.c.bf16 %v563, %v563
  %v638 = vpack.c.bf16 %v570, %v570
  %v639 = vpack.c.bf16 %v577, %v577
  %v640 = vpack.c.bf16 %v584, %v584
  %v641 = vpack.c.bf16 %v591, %v591
  %v642 = vpack.c.bf16 %v598, %v598
  %v643 = vpack.c.bf16 %v605, %v605
  %v644 = vld [vmem:[%s6] sm:$0xff]
  %v645 = vld [vmem:[%s6 + $0x8] sm:$0xff]
  %v646 = vld [vmem:[%s6 + $0x10] sm:$0xff]
  %v647 = vld [vmem:[%s6 + $0x18] sm:$0xff]
  %v680 = vunpack.c.l.b16 %v612
  %v681 = vunpack.c.l.b16 %v613
  %v682 = vunpack.c.l.b16 %v614
  %v683 = vunpack.c.l.b16 %v615
  %v684 = vunpack.c.l.b16 %v616
  %v685 = vunpack.c.l.b16 %v617
  %v686 = vunpack.c.l.b16 %v618
  %v687 = vunpack.c.l.b16 %v619
  %v688 = vunpack.c.l.b16 %v620
  %v689 = vunpack.c.l.b16 %v621
  %v690 = vunpack.c.l.b16 %v622
  %v691 = vunpack.c.l.b16 %v623
  %v692 = vunpack.c.l.b16 %v624
  %v693 = vunpack.c.l.b16 %v625
  %v694 = vunpack.c.l.b16 %v626
  %v695 = vunpack.c.l.b16 %v627
  %v696 = vunpack.c.l.b16 %v628
  %v697 = vunpack.c.l.b16 %v629
  %v698 = vunpack.c.l.b16 %v630
  %v699 = vunpack.c.l.b16 %v631
  %v700 = vunpack.c.l.b16 %v632
  %v701 = vunpack.c.l.b16 %v633
  %v702 = vunpack.c.l.b16 %v634
  %v703 = vunpack.c.l.b16 %v635
  %v704 = vunpack.c.l.b16 %v636
  %v705 = vunpack.c.l.b16 %v637
  %v706 = vunpack.c.l.b16 %v638
  %v707 = vunpack.c.l.b16 %v639
  %v708 = vunpack.c.l.b16 %v640
  %v709 = vunpack.c.l.b16 %v641
  %v710 = vunpack.c.l.b16 %v642
  %v711 = vunpack.c.l.b16 %v643
  %vm712 = vcmask 1041409
  %v713 = vsel %vm712, %v681, %v680
  %vm714 = vcmask 1042434
  %v715 = vsel %vm714, %v682, %v713
  %vm716 = vcmask 1043459
  %v717 = vsel %vm716, %v683, %v715
  %vm718 = vcmask 1044484
  %v719 = vsel %vm718, %v684, %v717
  %vm720 = vcmask 1045509
  %v721 = vsel %vm720, %v685, %v719
  %vm722 = vcmask 1046534
  %v723 = vsel %vm722, %v686, %v721
  %vm724 = vcmask 1047559
  %v725 = vsel %vm724, %v687, %v723
  %v726 = vsel %vm712, %v689, %v688
  %v727 = vsel %vm714, %v690, %v726
  %v728 = vsel %vm716, %v691, %v727
  %v729 = vsel %vm718, %v692, %v728
  %v730 = vsel %vm720, %v693, %v729
  %v731 = vsel %vm722, %v694, %v730
  %v732 = vsel %vm724, %v695, %v731
  %v733 = vsel %vm712, %v697, %v696
  %v734 = vsel %vm714, %v698, %v733
  %v735 = vsel %vm716, %v699, %v734
  %v736 = vsel %vm718, %v700, %v735
  %v737 = vsel %vm720, %v701, %v736
  %v738 = vsel %vm722, %v702, %v737
  %v739 = vsel %vm724, %v703, %v738
  %v740 = vsel %vm712, %v705, %v704
  %v741 = vsel %vm714, %v706, %v740
  %v742 = vsel %vm716, %v707, %v741
  %v743 = vsel %vm718, %v708, %v742
  %v744 = vsel %vm720, %v709, %v743
  %v745 = vsel %vm722, %v710, %v744
  %v746 = vsel %vm724, %v711, %v745
  %v747 = vpack.c.b16 %v732, %v725
  %v748 = vpack.c.b16 %v746, %v739
  %v752 = vsel %vm112, %v610, 0
  %v755 = vsel %vm112, %v611, 0
  %757 = vmatpush.bf16.msra.mxu0 0
  %758 = vmatpush.bf16.msra.mxu0 0
  %759 = vmatpush.bf16.msra.mxu0 0
  %760 = vmatpush.bf16.msra.mxu0 0
  %761 = vmatpush.bf16.msra.mxu0 0
  %762 = vmatpush.bf16.msra.mxu0 0
  %763 = vmatpush.bf16.msra.mxu0 %v748
  %764 = vmatpush.bf16.msra.mxu0 %v747
  %765 = vmatmul.bf16.gmra.mxu0 %v752
  %v766 = vpop.f32.mrf.mxu0
  %v767 = vadd.f32 %v36, %v766
  %v768 = vpop.f32.mrf.mxu0
  %v769 = vadd.f32 %v37, %v768
  %770 = vmatmul.bf16.gmra.mxu0 %v755
  %v771 = vpop.f32.mrf.mxu0
  %v772 = vadd.f32 %v38, %v771
  %v773 = vpop.f32.mrf.mxu0
  %v774 = vadd.f32 %v39, %v773
  %775 = vdwg.mxu0
  %777 = vset.pattern.permute.xlu0 0
  %778 = vperm.xlu0 %777, %v644
  %v779 = vpop.permute.xlu0 %778
  %782 = vset.pattern.permute.xlu0 0
  %783 = vperm.xlu0 %782, %v645
  %v784 = vpop.permute.xlu0 %783
  %787 = vset.pattern.permute.xlu0 0
  %788 = vperm.xlu0 %787, %v646
  %v789 = vpop.permute.xlu0 %788
  %792 = vset.pattern.permute.xlu0 0
  %793 = vperm.xlu0 %792, %v647
  %v794 = vpop.permute.xlu0 %793
  %v796 = vmul.f32 %v779, %v767
  %v797 = vmul.f32 %v784, %v769
  %v798 = vmul.f32 %v789, %v772
  %v799 = vmul.f32 %v794, %v774
  %v800 = vld [vmem:[%s7] sm:$0xff]
  %v801 = vld [vmem:[%s7 + $0x8] sm:$0xff]
  %v802 = vld [vmem:[%s7 + $0x10] sm:$0xff]
  %v803 = vld [vmem:[%s7 + $0x18] sm:$0xff]
  %805 = vset.pattern.permute.xlu0 0
  %806 = vperm.xlu0 %805, %v800
  %v807 = vpop.permute.xlu0 %806
  %810 = vset.pattern.permute.xlu0 0
  %811 = vperm.xlu0 %810, %v801
  %v812 = vpop.permute.xlu0 %811
  %815 = vset.pattern.permute.xlu0 0
  %816 = vperm.xlu0 %815, %v802
  %v817 = vpop.permute.xlu0 %816
  %820 = vset.pattern.permute.xlu0 0
  %821 = vperm.xlu0 %820, %v803
  %v822 = vpop.permute.xlu0 %821
  %v824 = vadd.f32 %v796, %v807
  %v825 = vadd.f32 %v797, %v812
  %v826 = vadd.f32 %v798, %v817
  %v827 = vadd.f32 %v799, %v822
  %v828 = vld [vmem:[%s4] sm:$0xff]
  %v829 = vld [vmem:[%s4 + $0x8] sm:$0xff]
  %v830 = vld [vmem:[%s4 + $0x10] sm:$0xff]
  %v831 = vld [vmem:[%s4 + $0x18] sm:$0xff]
  %v832 = vld [vmem:[%s4 + $0x20] sm:$0xff]
  %v833 = vld [vmem:[%s4 + $0x28] sm:$0xff]
  %v834 = vld [vmem:[%s4 + $0x30] sm:$0xff]
  %v835 = vld [vmem:[%s4 + $0x38] sm:$0xff]
  %v836 = vpack.c.bf16 %v829, %v828
  %v837 = vpack.c.bf16 %v831, %v830
  %v838 = vpack.c.bf16 %v833, %v832
  %v839 = vpack.c.bf16 %v835, %v834
  %v840 = vpack.c.bf16 %v825, %v824
  %v841 = vpack.c.bf16 %v827, %v826
  %v843 = vsel %vm112, %v836, 0
  %v846 = vsel %vm112, %v837, 0
  %v849 = vsel %vm112, %v838, 0
  %v852 = vsel %vm112, %v839, 0
  %854 = vmatpush.bf16.msra.mxu0 0
  %855 = vmatpush.bf16.msra.mxu0 0
  %856 = vmatpush.bf16.msra.mxu0 0
  %857 = vmatpush.bf16.msra.mxu0 0
  %858 = vmatpush.bf16.msra.mxu0 0
  %859 = vmatpush.bf16.msra.mxu0 0
  %860 = vmatpush.bf16.msra.mxu0 %v841
  %861 = vmatpush.bf16.msra.mxu0 %v840
  %862 = vmatmul.bf16.gmra.mxu0 %v843
  %v863 = vpop.f32.mrf.mxu0
  %v864 = vadd.f32 0.0, %v863
  %v865 = vpop.f32.mrf.mxu0
  %v866 = vadd.f32 0.0, %v865
  %867 = vmatmul.bf16.gmra.mxu0 %v846
  %v868 = vpop.f32.mrf.mxu0
  %v869 = vadd.f32 0.0, %v868
  %v870 = vpop.f32.mrf.mxu0
  %v871 = vadd.f32 0.0, %v870
  %872 = vmatmul.bf16.gmra.mxu0 %v849
  %v873 = vpop.f32.mrf.mxu0
  %v874 = vadd.f32 0.0, %v873
  %v875 = vpop.f32.mrf.mxu0
  %v876 = vadd.f32 0.0, %v875
  %877 = vmatmul.bf16.gmra.mxu0 %v852
  %v878 = vpop.f32.mrf.mxu0
  %v879 = vadd.f32 0.0, %v878
  %v880 = vpop.f32.mrf.mxu0
  %v881 = vadd.f32 0.0, %v880
  %882 = vdwg.mxu0
  %vm883 = vcmp.gt.f32.partialorder %v864, 0.0
  %vm884 = vcmp.gt.f32.partialorder %v866, 0.0
  %vm885 = vcmp.gt.f32.partialorder %v869, 0.0
  %vm886 = vcmp.gt.f32.partialorder %v871, 0.0
  %vm887 = vcmp.gt.f32.partialorder %v874, 0.0
  %vm888 = vcmp.gt.f32.partialorder %v876, 0.0
  %vm889 = vcmp.gt.f32.partialorder %v879, 0.0
  %vm890 = vcmp.gt.f32.partialorder %v881, 0.0
  %v891 = vmul.f32 %v864, 0.2
  %v892 = vmul.f32 %v866, 0.2
  %v893 = vmul.f32 %v869, 0.2
  %v894 = vmul.f32 %v871, 0.2
  %v895 = vmul.f32 %v874, 0.2
  %v896 = vmul.f32 %v876, 0.2
  %v897 = vmul.f32 %v879, 0.2
  %v898 = vmul.f32 %v881, 0.2
  %v899 = vsel %vm883, %v864, %v891
  %v900 = vsel %vm884, %v866, %v892
  %v901 = vsel %vm885, %v869, %v893
  %v902 = vsel %vm886, %v871, %v894
  %v903 = vsel %vm887, %v874, %v895
  %v904 = vsel %vm888, %v876, %v896
  %v905 = vsel %vm889, %v879, %v897
  %v906 = vsel %vm890, %v881, %v898
  %v907 = vld [vmem:[%s5] sm:$0xff]
  %v908 = vld [vmem:[%s5 + $0x8] sm:$0xff]
  %v909 = vld [vmem:[%s5 + $0x10] sm:$0xff]
  %v910 = vld [vmem:[%s5 + $0x18] sm:$0xff]
  %v911 = vpack.c.bf16 %v908, %v907
  %v912 = vpack.c.bf16 %v910, %v909
  %v913 = vpack.c.bf16 %v900, %v899
  %v914 = vpack.c.bf16 %v902, %v901
  %v915 = vpack.c.bf16 %v904, %v903
  %v916 = vpack.c.bf16 %v906, %v905
  %v917 = vld [vmem:[%s8] sm:$0xff]
  %v918 = vld [vmem:[%s8 + $0x8] sm:$0xff]
  %v919 = vld [vmem:[%s8 + $0x10] sm:$0xff]
  %v920 = vld [vmem:[%s8 + $0x18] sm:$0xff]
  %v922 = vsel %vm266, %v911, 0
  %v925 = vsel %vm266, %v912, 0
  %927 = vmatpush.bf16.msra.mxu0 0
  %928 = vmatpush.bf16.msra.mxu0 0
  %929 = vmatpush.bf16.msra.mxu0 0
  %930 = vmatpush.bf16.msra.mxu0 0
  %931 = vmatpush.bf16.msra.mxu0 %v916
  %932 = vmatpush.bf16.msra.mxu0 %v915
  %933 = vmatpush.bf16.msra.mxu0 %v914
  %934 = vmatpush.bf16.msra.mxu0 %v913
  %935 = vmatmul.bf16.gmra.mxu0 %v922
  %v936 = vpop.f32.mrf.mxu0
  %v937 = vadd.f32 %v824, %v936
  %v938 = vpop.f32.mrf.mxu0
  %v939 = vadd.f32 %v825, %v938
  %940 = vmatmul.bf16.gmra.mxu0 %v925
  %v941 = vpop.f32.mrf.mxu0
  %v942 = vadd.f32 %v826, %v941
  %v943 = vpop.f32.mrf.mxu0
  %v944 = vadd.f32 %v827, %v943
  %945 = vdwg.mxu0
  %947 = vset.pattern.permute.xlu0 0
  %948 = vperm.xlu0 %947, %v917
  %v949 = vpop.permute.xlu0 %948
  %952 = vset.pattern.permute.xlu0 0
  %953 = vperm.xlu0 %952, %v918
  %v954 = vpop.permute.xlu0 %953
  %957 = vset.pattern.permute.xlu0 0
  %958 = vperm.xlu0 %957, %v919
  %v959 = vpop.permute.xlu0 %958
  %962 = vset.pattern.permute.xlu0 0
  %963 = vperm.xlu0 %962, %v920
  %v964 = vpop.permute.xlu0 %963
  %v966 = vmul.f32 %v949, %v937
  %v967 = vmul.f32 %v954, %v939
  %v968 = vmul.f32 %v959, %v942
  %v969 = vmul.f32 %v964, %v944
  %v970 = vld [vmem:[%s9] sm:$0xff]
  %v971 = vld [vmem:[%s9 + $0x8] sm:$0xff]
  %v972 = vld [vmem:[%s9 + $0x10] sm:$0xff]
  %v973 = vld [vmem:[%s9 + $0x18] sm:$0xff]
  %975 = vset.pattern.permute.xlu0 0
  %976 = vperm.xlu0 %975, %v970
  %v977 = vpop.permute.xlu0 %976
  %980 = vset.pattern.permute.xlu0 0
  %981 = vperm.xlu0 %980, %v971
  %v982 = vpop.permute.xlu0 %981
  %985 = vset.pattern.permute.xlu0 0
  %986 = vperm.xlu0 %985, %v972
  %v987 = vpop.permute.xlu0 %986
  %990 = vset.pattern.permute.xlu0 0
  %991 = vperm.xlu0 %990, %v973
  %v992 = vpop.permute.xlu0 %991
  %v994 = vadd.f32 %v966, %v977
  %v995 = vadd.f32 %v967, %v982
  %v996 = vadd.f32 %v968, %v987
  %v997 = vadd.f32 %v969, %v992
  %998 = vst.msk [vmem:[%s10] sm:$0xff] %vm266, %v994
  %999 = vst.msk [vmem:[%s10 + $0x8] sm:$0xff] %vm266, %v995
  %1000 = vst.msk [vmem:[%s10 + $0x10] sm:$0xff] %vm266, %v996
  %1001 = vst.msk [vmem:[%s10 + $0x18] sm:$0xff] %vm266, %v997
  // Predicated region
  $region42: #{_stage_pre.11} parent=0 // pred_check
    _
  $region43: #{_stage_pre.11} parent=0 // pred_check_branch
    %1003 = sbr.rel (0) target = $region45
  $region44: #{_stage_pre.11} parent=0 // pred_region
    _
  $region45: #{_stage_pre.11} parent=0 // pred_fallthru
    _
  // Predicated region
  $region46: #{_stage_pre.11} parent=0 // pred_check
    _
  $region47: #{_stage_pre.11} parent=0 // pred_check_branch
    %1005 = sbr.rel (0) target = $region49
  $region48: #{_stage_pre.11} parent=0 // pred_region
    _
  $region49: #{_stage_pre.11} parent=0 // pred_fallthru
    _

</llo_original>
